<compile_context>
chip_gen: v6e
topology: v6e:2x2x1
jax: 0.10.0
libtpu: 0.0.40
codegen_flags: <defaults>
</compile_context>

<pallas_src>
import jax
import jax.numpy as jnp
import numpy as np
from jax.experimental import pallas as pl
from jax.experimental.pallas import tpu as pltpu

EPS = 1e-5
_PAD_ROWS = 8  # guard rows at the front/back of the flat conv2 scratch


# ---------------------------------------------------------------------------
# Fused kernel
# ---------------------------------------------------------------------------
def _make_kernel(TH, Wo, Cin, Cm, Cexp, T, has_sc_conv, fuse_k, pack_out):
    R = TH * Wo               # rows of one output tile
    RP = (TH + 2) * Wo        # rows of the H-padded conv2 input
    PAD = _PAD_ROWS

    def kernel(*refs):
        if has_sc_conv:
            (xm_ref, xt_ref, xb_ref,
             s1_ref, t1_ref, w1_ref, s2_ref, t2_ref, w2_ref,
             s3_ref, t3_ref, w3_ref, bo_ref, ws_ref,
             out_ref, abuf_ref) = refs
        else:
            (xm_ref, xt_ref, xb_ref,
             s1_ref, t1_ref, w1_ref, s2_ref, t2_ref, w2_ref,
             s3_ref, t3_ref, w3_ref, bo_ref,
             out_ref, abuf_ref) = refs

        i = pl.program_id(1)

        # Hoisted loads: stage1 runs 3x per step (main + 2 halo rows).
        s1 = s1_ref[...]
        t1 = t1_ref[...]
        s2 = s2_ref[...]
        t2 = t2_ref[...]
        w1 = w1_ref[...]

        def stage1(x2d):
            """bn1 + relu1 + conv1(1x1) + bn2 + relu2 on a (rows, Cin) slab."""
            h = jnp.maximum(x2d * s1 + t1, 0.0)
            hb = h.astype(jnp.bfloat16)
            y1 = jnp.dot(hb, w1, preferred_element_type=jnp.float32)
            a = jnp.maximum(y1 * s2 + t2, 0.0)      # conv1 bias folded into t2
            return h, hb, a

        # --- main rows of this tile ---
        xm = xm_ref[...].reshape(R, Cin)
        h_main, hb_main, a_main = stage1(xm)

        # --- 1-row halos, recomputed; zeroed at the image border (pad rows) ---
        _, _, a_top = stage1(xt_ref[...].reshape(Wo, Cin))
        a_top = a_top * (i > 0).astype(jnp.float32)
        _, _, a_bot = stage1(xb_ref[...].reshape(Wo, Cin))
        a_bot = a_bot * (i < T - 1).astype(jnp.float32)

        # --- H-padded flat conv2 input: aligned contiguous writes, no zeroing ---
        abuf_ref[PAD:PAD + Wo, :] = a_top
        abuf_ref[PAD + Wo:PAD + (TH + 1) * Wo, :] = a_main
        abuf_ref[PAD + (TH + 1) * Wo:PAD + RP, :] = a_bot

        # Virtual W padding: taps that would wrap across image columns (or read
        # the unwritten guard rows) are select-masked to zero.
        col = jax.lax.broadcasted_iota(jnp.int32, (R, 1), 0) % Wo
        keep_l = col != 0
        keep_r = col != (Wo - 1)

        # --- conv2 (3x3, pad=1): contiguous flat slices + shifted-row reads ---
        acc = jnp.zeros((R, Cm), jnp.float32)
        for ky in range(3):
            base = PAD + ky * Wo
            pL = jnp.where(keep_l, abuf_ref[base - 1:base - 1 + R, :], 0.0)
            pC = abuf_ref[base:base + R, :]
            pR = jnp.where(keep_r, abuf_ref[base + 1:base + 1 + R, :], 0.0)
            pL = pL.astype(jnp.bfloat16)
            pC = pC.astype(jnp.bfloat16)
            pR = pR.astype(jnp.bfloat16)
            if fuse_k:
                # one MXU call per kernel row, K = 3*Cm (lane-aligned channels)
                patch = jnp.concatenate([pL, pC, pR], axis=1)
                acc = acc + jnp.dot(patch, w2_ref[ky],
                                    preferred_element_type=jnp.float32)
            else:
                acc = acc + jnp.dot(pL, w2_ref[ky, 0],
                                    preferred_element_type=jnp.float32)
                acc = acc + jnp.dot(pC, w2_ref[ky, 1],
                                    preferred_element_type=jnp.float32)
                acc = acc + jnp.dot(pR, w2_ref[ky, 2],
                                    preferred_element_type=jnp.float32)

        # --- bn3 + relu3 (+ eval-mode dropout = identity) + conv3(1x1) ---
        a3 = jnp.maximum(acc * s3_ref[...] + t3_ref[...], 0.0)   # conv2 bias in t3
        y3 = jnp.dot(a3.astype(jnp.bfloat16), w3_ref[...],
                     preferred_element_type=jnp.float32)

        # --- shortcut: strided 1x1 conv of h, or identity h (per module spec) ---
        if has_sc_conv:
            sc = jnp.dot(hb_main, ws_ref[...], preferred_element_type=jnp.float32)
        else:
            sc = h_main

        res = y3 + sc + bo_ref[...]               # conv3 (+shortcut) bias, one add
        if pack_out:
            out_ref[...] = res.reshape(1, TH, Wo * Cexp)   # lane-dense store
        else:
            out_ref[...] = res.reshape(1, TH, Wo, Cexp)

    return kernel


# ---------------------------------------------------------------------------
# Wrapper helpers
# ---------------------------------------------------------------------------
def _fold_bn(g, b, m, v):
    s = g / jnp.sqrt(v + EPS)
    return s.reshape(1, -1), (b - m * s).reshape(1, -1)


def _vmem_limit_bytes():
    # v5e/v6e: 128 MiB VMEM per core; v7x: 64 MiB.  Leave headroom.
    try:
        cap = pltpu.get_tpu_info().vmem_capacity_bytes
    except Exception:
        cap = 64 * 1024 * 1024
    return int(min(cap * 3 // 4, 100 * 1024 * 1024))


def _choose_tile_rows(N, Ho, Wo, Cin, Cm, Cexp, budget_bytes):
    """Largest divisor of Ho whose per-step working set fits the VMEM budget."""
    # bf16 weights (double-buffered by the pipeline) + small folded-BN vectors
    w_bytes = 2 * 2 * (Cin * Cm + 9 * Cm * Cm + Cm * Cexp + Cin * Cexp)
    w_bytes += 2 * 4 * 8 * max(Cin, Cm, Cexp)

    divs = [d for d in range(1, Ho + 1) if Ho % d == 0]
    if N < 2 and Ho > 1:
        # keep the second TensorCore fed on v7x when batch alone can't
        divs = [d for d in divs if Ho // d >= 2] or [1]

    best = 1
    for th in divs:
        rows = th * Wo
        io = 2 * 4 * ((rows + 2 * Wo) * Cin + rows * Cexp)   # dbl-buffered tiles
        live = 4 * rows * (Cin + 3 * Cm + 2 * Cexp)          # f32 temporaries
        scratch = 4 * ((th + 2) * Wo + 2 * _PAD_ROWS) * Cm   # conv2 buffer
        if w_bytes + io + live + scratch <= budget_bytes:
            best = max(best, th)
    return best


# ---------------------------------------------------------------------------
# Wrapper
# ---------------------------------------------------------------------------
def preact_bottleneck_forward(x_nchw, p, stride, tile_rows=None):
    x = jnp.transpose(x_nchw, (0, 2, 3, 1)).astype(jnp.float32)   # NCHW -> NHWC
    N, H, W, Cin = x.shape
    assert H % stride == 0 and W % stride == 0
    # 1x1-conv stride is spatial subsampling before any pointwise op; this
    # slice fuses with the NCHW->NHWC transpose copy above.
    x_s = x[:, ::stride, ::stride, :]
    Ho, Wo = x_s.shape[1], x_s.shape[2]
    Cm = p['w1'].shape[1]
    Cexp = p['w3'].shape[1]
    has_sc_conv = (stride != 1) or (Cin != Cexp)

    vmem_limit = _vmem_limit_bytes()
    if tile_rows is None:
        tile_rows = _choose_tile_rows(N, Ho, Wo, Cin, Cm, Cexp, vmem_limit // 2)
    assert Ho % tile_rows == 0
    TH = tile_rows
    T = Ho // TH

    # Fold BN running stats into per-channel scale/shift, fold conv1/conv2
    # biases into the following BN shift, and merge conv3/shortcut biases.
    s1, t1 = _fold_bn(p['bn1_g'], p['bn1_b'], p['bn1_m'], p['bn1_v'])
    s2, t2 = _fold_bn(p['bn2_g'], p['bn2_b'], p['bn2_m'], p['bn2_v'])
    s3, t3 = _fold_bn(p['bn3_g'], p['bn3_b'], p['bn3_m'], p['bn3_v'])
    t2 = t2 + p['b1'].reshape(1, -1) * s2
    t3 = t3 + p['b2'].reshape(1, -1) * s3
    b_out = p['b3'].reshape(1, -1)
    if has_sc_conv:
        b_out = b_out + p['bs'].reshape(1, -1)

    # MXU operands in bf16; epilogue stays f32.
    fuse_k = (Cm % 128 == 0)
    w1 = p['w1'].astype(jnp.bfloat16)
    w3 = p['w3'].astype(jnp.bfloat16)
    if fuse_k:
        w2 = p['w2'].reshape(3, 3 * Cm, Cm).astype(jnp.bfloat16)
    else:
        w2 = p['w2'].astype(jnp.bfloat16)                    # (3, 3, Cm, Cm)

    def full_spec(arr):
        nd = arr.ndim
        return pl.BlockSpec(arr.shape, lambda n, i, _nd=nd: (0,) * _nd)

    in_specs = [
        # main row tile + one-row top/bottom halos (clamped; masked in-kernel)
        pl.BlockSpec((1, TH, Wo, Cin), lambda n, i: (n, i, 0, 0)),
        pl.BlockSpec((1, 1, Wo, Cin),
                     lambda n, i: (n, jnp.maximum(i * TH - 1, 0), 0, 0)),
        pl.BlockSpec((1, 1, Wo, Cin),
                     lambda n, i: (n, jnp.minimum(i * TH + TH, Ho - 1), 0, 0)),
        full_spec(s1), full_spec(t1), full_spec(w1),
        full_spec(s2), full_spec(t2), full_spec(w2),
        full_spec(s3), full_spec(t3), full_spec(w3), full_spec(b_out),
    ]
    inputs = [x_s, x_s, x_s, s1, t1, w1, s2, t2, w2, s3, t3, w3, b_out]
    if has_sc_conv:
        ws = p['ws'].astype(jnp.bfloat16)
        in_specs.append(full_spec(ws))
        inputs.append(ws)

    scratch = [pltpu.VMEM(((TH + 2) * Wo + 2 * _PAD_ROWS, Cm), jnp.float32)]
    cparams = pltpu.CompilerParams(
        dimension_semantics=("parallel", "parallel"),
        vmem_limit_bytes=vmem_limit)

    # Try the lane-dense (packed) output first for small Cexp; fall back to the
    # plain 4-D store if the in-kernel repack does not lower on this toolchain.
    want_pack = (Cexp % 128 != 0) and (TH % 8 == 0 or TH == Ho)
    attempts = [True, False] if want_pack else [False]

    out = None
    last_err = None
    for pack_out in attempts:
        if pack_out:
            out_shape = jax.ShapeDtypeStruct((N, Ho, Wo * Cexp), jnp.float32)
            out_spec = pl.BlockSpec((1, TH, Wo * Cexp), lambda n, i: (n, i, 0))
        else:
            out_shape = jax.ShapeDtypeStruct((N, Ho, Wo, Cexp), jnp.float32)
            out_spec = pl.BlockSpec((1, TH, Wo, Cexp), lambda n, i: (n, i, 0, 0))

        kernel = _make_kernel(TH, Wo, Cin, Cm, Cexp, T, has_sc_conv,
                              fuse_k, pack_out)
        try:
            out = pl.pallas_call(
                kernel,
                out_shape=out_shape,
                grid=(N, T),
                in_specs=in_specs,
                out_specs=out_spec,
                scratch_shapes=scratch,
                compiler_params=cparams,
            )(*inputs)
            out = jax.block_until_ready(out)
            if pack_out:
                out = out.reshape(N, Ho, Wo, Cexp)
            break
        except Exception as e:                     # lowering fallback only
            last_err = e
            out = None
            continue
    if out is None:
        raise last_err

    return jnp.transpose(out, (0, 3, 1, 2))        # NHWC -> NCHW


# ---------------------------------------------------------------------------
# Pure-JAX reference (for correctness check)
# ---------------------------------------------------------------------------
def ref_forward(x_nchw, p, stride):
    x = jnp.transpose(x_nchw, (0, 2, 3, 1)).astype(jnp.float32)
    Cin = x.shape[-1]
    Cexp = p['w3'].shape[1]

    def bn(z, g, b, m, v):
        return (z - m) / jnp.sqrt(v + EPS) * g + b

    def conv(z, w, b, s, pad):
        y = jax.lax.conv_general_dilated(
            z, w, (s, s), pad, dimension_numbers=('NHWC', 'HWIO', 'NHWC'))
        return y + b.reshape(1, 1, 1, -1)

    h = jax.nn.relu(bn(x, p['bn1_g'], p['bn1_b'], p['bn1_m'], p['bn1_v']))
    out = conv(h, p['w1'][None, None], p['b1'], stride, 'VALID')
    out = conv(jax.nn.relu(bn(out, p['bn2_g'], p['bn2_b'], p['bn2_m'], p['bn2_v'])),
               p['w2'], p['b2'], 1, ((1, 1), (1, 1)))
    out = conv(jax.nn.relu(bn(out, p['bn3_g'], p['bn3_b'], p['bn3_m'], p['bn3_v'])),
               p['w3'][None, None], p['b3'], 1, 'VALID')
    if stride != 1 or Cin != Cexp:
        sc = conv(h, p['ws'][None, None], p['bs'], stride, 'VALID')
    else:
        sc = h
    return jnp.transpose(out + sc, (0, 3, 1, 2))


# ---------------------------------------------------------------------------
# Deterministic parameter init + driver
# ---------------------------------------------------------------------------
def make_params(key, in_ch, out_ch, expansion=4):
    cexp = expansion * out_ch
    ks = jax.random.split(key, 20)
    i = iter(range(20))

    def nrm(k, shape, fan_in):
        return (jax.random.normal(k, shape, jnp.float32) / np.sqrt(fan_in)).astype(jnp.float32)

    p = {}
    for name, c in (('bn1', in_ch), ('bn2', out_ch), ('bn3', out_ch)):
        p[f'{name}_g'] = 1.0 + 0.1 * jax.random.normal(ks[next(i)], (c,), jnp.float32)
        p[f'{name}_b'] = 0.1 * jax.random.normal(ks[next(i)], (c,), jnp.float32)
        p[f'{name}_m'] = 0.1 * jax.random.normal(ks[next(i)], (c,), jnp.float32)
        p[f'{name}_v'] = jax.random.uniform(ks[next(i)], (c,), jnp.float32, 0.5, 1.5)
    # Conv weights stored channels-last: 1x1 -> (Cin, Cout); 3x3 -> (3,3,Cin,Cout)
    p['w1'] = nrm(ks[next(i)], (in_ch, out_ch), in_ch)
    p['b1'] = 0.1 * jax.random.normal(ks[next(i)], (out_ch,), jnp.float32)
    p['w2'] = nrm(ks[next(i)], (3, 3, out_ch, out_ch), 9 * out_ch)
    p['b2'] = 0.1 * jax.random.normal(ks[next(i)], (out_ch,), jnp.float32)
    p['w3'] = nrm(ks[next(i)], (out_ch, cexp), out_ch)
    p['b3'] = 0.1 * jax.random.normal(ks[next(i)], (cexp,), jnp.float32)
    p['ws'] = nrm(ks[next(i)], (in_ch, cexp), in_ch)
    p['bs'] = 0.1 * jax.random.normal(ks[next(i)], (cexp,), jnp.float32)
    return p


if __name__ == "__main__":
    key = jax.random.PRNGKey(0)
    k1, k2, k3, k4 = jax.random.split(key, 4)

    # --- Config A: stride=2, 1x1-conv shortcut (downsampling block) ---
    N, IN_CH, OUT_CH, H, W, STRIDE = 2, 16, 8, 16, 16, 2
    x = jax.random.normal(k1, (N, IN_CH, H, W), jnp.float32)       # NCHW
    params = make_params(k2, IN_CH, OUT_CH)
    out = jax.block_until_ready(preact_bottleneck_forward(x, params, STRIDE))
    ref = jax.block_until_ready(ref_forward(x, params, STRIDE))
    np.testing.assert_allclose(np.asarray(out), np.asarray(ref), rtol=3e-2, atol=3e-2)
    assert out.shape == (N, 4 * OUT_CH, H // STRIDE, W // STRIDE)

    # --- Config B: stride=1, identity shortcut, 2 row tiles (halo path) ---
    N2, IN2, OUT2, H2, W2 = 2, 32, 8, 16, 16
    x2 = jax.random.normal(k3, (N2, IN2, H2, W2), jnp.float32)
    params2 = make_params(k4, IN2, OUT2)
    out2 = jax.block_until_ready(
        preact_bottleneck_forward(x2, params2, 1, tile_rows=8))
    ref2 = jax.block_until_ready(ref_forward(x2, params2, 1))
    np.testing.assert_allclose(np.asarray(out2), np.asarray(ref2), rtol=3e-2, atol=3e-2)
    assert out2.shape == (N2, 4 * OUT2, H2, W2)

    print("KERNEL_OK")
</pallas_src>

<mosaic_0001>
module attributes {stable_mosaic.version = 11 : i64} {
  func.func @kernel(%arg0: i32, %arg1: i32, %arg2: memref<1x8x8x16xf32, #tpu.memory_space<vmem>>, %arg3: memref<1x1x8x16xf32, #tpu.memory_space<vmem>>, %arg4: memref<1x1x8x16xf32, #tpu.memory_space<vmem>>, %arg5: memref<1x16xf32, #tpu.memory_space<vmem>>, %arg6: memref<1x16xf32, #tpu.memory_space<vmem>>, %arg7: memref<16x8xbf16, #tpu.memory_space<vmem>>, %arg8: memref<1x8xf32, #tpu.memory_space<vmem>>, %arg9: memref<1x8xf32, #tpu.memory_space<vmem>>, %arg10: memref<3x3x8x8xbf16, #tpu.memory_space<vmem>>, %arg11: memref<1x8xf32, #tpu.memory_space<vmem>>, %arg12: memref<1x8xf32, #tpu.memory_space<vmem>>, %arg13: memref<8x32xbf16, #tpu.memory_space<vmem>>, %arg14: memref<1x32xf32, #tpu.memory_space<vmem>>, %arg15: memref<16x32xbf16, #tpu.memory_space<vmem>>, %arg16: memref<1x8x256xf32, #tpu.memory_space<vmem>>, %arg17: memref<96x8xf32, #tpu.memory_space<vmem>>) attributes {dimension_semantics = [#tpu.dimension_semantics<parallel>, #tpu.dimension_semantics<parallel>], iteration_bounds = array<i64: 2, 1>, scalar_prefetch = 0 : i64, scratch_operands = 1 : i64, tpu.core_type = #tpu.core_type<tc>, window_params = [{transform_indices = @transform_0, window_bounds = array<i64: 1, 8, 8, 16>}, {transform_indices = @transform_1, window_bounds = array<i64: 1, 1, 8, 16>}, {transform_indices = @transform_2, window_bounds = array<i64: 1, 1, 8, 16>}, {pipeline_mode = #tpu.pipeline_mode<synchronous>, transform_indices = @transform_3, window_bounds = array<i64: 1, 16>}, {pipeline_mode = #tpu.pipeline_mode<synchronous>, transform_indices = @transform_4, window_bounds = array<i64: 1, 16>}, {pipeline_mode = #tpu.pipeline_mode<synchronous>, transform_indices = @transform_5, window_bounds = array<i64: 16, 8>}, {pipeline_mode = #tpu.pipeline_mode<synchronous>, transform_indices = @transform_6, window_bounds = array<i64: 1, 8>}, {pipeline_mode = #tpu.pipeline_mode<synchronous>, transform_indices = @transform_7, window_bounds = array<i64: 1, 8>}, {pipeline_mode = #tpu.pipeline_mode<synchronous>, transform_indices = @transform_8, window_bounds = array<i64: 3, 3, 8, 8>}, {pipeline_mode = #tpu.pipeline_mode<synchronous>, transform_indices = @transform_9, window_bounds = array<i64: 1, 8>}, {pipeline_mode = #tpu.pipeline_mode<synchronous>, transform_indices = @transform_10, window_bounds = array<i64: 1, 8>}, {pipeline_mode = #tpu.pipeline_mode<synchronous>, transform_indices = @transform_11, window_bounds = array<i64: 8, 32>}, {pipeline_mode = #tpu.pipeline_mode<synchronous>, transform_indices = @transform_12, window_bounds = array<i64: 1, 32>}, {pipeline_mode = #tpu.pipeline_mode<synchronous>, transform_indices = @transform_13, window_bounds = array<i64: 16, 32>}, {transform_indices = @transform_14, window_bounds = array<i64: 1, 8, 256>}]} {
    %c0 = arith.constant 0 : index
    %c0_0 = arith.constant 0 : index
    %0 = vector.load %arg5[%c0, %c0_0] : memref<1x16xf32, #tpu.memory_space<vmem>>, vector<1x16xf32>
    %c0_1 = arith.constant 0 : index
    %c0_2 = arith.constant 0 : index
    %1 = vector.load %arg6[%c0_1, %c0_2] : memref<1x16xf32, #tpu.memory_space<vmem>>, vector<1x16xf32>
    %c0_3 = arith.constant 0 : index
    %c0_4 = arith.constant 0 : index
    %2 = vector.load %arg8[%c0_3, %c0_4] : memref<1x8xf32, #tpu.memory_space<vmem>>, vector<1x8xf32>
    %c0_5 = arith.constant 0 : index
    %c0_6 = arith.constant 0 : index
    %3 = vector.load %arg9[%c0_5, %c0_6] : memref<1x8xf32, #tpu.memory_space<vmem>>, vector<1x8xf32>
    %c0_7 = arith.constant 0 : index
    %c0_8 = arith.constant 0 : index
    %4 = vector.load %arg7[%c0_7, %c0_8] : memref<16x8xbf16, #tpu.memory_space<vmem>>, vector<16x8xbf16>
    %c0_9 = arith.constant 0 : index
    %c0_10 = arith.constant 0 : index
    %c0_11 = arith.constant 0 : index
    %c0_12 = arith.constant 0 : index
    %5 = vector.load %arg2[%c0_9, %c0_10, %c0_11, %c0_12] : memref<1x8x8x16xf32, #tpu.memory_space<vmem>>, vector<1x8x8x16xf32>
    %6 = vector.shape_cast %5 : vector<1x8x8x16xf32> to vector<64x16xf32>
    %7 = vector.broadcast %0 : vector<1x16xf32> to vector<64x16xf32>
    %8 = arith.mulf %6, %7 : vector<64x16xf32>
    %9 = vector.broadcast %1 : vector<1x16xf32> to vector<64x16xf32>
    %10 = arith.addf %8, %9 : vector<64x16xf32>
    %cst = arith.constant 0.000000e+00 : f32
    %11 = vector.broadcast %cst : f32 to vector<64x16xf32>
    %12 = arith.maximumf %10, %11 : vector<64x16xf32>
    %13 = arith.truncf %12 : vector<64x16xf32> to vector<64x16xbf16>
    %cst_13 = arith.constant dense<0.000000e+00> : vector<64x8xf32>
    %14 = tpu.matmul %13, %4, %cst_13 {dimension_numbers = #tpu.dot_dimension_numbers<[1], [0], [0], [1], [0, 0, 1, 1], [], []>} : vector<64x16xbf16>, vector<16x8xbf16>, vector<64x8xf32> -> vector<64x8xf32>
    %15 = vector.broadcast %2 : vector<1x8xf32> to vector<64x8xf32>
    %16 = arith.mulf %14, %15 : vector<64x8xf32>
    %17 = vector.broadcast %3 : vector<1x8xf32> to vector<64x8xf32>
    %18 = arith.addf %16, %17 : vector<64x8xf32>
    %cst_14 = arith.constant 0.000000e+00 : f32
    %19 = vector.broadcast %cst_14 : f32 to vector<64x8xf32>
    %20 = arith.maximumf %18, %19 : vector<64x8xf32>
    %c0_15 = arith.constant 0 : index
    %c0_16 = arith.constant 0 : index
    %c0_17 = arith.constant 0 : index
    %c0_18 = arith.constant 0 : index
    %21 = vector.load %arg3[%c0_15, %c0_16, %c0_17, %c0_18] : memref<1x1x8x16xf32, #tpu.memory_space<vmem>>, vector<1x1x8x16xf32>
    %22 = vector.shape_cast %21 : vector<1x1x8x16xf32> to vector<8x16xf32>
    %23 = vector.broadcast %0 : vector<1x16xf32> to vector<8x16xf32>
    %24 = arith.mulf %22, %23 : vector<8x16xf32>
    %25 = vector.broadcast %1 : vector<1x16xf32> to vector<8x16xf32>
    %26 = arith.addf %24, %25 : vector<8x16xf32>
    %cst_19 = arith.constant 0.000000e+00 : f32
    %27 = vector.broadcast %cst_19 : f32 to vector<8x16xf32>
    %28 = arith.maximumf %26, %27 : vector<8x16xf32>
    %29 = arith.truncf %28 : vector<8x16xf32> to vector<8x16xbf16>
    %cst_20 = arith.constant dense<0.000000e+00> : vector<8x8xf32>
    %30 = tpu.matmul %29, %4, %cst_20 {dimension_numbers = #tpu.dot_dimension_numbers<[1], [0], [0], [1], [0, 0, 1, 1], [], []>} : vector<8x16xbf16>, vector<16x8xbf16>, vector<8x8xf32> -> vector<8x8xf32>
    %31 = vector.broadcast %2 : vector<1x8xf32> to vector<8x8xf32>
    %32 = arith.mulf %30, %31 : vector<8x8xf32>
    %33 = vector.broadcast %3 : vector<1x8xf32> to vector<8x8xf32>
    %34 = arith.addf %32, %33 : vector<8x8xf32>
    %cst_21 = arith.constant 0.000000e+00 : f32
    %35 = vector.broadcast %cst_21 : f32 to vector<8x8xf32>
    %36 = arith.maximumf %34, %35 : vector<8x8xf32>
    %c0_i32 = arith.constant 0 : i32
    %37 = arith.cmpi sgt, %arg1, %c0_i32 : i32
    %38 = arith.extui %37 : i1 to i32
    %39 = arith.sitofp %38 : i32 to f32
    %40 = vector.broadcast %39 : f32 to vector<8x8xf32>
    %41 = arith.mulf %36, %40 : vector<8x8xf32>
    %c0_22 = arith.constant 0 : index
    %c0_23 = arith.constant 0 : index
    %c0_24 = arith.constant 0 : index
    %c0_25 = arith.constant 0 : index
    %42 = vector.load %arg4[%c0_22, %c0_23, %c0_24, %c0_25] : memref<1x1x8x16xf32, #tpu.memory_space<vmem>>, vector<1x1x8x16xf32>
    %43 = vector.shape_cast %42 : vector<1x1x8x16xf32> to vector<8x16xf32>
    %44 = vector.broadcast %0 : vector<1x16xf32> to vector<8x16xf32>
    %45 = arith.mulf %43, %44 : vector<8x16xf32>
    %46 = vector.broadcast %1 : vector<1x16xf32> to vector<8x16xf32>
    %47 = arith.addf %45, %46 : vector<8x16xf32>
    %cst_26 = arith.constant 0.000000e+00 : f32
    %48 = vector.broadcast %cst_26 : f32 to vector<8x16xf32>
    %49 = arith.maximumf %47, %48 : vector<8x16xf32>
    %50 = arith.truncf %49 : vector<8x16xf32> to vector<8x16xbf16>
    %cst_27 = arith.constant dense<0.000000e+00> : vector<8x8xf32>
    %51 = tpu.matmul %50, %4, %cst_27 {dimension_numbers = #tpu.dot_dimension_numbers<[1], [0], [0], [1], [0, 0, 1, 1], [], []>} : vector<8x16xbf16>, vector<16x8xbf16>, vector<8x8xf32> -> vector<8x8xf32>
    %52 = vector.broadcast %2 : vector<1x8xf32> to vector<8x8xf32>
    %53 = arith.mulf %51, %52 : vector<8x8xf32>
    %54 = vector.broadcast %3 : vector<1x8xf32> to vector<8x8xf32>
    %55 = arith.addf %53, %54 : vector<8x8xf32>
    %cst_28 = arith.constant 0.000000e+00 : f32
    %56 = vector.broadcast %cst_28 : f32 to vector<8x8xf32>
    %57 = arith.maximumf %55, %56 : vector<8x8xf32>
    %c0_i32_29 = arith.constant 0 : i32
    %58 = arith.cmpi slt, %arg1, %c0_i32_29 : i32
    %59 = arith.extui %58 : i1 to i32
    %60 = arith.sitofp %59 : i32 to f32
    %61 = vector.broadcast %60 : f32 to vector<8x8xf32>
    %62 = arith.mulf %57, %61 : vector<8x8xf32>
    %c8 = arith.constant 8 : index
    %c0_30 = arith.constant 0 : index
    %63 = vector.load %arg17[%c8, %c0_30] : memref<96x8xf32, #tpu.memory_space<vmem>>, vector<8x8xf32>
    tpu.vector_store %arg17[%c8, %c0_30], %41 {strides = array<i32>} : memref<96x8xf32, #tpu.memory_space<vmem>>, vector<8x8xf32>,
    %c16 = arith.constant 16 : index
    %c0_31 = arith.constant 0 : index
    %64 = vector.load %arg17[%c16, %c0_31] : memref<96x8xf32, #tpu.memory_space<vmem>>, vector<64x8xf32>
    tpu.vector_store %arg17[%c16, %c0_31], %20 {strides = array<i32>} : memref<96x8xf32, #tpu.memory_space<vmem>>, vector<64x8xf32>,
    %c80 = arith.constant 80 : index
    %c0_32 = arith.constant 0 : index
    %65 = vector.load %arg17[%c80, %c0_32] : memref<96x8xf32, #tpu.memory_space<vmem>>, vector<8x8xf32>
    tpu.vector_store %arg17[%c80, %c0_32], %62 {strides = array<i32>} : memref<96x8xf32, #tpu.memory_space<vmem>>, vector<8x8xf32>,
    %66 = tpu.iota {dimensions = array<i32: 0>} : vector<64x1xi32>
    %c8_i32 = arith.constant 8 : i32
    %c0_i32_33 = arith.constant 0 : i32
    %67 = arith.cmpi eq, %c8_i32, %c0_i32_33 : i32
    %c1_i32 = arith.constant 1 : i32
    %68 = arith.select %67, %c1_i32, %c8_i32 : i32
    %69 = vector.broadcast %68 : i32 to vector<64x1xi32>
    %70 = arith.remsi %66, %69 : vector<64x1xi32>
    %c0_i32_34 = arith.constant 0 : i32
    %71 = vector.broadcast %c0_i32_34 : i32 to vector<64x1xi32>
    %72 = arith.cmpi ne, %70, %71 : vector<64x1xi32>
    %c0_i32_35 = arith.constant 0 : i32
    %73 = vector.broadcast %c0_i32_35 : i32 to vector<64x1xi32>
    %74 = arith.cmpi slt, %70, %73 : vector<64x1xi32>
    %c0_i32_36 = arith.constant 0 : i32
    %75 = arith.cmpi slt, %68, %c0_i32_36 : i32
    %76 = vector.broadcast %75 : i1 to vector<64x1xi1>
    %77 = vector.broadcast %76 : vector<64x1xi1> to vector<64x1xi1>
    %78 = arith.xori %74, %77 : vector<64x1xi1>
    %79 = arith.andi %78, %72 : vector<64x1xi1>
    %80 = vector.broadcast %68 : i32 to vector<64x1xi32>
    %81 = arith.addi %70, %80 : vector<64x1xi32>
    %82 = arith.select %79, %81, %70 : vector<64x1xi1>, vector<64x1xi32>
    %c0_i32_37 = arith.constant 0 : i32
    %83 = vector.broadcast %c0_i32_37 : i32 to vector<64x1xi32>
    %84 = arith.cmpi ne, %82, %83 : vector<64x1xi32>
    %c7_i32 = arith.constant 7 : i32
    %85 = vector.broadcast %c7_i32 : i32 to vector<64x1xi32>
    %86 = arith.cmpi ne, %82, %85 : vector<64x1xi32>
    %cst_38 = arith.constant 0.000000e+00 : f32
    %87 = vector.broadcast %cst_38 : f32 to vector<64x8xf32>
    %c7 = arith.constant 7 : index
    %c0_39 = arith.constant 0 : index
    %88 = vector.load %arg17[%c7, %c0_39] : memref<96x8xf32, #tpu.memory_space<vmem>>, vector<64x8xf32>
    %cst_40 = arith.constant 0.000000e+00 : f32
    %89 = vector.shape_cast %84 : vector<64x1xi1> to vector<64x1xi1>
    %90 = vector.broadcast %89 : vector<64x1xi1> to vector<64x8xi1>
    %91 = vector.broadcast %cst_40 : f32 to vector<64x8xf32>
    %92 = arith.select %90, %88, %91 : vector<64x8xi1>, vector<64x8xf32>
    %c8_41 = arith.constant 8 : index
    %c0_42 = arith.constant 0 : index
    %93 = vector.load %arg17[%c8_41, %c0_42] : memref<96x8xf32, #tpu.memory_space<vmem>>, vector<64x8xf32>
    %c9 = arith.constant 9 : index
    %c0_43 = arith.constant 0 : index
    %94 = vector.load %arg17[%c9, %c0_43] : memref<96x8xf32, #tpu.memory_space<vmem>>, vector<64x8xf32>
    %cst_44 = arith.constant 0.000000e+00 : f32
    %95 = vector.shape_cast %86 : vector<64x1xi1> to vector<64x1xi1>
    %96 = vector.broadcast %95 : vector<64x1xi1> to vector<64x8xi1>
    %97 = vector.broadcast %cst_44 : f32 to vector<64x8xf32>
    %98 = arith.select %96, %94, %97 : vector<64x8xi1>, vector<64x8xf32>
    %99 = arith.truncf %92 : vector<64x8xf32> to vector<64x8xbf16>
    %100 = arith.truncf %93 : vector<64x8xf32> to vector<64x8xbf16>
    %101 = arith.truncf %98 : vector<64x8xf32> to vector<64x8xbf16>
    %c0_45 = arith.constant 0 : index
    %c0_46 = arith.constant 0 : index
    %c0_47 = arith.constant 0 : index
    %c0_48 = arith.constant 0 : index
    %102 = vector.load %arg10[%c0_45, %c0_46, %c0_47, %c0_48] : memref<3x3x8x8xbf16, #tpu.memory_space<vmem>>, vector<1x1x8x8xbf16>
    %103 = vector.shape_cast %102 : vector<1x1x8x8xbf16> to vector<8x8xbf16>
    %cst_49 = arith.constant dense<0.000000e+00> : vector<64x8xf32>
    %104 = tpu.matmul %99, %103, %cst_49 {dimension_numbers = #tpu.dot_dimension_numbers<[1], [0], [0], [1], [0, 0, 1, 1], [], []>} : vector<64x8xbf16>, vector<8x8xbf16>, vector<64x8xf32> -> vector<64x8xf32>
    %105 = arith.addf %87, %104 : vector<64x8xf32>
    %c0_50 = arith.constant 0 : index
    %c1 = arith.constant 1 : index
    %c0_51 = arith.constant 0 : index
    %c0_52 = arith.constant 0 : index
    %106 = vector.load %arg10[%c0_50, %c1, %c0_51, %c0_52] : memref<3x3x8x8xbf16, #tpu.memory_space<vmem>>, vector<1x1x8x8xbf16>
    %107 = vector.shape_cast %106 : vector<1x1x8x8xbf16> to vector<8x8xbf16>
    %cst_53 = arith.constant dense<0.000000e+00> : vector<64x8xf32>
    %108 = tpu.matmul %100, %107, %cst_53 {dimension_numbers = #tpu.dot_dimension_numbers<[1], [0], [0], [1], [0, 0, 1, 1], [], []>} : vector<64x8xbf16>, vector<8x8xbf16>, vector<64x8xf32> -> vector<64x8xf32>
    %109 = arith.addf %105, %108 : vector<64x8xf32>
    %c0_54 = arith.constant 0 : index
    %c2 = arith.constant 2 : index
    %c0_55 = arith.constant 0 : index
    %c0_56 = arith.constant 0 : index
    %110 = vector.load %arg10[%c0_54, %c2, %c0_55, %c0_56] : memref<3x3x8x8xbf16, #tpu.memory_space<vmem>>, vector<1x1x8x8xbf16>
    %111 = vector.shape_cast %110 : vector<1x1x8x8xbf16> to vector<8x8xbf16>
    %cst_57 = arith.constant dense<0.000000e+00> : vector<64x8xf32>
    %112 = tpu.matmul %101, %111, %cst_57 {dimension_numbers = #tpu.dot_dimension_numbers<[1], [0], [0], [1], [0, 0, 1, 1], [], []>} : vector<64x8xbf16>, vector<8x8xbf16>, vector<64x8xf32> -> vector<64x8xf32>
    %113 = arith.addf %109, %112 : vector<64x8xf32>
    %c15 = arith.constant 15 : index
    %c0_58 = arith.constant 0 : index
    %114 = vector.load %arg17[%c15, %c0_58] : memref<96x8xf32, #tpu.memory_space<vmem>>, vector<64x8xf32>
    %cst_59 = arith.constant 0.000000e+00 : f32
    %115 = vector.shape_cast %84 : vector<64x1xi1> to vector<64x1xi1>
    %116 = vector.broadcast %115 : vector<64x1xi1> to vector<64x8xi1>
    %117 = vector.broadcast %cst_59 : f32 to vector<64x8xf32>
    %118 = arith.select %116, %114, %117 : vector<64x8xi1>, vector<64x8xf32>
    %c16_60 = arith.constant 16 : index
    %c0_61 = arith.constant 0 : index
    %119 = vector.load %arg17[%c16_60, %c0_61] : memref<96x8xf32, #tpu.memory_space<vmem>>, vector<64x8xf32>
    %c17 = arith.constant 17 : index
    %c0_62 = arith.constant 0 : index
    %120 = vector.load %arg17[%c17, %c0_62] : memref<96x8xf32, #tpu.memory_space<vmem>>, vector<64x8xf32>
    %cst_63 = arith.constant 0.000000e+00 : f32
    %121 = vector.shape_cast %86 : vector<64x1xi1> to vector<64x1xi1>
    %122 = vector.broadcast %121 : vector<64x1xi1> to vector<64x8xi1>
    %123 = vector.broadcast %cst_63 : f32 to vector<64x8xf32>
    %124 = arith.select %122, %120, %123 : vector<64x8xi1>, vector<64x8xf32>
    %125 = arith.truncf %118 : vector<64x8xf32> to vector<64x8xbf16>
    %126 = arith.truncf %119 : vector<64x8xf32> to vector<64x8xbf16>
    %127 = arith.truncf %124 : vector<64x8xf32> to vector<64x8xbf16>
    %c1_64 = arith.constant 1 : index
    %c0_65 = arith.constant 0 : index
    %c0_66 = arith.constant 0 : index
    %c0_67 = arith.constant 0 : index
    %128 = vector.load %arg10[%c1_64, %c0_65, %c0_66, %c0_67] : memref<3x3x8x8xbf16, #tpu.memory_space<vmem>>, vector<1x1x8x8xbf16>
    %129 = vector.shape_cast %128 : vector<1x1x8x8xbf16> to vector<8x8xbf16>
    %cst_68 = arith.constant dense<0.000000e+00> : vector<64x8xf32>
    %130 = tpu.matmul %125, %129, %cst_68 {dimension_numbers = #tpu.dot_dimension_numbers<[1], [0], [0], [1], [0, 0, 1, 1], [], []>} : vector<64x8xbf16>, vector<8x8xbf16>, vector<64x8xf32> -> vector<64x8xf32>
    %131 = arith.addf %113, %130 : vector<64x8xf32>
    %c1_69 = arith.constant 1 : index
    %c1_70 = arith.constant 1 : index
    %c0_71 = arith.constant 0 : index
    %c0_72 = arith.constant 0 : index
    %132 = vector.load %arg10[%c1_69, %c1_70, %c0_71, %c0_72] : memref<3x3x8x8xbf16, #tpu.memory_space<vmem>>, vector<1x1x8x8xbf16>
    %133 = vector.shape_cast %132 : vector<1x1x8x8xbf16> to vector<8x8xbf16>
    %cst_73 = arith.constant dense<0.000000e+00> : vector<64x8xf32>
    %134 = tpu.matmul %126, %133, %cst_73 {dimension_numbers = #tpu.dot_dimension_numbers<[1], [0], [0], [1], [0, 0, 1, 1], [], []>} : vector<64x8xbf16>, vector<8x8xbf16>, vector<64x8xf32> -> vector<64x8xf32>
    %135 = arith.addf %131, %134 : vector<64x8xf32>
    %c1_74 = arith.constant 1 : index
    %c2_75 = arith.constant 2 : index
    %c0_76 = arith.constant 0 : index
    %c0_77 = arith.constant 0 : index
    %136 = vector.load %arg10[%c1_74, %c2_75, %c0_76, %c0_77] : memref<3x3x8x8xbf16, #tpu.memory_space<vmem>>, vector<1x1x8x8xbf16>
    %137 = vector.shape_cast %136 : vector<1x1x8x8xbf16> to vector<8x8xbf16>
    %cst_78 = arith.constant dense<0.000000e+00> : vector<64x8xf32>
    %138 = tpu.matmul %127, %137, %cst_78 {dimension_numbers = #tpu.dot_dimension_numbers<[1], [0], [0], [1], [0, 0, 1, 1], [], []>} : vector<64x8xbf16>, vector<8x8xbf16>, vector<64x8xf32> -> vector<64x8xf32>
    %139 = arith.addf %135, %138 : vector<64x8xf32>
    %c23 = arith.constant 23 : index
    %c0_79 = arith.constant 0 : index
    %140 = vector.load %arg17[%c23, %c0_79] : memref<96x8xf32, #tpu.memory_space<vmem>>, vector<64x8xf32>
    %cst_80 = arith.constant 0.000000e+00 : f32
    %141 = vector.shape_cast %84 : vector<64x1xi1> to vector<64x1xi1>
    %142 = vector.broadcast %141 : vector<64x1xi1> to vector<64x8xi1>
    %143 = vector.broadcast %cst_80 : f32 to vector<64x8xf32>
    %144 = arith.select %142, %140, %143 : vector<64x8xi1>, vector<64x8xf32>
    %c24 = arith.constant 24 : index
    %c0_81 = arith.constant 0 : index
    %145 = vector.load %arg17[%c24, %c0_81] : memref<96x8xf32, #tpu.memory_space<vmem>>, vector<64x8xf32>
    %c25 = arith.constant 25 : index
    %c0_82 = arith.constant 0 : index
    %146 = vector.load %arg17[%c25, %c0_82] : memref<96x8xf32, #tpu.memory_space<vmem>>, vector<64x8xf32>
    %cst_83 = arith.constant 0.000000e+00 : f32
    %147 = vector.shape_cast %86 : vector<64x1xi1> to vector<64x1xi1>
    %148 = vector.broadcast %147 : vector<64x1xi1> to vector<64x8xi1>
    %149 = vector.broadcast %cst_83 : f32 to vector<64x8xf32>
    %150 = arith.select %148, %146, %149 : vector<64x8xi1>, vector<64x8xf32>
    %151 = arith.truncf %144 : vector<64x8xf32> to vector<64x8xbf16>
    %152 = arith.truncf %145 : vector<64x8xf32> to vector<64x8xbf16>
    %153 = arith.truncf %150 : vector<64x8xf32> to vector<64x8xbf16>
    %c2_84 = arith.constant 2 : index
    %c0_85 = arith.constant 0 : index
    %c0_86 = arith.constant 0 : index
    %c0_87 = arith.constant 0 : index
    %154 = vector.load %arg10[%c2_84, %c0_85, %c0_86, %c0_87] : memref<3x3x8x8xbf16, #tpu.memory_space<vmem>>, vector<1x1x8x8xbf16>
    %155 = vector.shape_cast %154 : vector<1x1x8x8xbf16> to vector<8x8xbf16>
    %cst_88 = arith.constant dense<0.000000e+00> : vector<64x8xf32>
    %156 = tpu.matmul %151, %155, %cst_88 {dimension_numbers = #tpu.dot_dimension_numbers<[1], [0], [0], [1], [0, 0, 1, 1], [], []>} : vector<64x8xbf16>, vector<8x8xbf16>, vector<64x8xf32> -> vector<64x8xf32>
    %157 = arith.addf %139, %156 : vector<64x8xf32>
    %c2_89 = arith.constant 2 : index
    %c1_90 = arith.constant 1 : index
    %c0_91 = arith.constant 0 : index
    %c0_92 = arith.constant 0 : index
    %158 = vector.load %arg10[%c2_89, %c1_90, %c0_91, %c0_92] : memref<3x3x8x8xbf16, #tpu.memory_space<vmem>>, vector<1x1x8x8xbf16>
    %159 = vector.shape_cast %158 : vector<1x1x8x8xbf16> to vector<8x8xbf16>
    %cst_93 = arith.constant dense<0.000000e+00> : vector<64x8xf32>
    %160 = tpu.matmul %152, %159, %cst_93 {dimension_numbers = #tpu.dot_dimension_numbers<[1], [0], [0], [1], [0, 0, 1, 1], [], []>} : vector<64x8xbf16>, vector<8x8xbf16>, vector<64x8xf32> -> vector<64x8xf32>
    %161 = arith.addf %157, %160 : vector<64x8xf32>
    %c2_94 = arith.constant 2 : index
    %c2_95 = arith.constant 2 : index
    %c0_96 = arith.constant 0 : index
    %c0_97 = arith.constant 0 : index
    %162 = vector.load %arg10[%c2_94, %c2_95, %c0_96, %c0_97] : memref<3x3x8x8xbf16, #tpu.memory_space<vmem>>, vector<1x1x8x8xbf16>
    %163 = vector.shape_cast %162 : vector<1x1x8x8xbf16> to vector<8x8xbf16>
    %cst_98 = arith.constant dense<0.000000e+00> : vector<64x8xf32>
    %164 = tpu.matmul %153, %163, %cst_98 {dimension_numbers = #tpu.dot_dimension_numbers<[1], [0], [0], [1], [0, 0, 1, 1], [], []>} : vector<64x8xbf16>, vector<8x8xbf16>, vector<64x8xf32> -> vector<64x8xf32>
    %165 = arith.addf %161, %164 : vector<64x8xf32>
    %c0_99 = arith.constant 0 : index
    %c0_100 = arith.constant 0 : index
    %166 = vector.load %arg11[%c0_99, %c0_100] : memref<1x8xf32, #tpu.memory_space<vmem>>, vector<1x8xf32>
    %167 = vector.broadcast %166 : vector<1x8xf32> to vector<64x8xf32>
    %168 = arith.mulf %165, %167 : vector<64x8xf32>
    %c0_101 = arith.constant 0 : index
    %c0_102 = arith.constant 0 : index
    %169 = vector.load %arg12[%c0_101, %c0_102] : memref<1x8xf32, #tpu.memory_space<vmem>>, vector<1x8xf32>
    %170 = vector.broadcast %169 : vector<1x8xf32> to vector<64x8xf32>
    %171 = arith.addf %168, %170 : vector<64x8xf32>
    %cst_103 = arith.constant 0.000000e+00 : f32
    %172 = vector.broadcast %cst_103 : f32 to vector<64x8xf32>
    %173 = arith.maximumf %171, %172 : vector<64x8xf32>
    %174 = arith.truncf %173 : vector<64x8xf32> to vector<64x8xbf16>
    %c0_104 = arith.constant 0 : index
    %c0_105 = arith.constant 0 : index
    %175 = vector.load %arg13[%c0_104, %c0_105] : memref<8x32xbf16, #tpu.memory_space<vmem>>, vector<8x32xbf16>
    %cst_106 = arith.constant dense<0.000000e+00> : vector<64x32xf32>
    %176 = tpu.matmul %174, %175, %cst_106 {dimension_numbers = #tpu.dot_dimension_numbers<[1], [0], [0], [1], [0, 0, 1, 1], [], []>} : vector<64x8xbf16>, vector<8x32xbf16>, vector<64x32xf32> -> vector<64x32xf32>
    %c0_107 = arith.constant 0 : index
    %c0_108 = arith.constant 0 : index
    %177 = vector.load %arg15[%c0_107, %c0_108] : memref<16x32xbf16, #tpu.memory_space<vmem>>, vector<16x32xbf16>
    %cst_109 = arith.constant dense<0.000000e+00> : vector<64x32xf32>
    %178 = tpu.matmul %13, %177, %cst_109 {dimension_numbers = #tpu.dot_dimension_numbers<[1], [0], [0], [1], [0, 0, 1, 1], [], []>} : vector<64x16xbf16>, vector<16x32xbf16>, vector<64x32xf32> -> vector<64x32xf32>
    %179 = arith.addf %176, %178 : vector<64x32xf32>
    %c0_110 = arith.constant 0 : index
    %c0_111 = arith.constant 0 : index
    %180 = vector.load %arg14[%c0_110, %c0_111] : memref<1x32xf32, #tpu.memory_space<vmem>>, vector<1x32xf32>
    %181 = vector.broadcast %180 : vector<1x32xf32> to vector<64x32xf32>
    %182 = arith.addf %179, %181 : vector<64x32xf32>
    %183 = vector.shape_cast %182 : vector<64x32xf32> to vector<1x8x256xf32>
    %c0_112 = arith.constant 0 : index
    %c0_113 = arith.constant 0 : index
    %c0_114 = arith.constant 0 : index
    %184 = vector.load %arg16[%c0_112, %c0_113, %c0_114] : memref<1x8x256xf32, #tpu.memory_space<vmem>>, vector<1x8x256xf32>
    tpu.vector_store %arg16[%c0_112, %c0_113, %c0_114], %183 {strides = array<i32>} : memref<1x8x256xf32, #tpu.memory_space<vmem>>, vector<1x8x256xf32>,
    return
  }
  func.func @transform_0(%arg0: i32, %arg1: i32) -> (i32, i32, i32, i32) {
    %c0_i32 = arith.constant 0 : i32
    %c0_i32_0 = arith.constant 0 : i32
    %c0_i32_1 = arith.constant 0 : i32
    return %arg0, %arg1, %c0_i32, %c0_i32_0 : i32, i32, i32, i32
  }
  func.func @transform_1(%arg0: i32, %arg1: i32) -> (i32, i32, i32, i32) {
    %c8_i32 = arith.constant 8 : i32
    %0 = arith.muli %arg1, %c8_i32 : i32
    %c1_i32 = arith.constant 1 : i32
    %1 = arith.subi %0, %c1_i32 : i32
    %c0_i32 = arith.constant 0 : i32
    %2 = arith.maxsi %1, %c0_i32 : i32
    %c0_i32_0 = arith.constant 0 : i32
    %c0_i32_1 = arith.constant 0 : i32
    %c0_i32_2 = arith.constant 0 : i32
    return %arg0, %2, %c0_i32_0, %c0_i32_1 : i32, i32, i32, i32
  }
  func.func @transform_2(%arg0: i32, %arg1: i32) -> (i32, i32, i32, i32) {
    %c8_i32 = arith.constant 8 : i32
    %0 = arith.muli %arg1, %c8_i32 : i32
    %c8_i32_0 = arith.constant 8 : i32
    %1 = arith.addi %0, %c8_i32_0 : i32
    %c7_i32 = arith.constant 7 : i32
    %2 = arith.minsi %1, %c7_i32 : i32
    %c0_i32 = arith.constant 0 : i32
    %c0_i32_1 = arith.constant 0 : i32
    %c0_i32_2 = arith.constant 0 : i32
    return %arg0, %2, %c0_i32, %c0_i32_1 : i32, i32, i32, i32
  }
  func.func @transform_3(%arg0: i32, %arg1: i32) -> (i32, i32) {
    %c0_i32 = arith.constant 0 : i32
    %c0_i32_0 = arith.constant 0 : i32
    %c0_i32_1 = arith.constant 0 : i32
    return %c0_i32, %c0_i32_0 : i32, i32
  }
  func.func @transform_4(%arg0: i32, %arg1: i32) -> (i32, i32) {
    %c0_i32 = arith.constant 0 : i32
    %c0_i32_0 = arith.constant 0 : i32
    %c0_i32_1 = arith.constant 0 : i32
    return %c0_i32, %c0_i32_0 : i32, i32
  }
  func.func @transform_5(%arg0: i32, %arg1: i32) -> (i32, i32) {
    %c0_i32 = arith.constant 0 : i32
    %c0_i32_0 = arith.constant 0 : i32
    %c0_i32_1 = arith.constant 0 : i32
    return %c0_i32, %c0_i32_0 : i32, i32
  }
  func.func @transform_6(%arg0: i32, %arg1: i32) -> (i32, i32) {
    %c0_i32 = arith.constant 0 : i32
    %c0_i32_0 = arith.constant 0 : i32
    %c0_i32_1 = arith.constant 0 : i32
    return %c0_i32, %c0_i32_0 : i32, i32
  }
  func.func @transform_7(%arg0: i32, %arg1: i32) -> (i32, i32) {
    %c0_i32 = arith.constant 0 : i32
    %c0_i32_0 = arith.constant 0 : i32
    %c0_i32_1 = arith.constant 0 : i32
    return %c0_i32, %c0_i32_0 : i32, i32
  }
  func.func @transform_8(%arg0: i32, %arg1: i32) -> (i32, i32, i32, i32) {
    %c0_i32 = arith.constant 0 : i32
    %c0_i32_0 = arith.constant 0 : i32
    %c0_i32_1 = arith.constant 0 : i32
    %c0_i32_2 = arith.constant 0 : i32
    %c0_i32_3 = arith.constant 0 : i32
    return %c0_i32, %c0_i32_0, %c0_i32_1, %c0_i32_2 : i32, i32, i32, i32
  }
  func.func @transform_9(%arg0: i32, %arg1: i32) -> (i32, i32) {
    %c0_i32 = arith.constant 0 : i32
    %c0_i32_0 = arith.constant 0 : i32
    %c0_i32_1 = arith.constant 0 : i32
    return %c0_i32, %c0_i32_0 : i32, i32
  }
  func.func @transform_10(%arg0: i32, %arg1: i32) -> (i32, i32) {
    %c0_i32 = arith.constant 0 : i32
    %c0_i32_0 = arith.constant 0 : i32
    %c0_i32_1 = arith.constant 0 : i32
    return %c0_i32, %c0_i32_0 : i32, i32
  }
  func.func @transform_11(%arg0: i32, %arg1: i32) -> (i32, i32) {
    %c0_i32 = arith.constant 0 : i32
    %c0_i32_0 = arith.constant 0 : i32
    %c0_i32_1 = arith.constant 0 : i32
    return %c0_i32, %c0_i32_0 : i32, i32
  }
  func.func @transform_12(%arg0: i32, %arg1: i32) -> (i32, i32) {
    %c0_i32 = arith.constant 0 : i32
    %c0_i32_0 = arith.constant 0 : i32
    %c0_i32_1 = arith.constant 0 : i32
    return %c0_i32, %c0_i32_0 : i32, i32
  }
  func.func @transform_13(%arg0: i32, %arg1: i32) -> (i32, i32) {
    %c0_i32 = arith.constant 0 : i32
    %c0_i32_0 = arith.constant 0 : i32
    %c0_i32_1 = arith.constant 0 : i32
    return %c0_i32, %c0_i32_0 : i32, i32
  }
  func.func @transform_14(%arg0: i32, %arg1: i32) -> (i32, i32, i32) {
    %c0_i32 = arith.constant 0 : i32
    %c0_i32_0 = arith.constant 0 : i32
    return %arg0, %arg1, %c0_i32 : i32, i32, i32
  }
}

module attributes {stable_mosaic.version = 11 : i64} {
  func.func @kernel(%arg0: i32, %arg1: i32, %arg2: memref<1x8x8x16xf32, #tpu.memory_space<vmem>>, %arg3: memref<1x1x8x16xf32, #tpu.memory_space<vmem>>, %arg4: memref<1x1x8x16xf32, #tpu.memory_space<vmem>>, %arg5: memref<1x16xf32, #tpu.memory_space<vmem>>, %arg6: memref<1x16xf32, #tpu.memory_space<vmem>>, %arg7: memref<16x8xbf16, #tpu.memory_space<vmem>>, %arg8: memref<1x8xf32, #tpu.memory_space<vmem>>, %arg9: memref<1x8xf32, #tpu.memory_space<vmem>>, %arg10: memref<3x3x8x8xbf16, #tpu.memory_space<vmem>>, %arg11: memref<1x8xf32, #tpu.memory_space<vmem>>, %arg12: memref<1x8xf32, #tpu.memory_space<vmem>>, %arg13: memref<8x32xbf16, #tpu.memory_space<vmem>>, %arg14: memref<1x32xf32, #tpu.memory_space<vmem>>, %arg15: memref<16x32xbf16, #tpu.memory_space<vmem>>, %arg16: memref<1x8x8x32xf32, #tpu.memory_space<vmem>>, %arg17: memref<96x8xf32, #tpu.memory_space<vmem>>) attributes {dimension_semantics = [#tpu.dimension_semantics<parallel>, #tpu.dimension_semantics<parallel>], iteration_bounds = array<i64: 2, 1>, scalar_prefetch = 0 : i64, scratch_operands = 1 : i64, tpu.core_type = #tpu.core_type<tc>, window_params = [{transform_indices = @transform_0, window_bounds = array<i64: 1, 8, 8, 16>}, {transform_indices = @transform_1, window_bounds = array<i64: 1, 1, 8, 16>}, {transform_indices = @transform_2, window_bounds = array<i64: 1, 1, 8, 16>}, {pipeline_mode = #tpu.pipeline_mode<synchronous>, transform_indices = @transform_3, window_bounds = array<i64: 1, 16>}, {pipeline_mode = #tpu.pipeline_mode<synchronous>, transform_indices = @transform_4, window_bounds = array<i64: 1, 16>}, {pipeline_mode = #tpu.pipeline_mode<synchronous>, transform_indices = @transform_5, window_bounds = array<i64: 16, 8>}, {pipeline_mode = #tpu.pipeline_mode<synchronous>, transform_indices = @transform_6, window_bounds = array<i64: 1, 8>}, {pipeline_mode = #tpu.pipeline_mode<synchronous>, transform_indices = @transform_7, window_bounds = array<i64: 1, 8>}, {pipeline_mode = #tpu.pipeline_mode<synchronous>, transform_indices = @transform_8, window_bounds = array<i64: 3, 3, 8, 8>}, {pipeline_mode = #tpu.pipeline_mode<synchronous>, transform_indices = @transform_9, window_bounds = array<i64: 1, 8>}, {pipeline_mode = #tpu.pipeline_mode<synchronous>, transform_indices = @transform_10, window_bounds = array<i64: 1, 8>}, {pipeline_mode = #tpu.pipeline_mode<synchronous>, transform_indices = @transform_11, window_bounds = array<i64: 8, 32>}, {pipeline_mode = #tpu.pipeline_mode<synchronous>, transform_indices = @transform_12, window_bounds = array<i64: 1, 32>}, {pipeline_mode = #tpu.pipeline_mode<synchronous>, transform_indices = @transform_13, window_bounds = array<i64: 16, 32>}, {transform_indices = @transform_14, window_bounds = array<i64: 1, 8, 8, 32>}]} {
    %c0 = arith.constant 0 : index
    %c0_0 = arith.constant 0 : index
    %0 = vector.load %arg5[%c0, %c0_0] : memref<1x16xf32, #tpu.memory_space<vmem>>, vector<1x16xf32>
    %c0_1 = arith.constant 0 : index
    %c0_2 = arith.constant 0 : index
    %1 = vector.load %arg6[%c0_1, %c0_2] : memref<1x16xf32, #tpu.memory_space<vmem>>, vector<1x16xf32>
    %c0_3 = arith.constant 0 : index
    %c0_4 = arith.constant 0 : index
    %2 = vector.load %arg8[%c0_3, %c0_4] : memref<1x8xf32, #tpu.memory_space<vmem>>, vector<1x8xf32>
    %c0_5 = arith.constant 0 : index
    %c0_6 = arith.constant 0 : index
    %3 = vector.load %arg9[%c0_5, %c0_6] : memref<1x8xf32, #tpu.memory_space<vmem>>, vector<1x8xf32>
    %c0_7 = arith.constant 0 : index
    %c0_8 = arith.constant 0 : index
    %4 = vector.load %arg7[%c0_7, %c0_8] : memref<16x8xbf16, #tpu.memory_space<vmem>>, vector<16x8xbf16>
    %c0_9 = arith.constant 0 : index
    %c0_10 = arith.constant 0 : index
    %c0_11 = arith.constant 0 : index
    %c0_12 = arith.constant 0 : index
    %5 = vector.load %arg2[%c0_9, %c0_10, %c0_11, %c0_12] : memref<1x8x8x16xf32, #tpu.memory_space<vmem>>, vector<1x8x8x16xf32>
    %6 = vector.shape_cast %5 : vector<1x8x8x16xf32> to vector<64x16xf32>
    %7 = vector.broadcast %0 : vector<1x16xf32> to vector<64x16xf32>
    %8 = arith.mulf %6, %7 : vector<64x16xf32>
    %9 = vector.broadcast %1 : vector<1x16xf32> to vector<64x16xf32>
    %10 = arith.addf %8, %9 : vector<64x16xf32>
    %cst = arith.constant 0.000000e+00 : f32
    %11 = vector.broadcast %cst : f32 to vector<64x16xf32>
    %12 = arith.maximumf %10, %11 : vector<64x16xf32>
    %13 = arith.truncf %12 : vector<64x16xf32> to vector<64x16xbf16>
    %cst_13 = arith.constant dense<0.000000e+00> : vector<64x8xf32>
    %14 = tpu.matmul %13, %4, %cst_13 {dimension_numbers = #tpu.dot_dimension_numbers<[1], [0], [0], [1], [0, 0, 1, 1], [], []>} : vector<64x16xbf16>, vector<16x8xbf16>, vector<64x8xf32> -> vector<64x8xf32>
    %15 = vector.broadcast %2 : vector<1x8xf32> to vector<64x8xf32>
    %16 = arith.mulf %14, %15 : vector<64x8xf32>
    %17 = vector.broadcast %3 : vector<1x8xf32> to vector<64x8xf32>
    %18 = arith.addf %16, %17 : vector<64x8xf32>
    %cst_14 = arith.constant 0.000000e+00 : f32
    %19 = vector.broadcast %cst_14 : f32 to vector<64x8xf32>
    %20 = arith.maximumf %18, %19 : vector<64x8xf32>
    %c0_15 = arith.constant 0 : index
    %c0_16 = arith.constant 0 : index
    %c0_17 = arith.constant 0 : index
    %c0_18 = arith.constant 0 : index
    %21 = vector.load %arg3[%c0_15, %c0_16, %c0_17, %c0_18] : memref<1x1x8x16xf32, #tpu.memory_space<vmem>>, vector<1x1x8x16xf32>
    %22 = vector.shape_cast %21 : vector<1x1x8x16xf32> to vector<8x16xf32>
    %23 = vector.broadcast %0 : vector<1x16xf32> to vector<8x16xf32>
    %24 = arith.mulf %22, %23 : vector<8x16xf32>
    %25 = vector.broadcast %1 : vector<1x16xf32> to vector<8x16xf32>
    %26 = arith.addf %24, %25 : vector<8x16xf32>
    %cst_19 = arith.constant 0.000000e+00 : f32
    %27 = vector.broadcast %cst_19 : f32 to vector<8x16xf32>
    %28 = arith.maximumf %26, %27 : vector<8x16xf32>
    %29 = arith.truncf %28 : vector<8x16xf32> to vector<8x16xbf16>
    %cst_20 = arith.constant dense<0.000000e+00> : vector<8x8xf32>
    %30 = tpu.matmul %29, %4, %cst_20 {dimension_numbers = #tpu.dot_dimension_numbers<[1], [0], [0], [1], [0, 0, 1, 1], [], []>} : vector<8x16xbf16>, vector<16x8xbf16>, vector<8x8xf32> -> vector<8x8xf32>
    %31 = vector.broadcast %2 : vector<1x8xf32> to vector<8x8xf32>
    %32 = arith.mulf %30, %31 : vector<8x8xf32>
    %33 = vector.broadcast %3 : vector<1x8xf32> to vector<8x8xf32>
    %34 = arith.addf %32, %33 : vector<8x8xf32>
    %cst_21 = arith.constant 0.000000e+00 : f32
    %35 = vector.broadcast %cst_21 : f32 to vector<8x8xf32>
    %36 = arith.maximumf %34, %35 : vector<8x8xf32>
    %c0_i32 = arith.constant 0 : i32
    %37 = arith.cmpi sgt, %arg1, %c0_i32 : i32
    %38 = arith.extui %37 : i1 to i32
    %39 = arith.sitofp %38 : i32 to f32
    %40 = vector.broadcast %39 : f32 to vector<8x8xf32>
    %41 = arith.mulf %36, %40 : vector<8x8xf32>
    %c0_22 = arith.constant 0 : index
    %c0_23 = arith.constant 0 : index
    %c0_24 = arith.constant 0 : index
    %c0_25 = arith.constant 0 : index
    %42 = vector.load %arg4[%c0_22, %c0_23, %c0_24, %c0_25] : memref<1x1x8x16xf32, #tpu.memory_space<vmem>>, vector<1x1x8x16xf32>
    %43 = vector.shape_cast %42 : vector<1x1x8x16xf32> to vector<8x16xf32>
    %44 = vector.broadcast %0 : vector<1x16xf32> to vector<8x16xf32>
    %45 = arith.mulf %43, %44 : vector<8x16xf32>
    %46 = vector.broadcast %1 : vector<1x16xf32> to vector<8x16xf32>
    %47 = arith.addf %45, %46 : vector<8x16xf32>
    %cst_26 = arith.constant 0.000000e+00 : f32
    %48 = vector.broadcast %cst_26 : f32 to vector<8x16xf32>
    %49 = arith.maximumf %47, %48 : vector<8x16xf32>
    %50 = arith.truncf %49 : vector<8x16xf32> to vector<8x16xbf16>
    %cst_27 = arith.constant dense<0.000000e+00> : vector<8x8xf32>
    %51 = tpu.matmul %50, %4, %cst_27 {dimension_numbers = #tpu.dot_dimension_numbers<[1], [0], [0], [1], [0, 0, 1, 1], [], []>} : vector<8x16xbf16>, vector<16x8xbf16>, vector<8x8xf32> -> vector<8x8xf32>
    %52 = vector.broadcast %2 : vector<1x8xf32> to vector<8x8xf32>
    %53 = arith.mulf %51, %52 : vector<8x8xf32>
    %54 = vector.broadcast %3 : vector<1x8xf32> to vector<8x8xf32>
    %55 = arith.addf %53, %54 : vector<8x8xf32>
    %cst_28 = arith.constant 0.000000e+00 : f32
    %56 = vector.broadcast %cst_28 : f32 to vector<8x8xf32>
    %57 = arith.maximumf %55, %56 : vector<8x8xf32>
    %c0_i32_29 = arith.constant 0 : i32
    %58 = arith.cmpi slt, %arg1, %c0_i32_29 : i32
    %59 = arith.extui %58 : i1 to i32
    %60 = arith.sitofp %59 : i32 to f32
    %61 = vector.broadcast %60 : f32 to vector<8x8xf32>
    %62 = arith.mulf %57, %61 : vector<8x8xf32>
    %c8 = arith.constant 8 : index
    %c0_30 = arith.constant 0 : index
    %63 = vector.load %arg17[%c8, %c0_30] : memref<96x8xf32, #tpu.memory_space<vmem>>, vector<8x8xf32>
    tpu.vector_store %arg17[%c8, %c0_30], %41 {strides = array<i32>} : memref<96x8xf32, #tpu.memory_space<vmem>>, vector<8x8xf32>,
    %c16 = arith.constant 16 : index
    %c0_31 = arith.constant 0 : index
    %64 = vector.load %arg17[%c16, %c0_31] : memref<96x8xf32, #tpu.memory_space<vmem>>, vector<64x8xf32>
    tpu.vector_store %arg17[%c16, %c0_31], %20 {strides = array<i32>} : memref<96x8xf32, #tpu.memory_space<vmem>>, vector<64x8xf32>,
    %c80 = arith.constant 80 : index
    %c0_32 = arith.constant 0 : index
    %65 = vector.load %arg17[%c80, %c0_32] : memref<96x8xf32, #tpu.memory_space<vmem>>, vector<8x8xf32>
    tpu.vector_store %arg17[%c80, %c0_32], %62 {strides = array<i32>} : memref<96x8xf32, #tpu.memory_space<vmem>>, vector<8x8xf32>,
    %66 = tpu.iota {dimensions = array<i32: 0>} : vector<64x1xi32>
    %c8_i32 = arith.constant 8 : i32
    %c0_i32_33 = arith.constant 0 : i32
    %67 = arith.cmpi eq, %c8_i32, %c0_i32_33 : i32
    %c1_i32 = arith.constant 1 : i32
    %68 = arith.select %67, %c1_i32, %c8_i32 : i32
    %69 = vector.broadcast %68 : i32 to vector<64x1xi32>
    %70 = arith.remsi %66, %69 : vector<64x1xi32>
    %c0_i32_34 = arith.constant 0 : i32
    %71 = vector.broadcast %c0_i32_34 : i32 to vector<64x1xi32>
    %72 = arith.cmpi ne, %70, %71 : vector<64x1xi32>
    %c0_i32_35 = arith.constant 0 : i32
    %73 = vector.broadcast %c0_i32_35 : i32 to vector<64x1xi32>
    %74 = arith.cmpi slt, %70, %73 : vector<64x1xi32>
    %c0_i32_36 = arith.constant 0 : i32
    %75 = arith.cmpi slt, %68, %c0_i32_36 : i32
    %76 = vector.broadcast %75 : i1 to vector<64x1xi1>
    %77 = vector.broadcast %76 : vector<64x1xi1> to vector<64x1xi1>
    %78 = arith.xori %74, %77 : vector<64x1xi1>
    %79 = arith.andi %78, %72 : vector<64x1xi1>
    %80 = vector.broadcast %68 : i32 to vector<64x1xi32>
    %81 = arith.addi %70, %80 : vector<64x1xi32>
    %82 = arith.select %79, %81, %70 : vector<64x1xi1>, vector<64x1xi32>
    %c0_i32_37 = arith.constant 0 : i32
    %83 = vector.broadcast %c0_i32_37 : i32 to vector<64x1xi32>
    %84 = arith.cmpi ne, %82, %83 : vector<64x1xi32>
    %c7_i32 = arith.constant 7 : i32
    %85 = vector.broadcast %c7_i32 : i32 to vector<64x1xi32>
    %86 = arith.cmpi ne, %82, %85 : vector<64x1xi32>
    %cst_38 = arith.constant 0.000000e+00 : f32
    %87 = vector.broadcast %cst_38 : f32 to vector<64x8xf32>
    %c7 = arith.constant 7 : index
    %c0_39 = arith.constant 0 : index
    %88 = vector.load %arg17[%c7, %c0_39] : memref<96x8xf32, #tpu.memory_space<vmem>>, vector<64x8xf32>
    %cst_40 = arith.constant 0.000000e+00 : f32
    %89 = vector.shape_cast %84 : vector<64x1xi1> to vector<64x1xi1>
    %90 = vector.broadcast %89 : vector<64x1xi1> to vector<64x8xi1>
    %91 = vector.broadcast %cst_40 : f32 to vector<64x8xf32>
    %92 = arith.select %90, %88, %91 : vector<64x8xi1>, vector<64x8xf32>
    %c8_41 = arith.constant 8 : index
    %c0_42 = arith.constant 0 : index
    %93 = vector.load %arg17[%c8_41, %c0_42] : memref<96x8xf32, #tpu.memory_space<vmem>>, vector<64x8xf32>
    %c9 = arith.constant 9 : index
    %c0_43 = arith.constant 0 : index
    %94 = vector.load %arg17[%c9, %c0_43] : memref<96x8xf32, #tpu.memory_space<vmem>>, vector<64x8xf32>
    %cst_44 = arith.constant 0.000000e+00 : f32
    %95 = vector.shape_cast %86 : vector<64x1xi1> to vector<64x1xi1>
    %96 = vector.broadcast %95 : vector<64x1xi1> to vector<64x8xi1>
    %97 = vector.broadcast %cst_44 : f32 to vector<64x8xf32>
    %98 = arith.select %96, %94, %97 : vector<64x8xi1>, vector<64x8xf32>
    %99 = arith.truncf %92 : vector<64x8xf32> to vector<64x8xbf16>
    %100 = arith.truncf %93 : vector<64x8xf32> to vector<64x8xbf16>
    %101 = arith.truncf %98 : vector<64x8xf32> to vector<64x8xbf16>
    %c0_45 = arith.constant 0 : index
    %c0_46 = arith.constant 0 : index
    %c0_47 = arith.constant 0 : index
    %c0_48 = arith.constant 0 : index
    %102 = vector.load %arg10[%c0_45, %c0_46, %c0_47, %c0_48] : memref<3x3x8x8xbf16, #tpu.memory_space<vmem>>, vector<1x1x8x8xbf16>
    %103 = vector.shape_cast %102 : vector<1x1x8x8xbf16> to vector<8x8xbf16>
    %cst_49 = arith.constant dense<0.000000e+00> : vector<64x8xf32>
    %104 = tpu.matmul %99, %103, %cst_49 {dimension_numbers = #tpu.dot_dimension_numbers<[1], [0], [0], [1], [0, 0, 1, 1], [], []>} : vector<64x8xbf16>, vector<8x8xbf16>, vector<64x8xf32> -> vector<64x8xf32>
    %105 = arith.addf %87, %104 : vector<64x8xf32>
    %c0_50 = arith.constant 0 : index
    %c1 = arith.constant 1 : index
    %c0_51 = arith.constant 0 : index
    %c0_52 = arith.constant 0 : index
    %106 = vector.load %arg10[%c0_50, %c1, %c0_51, %c0_52] : memref<3x3x8x8xbf16, #tpu.memory_space<vmem>>, vector<1x1x8x8xbf16>
    %107 = vector.shape_cast %106 : vector<1x1x8x8xbf16> to vector<8x8xbf16>
    %cst_53 = arith.constant dense<0.000000e+00> : vector<64x8xf32>
    %108 = tpu.matmul %100, %107, %cst_53 {dimension_numbers = #tpu.dot_dimension_numbers<[1], [0], [0], [1], [0, 0, 1, 1], [], []>} : vector<64x8xbf16>, vector<8x8xbf16>, vector<64x8xf32> -> vector<64x8xf32>
    %109 = arith.addf %105, %108 : vector<64x8xf32>
    %c0_54 = arith.constant 0 : index
    %c2 = arith.constant 2 : index
    %c0_55 = arith.constant 0 : index
    %c0_56 = arith.constant 0 : index
    %110 = vector.load %arg10[%c0_54, %c2, %c0_55, %c0_56] : memref<3x3x8x8xbf16, #tpu.memory_space<vmem>>, vector<1x1x8x8xbf16>
    %111 = vector.shape_cast %110 : vector<1x1x8x8xbf16> to vector<8x8xbf16>
    %cst_57 = arith.constant dense<0.000000e+00> : vector<64x8xf32>
    %112 = tpu.matmul %101, %111, %cst_57 {dimension_numbers = #tpu.dot_dimension_numbers<[1], [0], [0], [1], [0, 0, 1, 1], [], []>} : vector<64x8xbf16>, vector<8x8xbf16>, vector<64x8xf32> -> vector<64x8xf32>
    %113 = arith.addf %109, %112 : vector<64x8xf32>
    %c15 = arith.constant 15 : index
    %c0_58 = arith.constant 0 : index
    %114 = vector.load %arg17[%c15, %c0_58] : memref<96x8xf32, #tpu.memory_space<vmem>>, vector<64x8xf32>
    %cst_59 = arith.constant 0.000000e+00 : f32
    %115 = vector.shape_cast %84 : vector<64x1xi1> to vector<64x1xi1>
    %116 = vector.broadcast %115 : vector<64x1xi1> to vector<64x8xi1>
    %117 = vector.broadcast %cst_59 : f32 to vector<64x8xf32>
    %118 = arith.select %116, %114, %117 : vector<64x8xi1>, vector<64x8xf32>
    %c16_60 = arith.constant 16 : index
    %c0_61 = arith.constant 0 : index
    %119 = vector.load %arg17[%c16_60, %c0_61] : memref<96x8xf32, #tpu.memory_space<vmem>>, vector<64x8xf32>
    %c17 = arith.constant 17 : index
    %c0_62 = arith.constant 0 : index
    %120 = vector.load %arg17[%c17, %c0_62] : memref<96x8xf32, #tpu.memory_space<vmem>>, vector<64x8xf32>
    %cst_63 = arith.constant 0.000000e+00 : f32
    %121 = vector.shape_cast %86 : vector<64x1xi1> to vector<64x1xi1>
    %122 = vector.broadcast %121 : vector<64x1xi1> to vector<64x8xi1>
    %123 = vector.broadcast %cst_63 : f32 to vector<64x8xf32>
    %124 = arith.select %122, %120, %123 : vector<64x8xi1>, vector<64x8xf32>
    %125 = arith.truncf %118 : vector<64x8xf32> to vector<64x8xbf16>
    %126 = arith.truncf %119 : vector<64x8xf32> to vector<64x8xbf16>
    %127 = arith.truncf %124 : vector<64x8xf32> to vector<64x8xbf16>
    %c1_64 = arith.constant 1 : index
    %c0_65 = arith.constant 0 : index
    %c0_66 = arith.constant 0 : index
    %c0_67 = arith.constant 0 : index
    %128 = vector.load %arg10[%c1_64, %c0_65, %c0_66, %c0_67] : memref<3x3x8x8xbf16, #tpu.memory_space<vmem>>, vector<1x1x8x8xbf16>
    %129 = vector.shape_cast %128 : vector<1x1x8x8xbf16> to vector<8x8xbf16>
    %cst_68 = arith.constant dense<0.000000e+00> : vector<64x8xf32>
    %130 = tpu.matmul %125, %129, %cst_68 {dimension_numbers = #tpu.dot_dimension_numbers<[1], [0], [0], [1], [0, 0, 1, 1], [], []>} : vector<64x8xbf16>, vector<8x8xbf16>, vector<64x8xf32> -> vector<64x8xf32>
    %131 = arith.addf %113, %130 : vector<64x8xf32>
    %c1_69 = arith.constant 1 : index
    %c1_70 = arith.constant 1 : index
    %c0_71 = arith.constant 0 : index
    %c0_72 = arith.constant 0 : index
    %132 = vector.load %arg10[%c1_69, %c1_70, %c0_71, %c0_72] : memref<3x3x8x8xbf16, #tpu.memory_space<vmem>>, vector<1x1x8x8xbf16>
    %133 = vector.shape_cast %132 : vector<1x1x8x8xbf16> to vector<8x8xbf16>
    %cst_73 = arith.constant dense<0.000000e+00> : vector<64x8xf32>
    %134 = tpu.matmul %126, %133, %cst_73 {dimension_numbers = #tpu.dot_dimension_numbers<[1], [0], [0], [1], [0, 0, 1, 1], [], []>} : vector<64x8xbf16>, vector<8x8xbf16>, vector<64x8xf32> -> vector<64x8xf32>
    %135 = arith.addf %131, %134 : vector<64x8xf32>
    %c1_74 = arith.constant 1 : index
    %c2_75 = arith.constant 2 : index
    %c0_76 = arith.constant 0 : index
    %c0_77 = arith.constant 0 : index
    %136 = vector.load %arg10[%c1_74, %c2_75, %c0_76, %c0_77] : memref<3x3x8x8xbf16, #tpu.memory_space<vmem>>, vector<1x1x8x8xbf16>
    %137 = vector.shape_cast %136 : vector<1x1x8x8xbf16> to vector<8x8xbf16>
    %cst_78 = arith.constant dense<0.000000e+00> : vector<64x8xf32>
    %138 = tpu.matmul %127, %137, %cst_78 {dimension_numbers = #tpu.dot_dimension_numbers<[1], [0], [0], [1], [0, 0, 1, 1], [], []>} : vector<64x8xbf16>, vector<8x8xbf16>, vector<64x8xf32> -> vector<64x8xf32>
    %139 = arith.addf %135, %138 : vector<64x8xf32>
    %c23 = arith.constant 23 : index
    %c0_79 = arith.constant 0 : index
    %140 = vector.load %arg17[%c23, %c0_79] : memref<96x8xf32, #tpu.memory_space<vmem>>, vector<64x8xf32>
    %cst_80 = arith.constant 0.000000e+00 : f32
    %141 = vector.shape_cast %84 : vector<64x1xi1> to vector<64x1xi1>
    %142 = vector.broadcast %141 : vector<64x1xi1> to vector<64x8xi1>
    %143 = vector.broadcast %cst_80 : f32 to vector<64x8xf32>
    %144 = arith.select %142, %140, %143 : vector<64x8xi1>, vector<64x8xf32>
    %c24 = arith.constant 24 : index
    %c0_81 = arith.constant 0 : index
    %145 = vector.load %arg17[%c24, %c0_81] : memref<96x8xf32, #tpu.memory_space<vmem>>, vector<64x8xf32>
    %c25 = arith.constant 25 : index
    %c0_82 = arith.constant 0 : index
    %146 = vector.load %arg17[%c25, %c0_82] : memref<96x8xf32, #tpu.memory_space<vmem>>, vector<64x8xf32>
    %cst_83 = arith.constant 0.000000e+00 : f32
    %147 = vector.shape_cast %86 : vector<64x1xi1> to vector<64x1xi1>
    %148 = vector.broadcast %147 : vector<64x1xi1> to vector<64x8xi1>
    %149 = vector.broadcast %cst_83 : f32 to vector<64x8xf32>
    %150 = arith.select %148, %146, %149 : vector<64x8xi1>, vector<64x8xf32>
    %151 = arith.truncf %144 : vector<64x8xf32> to vector<64x8xbf16>
    %152 = arith.truncf %145 : vector<64x8xf32> to vector<64x8xbf16>
    %153 = arith.truncf %150 : vector<64x8xf32> to vector<64x8xbf16>
    %c2_84 = arith.constant 2 : index
    %c0_85 = arith.constant 0 : index
    %c0_86 = arith.constant 0 : index
    %c0_87 = arith.constant 0 : index
    %154 = vector.load %arg10[%c2_84, %c0_85, %c0_86, %c0_87] : memref<3x3x8x8xbf16, #tpu.memory_space<vmem>>, vector<1x1x8x8xbf16>
    %155 = vector.shape_cast %154 : vector<1x1x8x8xbf16> to vector<8x8xbf16>
    %cst_88 = arith.constant dense<0.000000e+00> : vector<64x8xf32>
    %156 = tpu.matmul %151, %155, %cst_88 {dimension_numbers = #tpu.dot_dimension_numbers<[1], [0], [0], [1], [0, 0, 1, 1], [], []>} : vector<64x8xbf16>, vector<8x8xbf16>, vector<64x8xf32> -> vector<64x8xf32>
    %157 = arith.addf %139, %156 : vector<64x8xf32>
    %c2_89 = arith.constant 2 : index
    %c1_90 = arith.constant 1 : index
    %c0_91 = arith.constant 0 : index
    %c0_92 = arith.constant 0 : index
    %158 = vector.load %arg10[%c2_89, %c1_90, %c0_91, %c0_92] : memref<3x3x8x8xbf16, #tpu.memory_space<vmem>>, vector<1x1x8x8xbf16>
    %159 = vector.shape_cast %158 : vector<1x1x8x8xbf16> to vector<8x8xbf16>
    %cst_93 = arith.constant dense<0.000000e+00> : vector<64x8xf32>
    %160 = tpu.matmul %152, %159, %cst_93 {dimension_numbers = #tpu.dot_dimension_numbers<[1], [0], [0], [1], [0, 0, 1, 1], [], []>} : vector<64x8xbf16>, vector<8x8xbf16>, vector<64x8xf32> -> vector<64x8xf32>
    %161 = arith.addf %157, %160 : vector<64x8xf32>
    %c2_94 = arith.constant 2 : index
    %c2_95 = arith.constant 2 : index
    %c0_96 = arith.constant 0 : index
    %c0_97 = arith.constant 0 : index
    %162 = vector.load %arg10[%c2_94, %c2_95, %c0_96, %c0_97] : memref<3x3x8x8xbf16, #tpu.memory_space<vmem>>, vector<1x1x8x8xbf16>
    %163 = vector.shape_cast %162 : vector<1x1x8x8xbf16> to vector<8x8xbf16>
    %cst_98 = arith.constant dense<0.000000e+00> : vector<64x8xf32>
    %164 = tpu.matmul %153, %163, %cst_98 {dimension_numbers = #tpu.dot_dimension_numbers<[1], [0], [0], [1], [0, 0, 1, 1], [], []>} : vector<64x8xbf16>, vector<8x8xbf16>, vector<64x8xf32> -> vector<64x8xf32>
    %165 = arith.addf %161, %164 : vector<64x8xf32>
    %c0_99 = arith.constant 0 : index
    %c0_100 = arith.constant 0 : index
    %166 = vector.load %arg11[%c0_99, %c0_100] : memref<1x8xf32, #tpu.memory_space<vmem>>, vector<1x8xf32>
    %167 = vector.broadcast %166 : vector<1x8xf32> to vector<64x8xf32>
    %168 = arith.mulf %165, %167 : vector<64x8xf32>
    %c0_101 = arith.constant 0 : index
    %c0_102 = arith.constant 0 : index
    %169 = vector.load %arg12[%c0_101, %c0_102] : memref<1x8xf32, #tpu.memory_space<vmem>>, vector<1x8xf32>
    %170 = vector.broadcast %169 : vector<1x8xf32> to vector<64x8xf32>
    %171 = arith.addf %168, %170 : vector<64x8xf32>
    %cst_103 = arith.constant 0.000000e+00 : f32
    %172 = vector.broadcast %cst_103 : f32 to vector<64x8xf32>
    %173 = arith.maximumf %171, %172 : vector<64x8xf32>
    %174 = arith.truncf %173 : vector<64x8xf32> to vector<64x8xbf16>
    %c0_104 = arith.constant 0 : index
    %c0_105 = arith.constant 0 : index
    %175 = vector.load %arg13[%c0_104, %c0_105] : memref<8x32xbf16, #tpu.memory_space<vmem>>, vector<8x32xbf16>
    %cst_106 = arith.constant dense<0.000000e+00> : vector<64x32xf32>
    %176 = tpu.matmul %174, %175, %cst_106 {dimension_numbers = #tpu.dot_dimension_numbers<[1], [0], [0], [1], [0, 0, 1, 1], [], []>} : vector<64x8xbf16>, vector<8x32xbf16>, vector<64x32xf32> -> vector<64x32xf32>
    %c0_107 = arith.constant 0 : index
    %c0_108 = arith.constant 0 : index
    %177 = vector.load %arg15[%c0_107, %c0_108] : memref<16x32xbf16, #tpu.memory_space<vmem>>, vector<16x32xbf16>
    %cst_109 = arith.constant dense<0.000000e+00> : vector<64x32xf32>
    %178 = tpu.matmul %13, %177, %cst_109 {dimension_numbers = #tpu.dot_dimension_numbers<[1], [0], [0], [1], [0, 0, 1, 1], [], []>} : vector<64x16xbf16>, vector<16x32xbf16>, vector<64x32xf32> -> vector<64x32xf32>
    %179 = arith.addf %176, %178 : vector<64x32xf32>
    %c0_110 = arith.constant 0 : index
    %c0_111 = arith.constant 0 : index
    %180 = vector.load %arg14[%c0_110, %c0_111] : memref<1x32xf32, #tpu.memory_space<vmem>>, vector<1x32xf32>
    %181 = vector.broadcast %180 : vector<1x32xf32> to vector<64x32xf32>
    %182 = arith.addf %179, %181 : vector<64x32xf32>
    %183 = vector.shape_cast %182 : vector<64x32xf32> to vector<1x8x8x32xf32>
    %c0_112 = arith.constant 0 : index
    %c0_113 = arith.constant 0 : index
    %c0_114 = arith.constant 0 : index
    %c0_115 = arith.constant 0 : index
    %184 = vector.load %arg16[%c0_112, %c0_113, %c0_114, %c0_115] : memref<1x8x8x32xf32, #tpu.memory_space<vmem>>, vector<1x8x8x32xf32>
    tpu.vector_store %arg16[%c0_112, %c0_113, %c0_114, %c0_115], %183 {strides = array<i32>} : memref<1x8x8x32xf32, #tpu.memory_space<vmem>>, vector<1x8x8x32xf32>,
    return
  }
  func.func @transform_0(%arg0: i32, %arg1: i32) -> (i32, i32, i32, i32) {
    %c0_i32 = arith.constant 0 : i32
    %c0_i32_0 = arith.constant 0 : i32
    %c0_i32_1 = arith.constant 0 : i32
    return %arg0, %arg1, %c0_i32, %c0_i32_0 : i32, i32, i32, i32
  }
  func.func @transform_1(%arg0: i32, %arg1: i32) -> (i32, i32, i32, i32) {
    %c8_i32 = arith.constant 8 : i32
    %0 = arith.muli %arg1, %c8_i32 : i32
    %c1_i32 = arith.constant 1 : i32
    %1 = arith.subi %0, %c1_i32 : i32
    %c0_i32 = arith.constant 0 : i32
    %2 = arith.maxsi %1, %c0_i32 : i32
    %c0_i32_0 = arith.constant 0 : i32
    %c0_i32_1 = arith.constant 0 : i32
    %c0_i32_2 = arith.constant 0 : i32
    return %arg0, %2, %c0_i32_0, %c0_i32_1 : i32, i32, i32, i32
  }
  func.func @transform_2(%arg0: i32, %arg1: i32) -> (i32, i32, i32, i32) {
    %c8_i32 = arith.constant 8 : i32
    %0 = arith.muli %arg1, %c8_i32 : i32
    %c8_i32_0 = arith.constant 8 : i32
    %1 = arith.addi %0, %c8_i32_0 : i32
    %c7_i32 = arith.constant 7 : i32
    %2 = arith.minsi %1, %c7_i32 : i32
    %c0_i32 = arith.constant 0 : i32
    %c0_i32_1 = arith.constant 0 : i32
    %c0_i32_2 = arith.constant 0 : i32
    return %arg0, %2, %c0_i32, %c0_i32_1 : i32, i32, i32, i32
  }
  func.func @transform_3(%arg0: i32, %arg1: i32) -> (i32, i32) {
    %c0_i32 = arith.constant 0 : i32
    %c0_i32_0 = arith.constant 0 : i32
    %c0_i32_1 = arith.constant 0 : i32
    return %c0_i32, %c0_i32_0 : i32, i32
  }
  func.func @transform_4(%arg0: i32, %arg1: i32) -> (i32, i32) {
    %c0_i32 = arith.constant 0 : i32
    %c0_i32_0 = arith.constant 0 : i32
    %c0_i32_1 = arith.constant 0 : i32
    return %c0_i32, %c0_i32_0 : i32, i32
  }
  func.func @transform_5(%arg0: i32, %arg1: i32) -> (i32, i32) {
    %c0_i32 = arith.constant 0 : i32
    %c0_i32_0 = arith.constant 0 : i32
    %c0_i32_1 = arith.constant 0 : i32
    return %c0_i32, %c0_i32_0 : i32, i32
  }
  func.func @transform_6(%arg0: i32, %arg1: i32) -> (i32, i32) {
    %c0_i32 = arith.constant 0 : i32
    %c0_i32_0 = arith.constant 0 : i32
    %c0_i32_1 = arith.constant 0 : i32
    return %c0_i32, %c0_i32_0 : i32, i32
  }
  func.func @transform_7(%arg0: i32, %arg1: i32) -> (i32, i32) {
    %c0_i32 = arith.constant 0 : i32
    %c0_i32_0 = arith.constant 0 : i32
    %c0_i32_1 = arith.constant 0 : i32
    return %c0_i32, %c0_i32_0 : i32, i32
  }
  func.func @transform_8(%arg0: i32, %arg1: i32) -> (i32, i32, i32, i32) {
    %c0_i32 = arith.constant 0 : i32
    %c0_i32_0 = arith.constant 0 : i32
    %c0_i32_1 = arith.constant 0 : i32
    %c0_i32_2 = arith.constant 0 : i32
    %c0_i32_3 = arith.constant 0 : i32
    return %c0_i32, %c0_i32_0, %c0_i32_1, %c0_i32_2 : i32, i32, i32, i32
  }
  func.func @transform_9(%arg0: i32, %arg1: i32) -> (i32, i32) {
    %c0_i32 = arith.constant 0 : i32
    %c0_i32_0 = arith.constant 0 : i32
    %c0_i32_1 = arith.constant 0 : i32
    return %c0_i32, %c0_i32_0 : i32, i32
  }
  func.func @transform_10(%arg0: i32, %arg1: i32) -> (i32, i32) {
    %c0_i32 = arith.constant 0 : i32
    %c0_i32_0 = arith.constant 0 : i32
    %c0_i32_1 = arith.constant 0 : i32
    return %c0_i32, %c0_i32_0 : i32, i32
  }
  func.func @transform_11(%arg0: i32, %arg1: i32) -> (i32, i32) {
    %c0_i32 = arith.constant 0 : i32
    %c0_i32_0 = arith.constant 0 : i32
    %c0_i32_1 = arith.constant 0 : i32
    return %c0_i32, %c0_i32_0 : i32, i32
  }
  func.func @transform_12(%arg0: i32, %arg1: i32) -> (i32, i32) {
    %c0_i32 = arith.constant 0 : i32
    %c0_i32_0 = arith.constant 0 : i32
    %c0_i32_1 = arith.constant 0 : i32
    return %c0_i32, %c0_i32_0 : i32, i32
  }
  func.func @transform_13(%arg0: i32, %arg1: i32) -> (i32, i32) {
    %c0_i32 = arith.constant 0 : i32
    %c0_i32_0 = arith.constant 0 : i32
    %c0_i32_1 = arith.constant 0 : i32
    return %c0_i32, %c0_i32_0 : i32, i32
  }
  func.func @transform_14(%arg0: i32, %arg1: i32) -> (i32, i32, i32, i32) {
    %c0_i32 = arith.constant 0 : i32
    %c0_i32_0 = arith.constant 0 : i32
    %c0_i32_1 = arith.constant 0 : i32
    return %arg0, %arg1, %c0_i32, %c0_i32_0 : i32, i32, i32, i32
  }
}

</mosaic_0001>

<llo_original>
// kernel: tpu_custom_call.1
$region0: #{tpu_custom_call.1}
  #allocation0 [shape = 'u32[]', space=smem, size = 0x4, offset = 0x4, fixed_abs, tag = 'smem constant byte address 0x4 - core index']
  #allocation1 [shape = 'u32[144,128]{1,0:T(1,128)}', space=vmem, size = 0x12000, scoped, tag = 'internal scratch']
  #allocation2 [shape = 'f32[96,8]{1,0:T(8,128)}', space=vmem, size = 0xc000, scoped, tag = 'scratch operand']
  %s0 = inlined_call_operand.hbm [shape: f32[2,8,8,16], index: 0, kind: input, shape index: {}]
  %s1 = inlined_call_operand.hbm [shape: f32[2,8,8,16], index: 1, kind: input, shape index: {}]
  %s2 = inlined_call_operand.hbm [shape: f32[2,8,8,16], index: 2, kind: input, shape index: {}]
  %s3 = inlined_call_operand.vmem [shape: f32[1,16], index: 3, kind: input, shape index: {}]
  %s4 = inlined_call_operand.vmem [shape: f32[1,16], index: 4, kind: input, shape index: {}]
  %s5 = inlined_call_operand.vmem [shape: bf16[16,8], index: 5, kind: input, shape index: {}]
  %s6 = inlined_call_operand.vmem [shape: f32[1,8], index: 6, kind: input, shape index: {}]
  %s7 = inlined_call_operand.vmem [shape: f32[1,8], index: 7, kind: input, shape index: {}]
  %s8 = inlined_call_operand.hbm [shape: bf16[3,3,8,8], index: 8, kind: input, shape index: {}]
  %s9 = inlined_call_operand.vmem [shape: f32[1,8], index: 9, kind: input, shape index: {}]
  %s10 = inlined_call_operand.vmem [shape: f32[1,8], index: 10, kind: input, shape index: {}]
  %s11 = inlined_call_operand.vmem [shape: bf16[8,32], index: 11, kind: input, shape index: {}]
  %s12 = inlined_call_operand.vmem [shape: f32[1,32], index: 12, kind: input, shape index: {}]
  %s13 = inlined_call_operand.vmem [shape: bf16[16,32], index: 13, kind: input, shape index: {}]
  %s14 = inlined_call_operand.hbm [shape: f32[2,8,8,32], index: 14, kind: output, shape index: {}]
  %s15 = sld [smem:[#allocation0]]
  $region105: #{tpu_custom_call.1} parent=0
    _
  %s17 = ssub.s32 1, %s15
  %s18 = scalar_select 0, %s17, %s15
  $region1: #{tpu_custom_call.1} parent=0
    #allocation3 [shape = 'u8[65536]{0}', space=vmem, size = 0x10000, scoped, tag = 'input window, operand 0']
    #allocation4 [shape = 's32[2]{0}', space=sflag, size = 0x8, scoped, tag = 'scoped memory for tpu_custom_call.1']
    #allocation5 [shape = 's32[2]{0}', space=sflag, size = 0x8, scoped, tag = 'scoped memory for tpu_custom_call.1']
    #allocation6 [shape = 'u8[8192]{0}', space=vmem, size = 0x2000, scoped, tag = 'input window, operand 1']
    #allocation7 [shape = 's32[2]{0}', space=sflag, size = 0x8, scoped, tag = 'scoped memory for tpu_custom_call.1']
    #allocation8 [shape = 'u8[8192]{0}', space=vmem, size = 0x2000, scoped, tag = 'input window, operand 2']
    #allocation9 [shape = 'u8[18432]{0}', space=vmem, size = 0x4800, scoped, tag = 'input window, operand 8, single buffered']
    #allocation10 [shape = 's32[1]{0}', space=sflag, size = 0x4, scoped, tag = 'scoped memory for tpu_custom_call.1']
    #allocation11 [shape = 'u8[65536]{0}', space=vmem, size = 0x10000, scoped, tag = 'output window, operand 0']
    %19 = vsyncpa [#allocation4], 0
    %s20 = scalar_lea.sflag [#allocation4], 1
    %21 = vsyncpa %s20, 0
    %22 = vsyncpa [#allocation7], 0
    %s23 = scalar_lea.sflag [#allocation7], 1
    %24 = vsyncpa %s23, 0
    %25 = vsyncpa [#allocation10], 0
    %26 = vsyncpa [#allocation5], 0
    %s27 = scalar_lea.sflag [#allocation5], 1
    %28 = vsyncpa %s27, 0
    loop: start=0, step=1, limit=4
    $region2: #{tpu_custom_call.1} parent=1 // loop_pre_header
      _
    $region3: #{tpu_custom_call.1} parent=1 // loop_header
      %s30 = sphi 0, %s34
      %p31 = scmp.ge.s32.totalorder %s30, 4
      %s37 = sphi 0, %s49
      %s38 = sphi 0, %s45
      %s39 = sphi 0, %s37
      %s40 = sphi 0, %s38
      %s41 = sphi 0, %s39
      %s42 = sphi 0, %s40
      %s54 = sphi 0, %s56
      %s57 = sphi 0, %s54
      %s58 = sphi 0, %s57
      %s74 = sphi 0, %s58
      %s90 = sphi 0, %s92
      %s93 = sphi 0, %s90
      %s94 = sphi 0, %s93
      %s110 = sphi 0, %s94
      %s126 = sphi 0, %s128
      %s129 = sphi 0, %s126
      %s130 = sphi 0, %s129
      %s146 = sphi 0, %s130
      %s150 = sphi 0, %s150
      %s152 = sphi 0, %s150
      %s153 = sphi 0, %s152
      %s167 = sphi 0, %s153
      %s171 = sphi 0, %s171
      %s173 = sphi 0, %s171
      %s174 = sphi 0, %s173
      %s188 = sphi 0, %s174
      %s192 = sphi 0, %s192
      %s194 = sphi 0, %s192
      %s195 = sphi 0, %s194
      %s209 = sphi 0, %s195
      %s213 = sphi 0, %s213
      %s215 = sphi 0, %s213
      %s216 = sphi 0, %s215
      %s230 = sphi 0, %s216
      %s234 = sphi 0, %s234
      %s236 = sphi 0, %s234
      %s237 = sphi 0, %s236
      %s251 = sphi 0, %s237
      %s255 = sphi 0, %s255
      %s257 = sphi 0, %s255
      %s258 = sphi 0, %s257
      %s272 = sphi 0, %s258
      %s276 = sphi 0, %s276
      %s278 = sphi 0, %s276
      %s279 = sphi 0, %s278
      %s293 = sphi 0, %s279
      %s297 = sphi 0, %s297
      %s299 = sphi 0, %s297
      %s300 = sphi 0, %s299
      %s314 = sphi 0, %s300
      %s318 = sphi 0, %s318
      %s320 = sphi 0, %s318
      %s321 = sphi 0, %s320
      %s335 = sphi 0, %s321
      %s339 = sphi 0, %s339
      %s341 = sphi 0, %s339
      %s342 = sphi 0, %s341
      %s356 = sphi 0, %s342
      %s360 = sphi 0, %s360
      %s362 = sphi 0, %s360
      %s363 = sphi 0, %s362
      %s377 = sphi 0, %s363
      %s385 = sphi 0, %s387
      %s388 = sphi 0, %s385
      %s389 = sphi 0, %s388
      %s405 = sphi 0, %s389
    $region4: #{tpu_custom_call.1} parent=1 // loop_header_branch
      %33 = sbr.rel (%p31) target = $region8
    $region5: #{tpu_custom_call.1} parent=1 // loop_body
      %s35 = ssub.s32 %s30, 1
      %s36 = ssub.s32 %s30, 2
      %s43 = sadd.s32 1, %s38
      %p44 = scmp.ge.s32.totalorder %s43, 1
      %s45 = scalar_select %p44, 0, %s43
      %s46 = sadd.s32 1, %s37
      %s47 = scalar_select %p44, %s46, %s37
      %p48 = scmp.ge.s32.totalorder %s47, 2
      %s49 = scalar_select %p48, 0, %s47
      %s50 = ssub.s32 %s37, %s49
      %s51 = ssub.s32 %s38, %s45
      %s52 = sor.u32 %s50, %s51
      %p53 = scmp.eq.s32.totalorder %s52, 0
      %s55 = sadd.s32 %s54, 1
      %s56 = scalar_select %p53, %s54, %s55
      %p59 = pneg %p53
      %p60 = scmp.eq.s32.totalorder %s30, 1
      %p61 = por %p59, %p60
      %p62 = scmp.ne.s32.totalorder %s54, %s57
      %p63 = scmp.eq.s32.totalorder %s30, 0
      %p64 = por %p62, %p63
      %p65 = scmp.ne.s32.totalorder %s54, %s57
      %p66 = scmp.eq.s32.totalorder %s35, 1
      %p67 = por %p65, %p66
      %p68 = scmp.ne.s32.totalorder %s57, %s58
      %p69 = scmp.eq.s32.totalorder %s35, 0
      %p70 = por %p68, %p69
      %p71 = scmp.ne.s32.totalorder %s57, %s58
      %p72 = scmp.eq.s32.totalorder %s36, 1
      %p73 = por %p71, %p72
      %p75 = scmp.ne.s32.totalorder %s58, %s74
      %p76 = scmp.eq.s32.totalorder %s36, 0
      %p77 = por %p75, %p76
      %s78 = smul.u32 %s38, 8
      %s79 = ssub.s32 %s78, 1
      %p80 = scmp.gt.s32.totalorder %s79, 0
      %s81 = scalar_select %p80, %s79, 0
      %s82 = smul.u32 %s45, 8
      %s83 = ssub.s32 %s82, 1
      %p84 = scmp.gt.s32.totalorder %s83, 0
      %s85 = scalar_select %p84, %s83, 0
      %s86 = ssub.s32 %s37, %s49
      %s87 = ssub.s32 %s81, %s85
      %s88 = sor.u32 %s86, %s87
      %p89 = scmp.eq.s32.totalorder %s88, 0
      %s91 = sadd.s32 %s90, 1
      %s92 = scalar_select %p89, %s90, %s91
      %p95 = pneg %p89
      %p96 = scmp.eq.s32.totalorder %s30, 1
      %p97 = por %p95, %p96
      %p98 = scmp.ne.s32.totalorder %s90, %s93
      %p99 = scmp.eq.s32.totalorder %s30, 0
      %p100 = por %p98, %p99
      %p101 = scmp.ne.s32.totalorder %s90, %s93
      %p102 = scmp.eq.s32.totalorder %s35, 1
      %p103 = por %p101, %p102
      %p104 = scmp.ne.s32.totalorder %s93, %s94
      %p105 = scmp.eq.s32.totalorder %s35, 0
      %p106 = por %p104, %p105
      %p107 = scmp.ne.s32.totalorder %s93, %s94
      %p108 = scmp.eq.s32.totalorder %s36, 1
      %p109 = por %p107, %p108
      %p111 = scmp.ne.s32.totalorder %s94, %s110
      %p112 = scmp.eq.s32.totalorder %s36, 0
      %p113 = por %p111, %p112
      %s114 = smul.u32 %s38, 8
      %s115 = sadd.s32 %s114, 8
      %p116 = scmp.lt.s32.totalorder %s115, 7
      %s117 = scalar_select %p116, %s115, 7
      %s118 = smul.u32 %s45, 8
      %s119 = sadd.s32 %s118, 8
      %p120 = scmp.lt.s32.totalorder %s119, 7
      %s121 = scalar_select %p120, %s119, 7
      %s122 = ssub.s32 %s37, %s49
      %s123 = ssub.s32 %s117, %s121
      %s124 = sor.u32 %s122, %s123
      %p125 = scmp.eq.s32.totalorder %s124, 0
      %s127 = sadd.s32 %s126, 1
      %s128 = scalar_select %p125, %s126, %s127
      %p131 = pneg %p125
      %p132 = scmp.eq.s32.totalorder %s30, 1
      %p133 = por %p131, %p132
      %p134 = scmp.ne.s32.totalorder %s126, %s129
      %p135 = scmp.eq.s32.totalorder %s30, 0
      %p136 = por %p134, %p135
      %p137 = scmp.ne.s32.totalorder %s126, %s129
      %p138 = scmp.eq.s32.totalorder %s35, 1
      %p139 = por %p137, %p138
      %p140 = scmp.ne.s32.totalorder %s129, %s130
      %p141 = scmp.eq.s32.totalorder %s35, 0
      %p142 = por %p140, %p141
      %p143 = scmp.ne.s32.totalorder %s129, %s130
      %p144 = scmp.eq.s32.totalorder %s36, 1
      %p145 = por %p143, %p144
      %p147 = scmp.ne.s32.totalorder %s130, %s146
      %p148 = scmp.eq.s32.totalorder %s36, 0
      %p149 = por %p147, %p148
      %s151 = sadd.s32 %s150, 1
      %p154 = scmp.eq.s32.totalorder %s30, 1
      %p155 = scmp.ne.s32.totalorder %s150, %s152
      %p156 = scmp.eq.s32.totalorder %s30, 0
      %p157 = por %p155, %p156
      %p158 = scmp.ne.s32.totalorder %s150, %s152
      %p159 = scmp.eq.s32.totalorder %s35, 1
      %p160 = por %p158, %p159
      %p161 = scmp.ne.s32.totalorder %s152, %s153
      %p162 = scmp.eq.s32.totalorder %s35, 0
      %p163 = por %p161, %p162
      %p164 = scmp.ne.s32.totalorder %s152, %s153
      %p165 = scmp.eq.s32.totalorder %s36, 1
      %p166 = por %p164, %p165
      %p168 = scmp.ne.s32.totalorder %s153, %s167
      %p169 = scmp.eq.s32.totalorder %s36, 0
      %p170 = por %p168, %p169
      %s172 = sadd.s32 %s171, 1
      %p175 = scmp.eq.s32.totalorder %s30, 1
      %p176 = scmp.ne.s32.totalorder %s171, %s173
      %p177 = scmp.eq.s32.totalorder %s30, 0
      %p178 = por %p176, %p177
      %p179 = scmp.ne.s32.totalorder %s171, %s173
      %p180 = scmp.eq.s32.totalorder %s35, 1
      %p181 = por %p179, %p180
      %p182 = scmp.ne.s32.totalorder %s173, %s174
      %p183 = scmp.eq.s32.totalorder %s35, 0
      %p184 = por %p182, %p183
      %p185 = scmp.ne.s32.totalorder %s173, %s174
      %p186 = scmp.eq.s32.totalorder %s36, 1
      %p187 = por %p185, %p186
      %p189 = scmp.ne.s32.totalorder %s174, %s188
      %p190 = scmp.eq.s32.totalorder %s36, 0
      %p191 = por %p189, %p190
      %s193 = sadd.s32 %s192, 1
      %p196 = scmp.eq.s32.totalorder %s30, 1
      %p197 = scmp.ne.s32.totalorder %s192, %s194
      %p198 = scmp.eq.s32.totalorder %s30, 0
      %p199 = por %p197, %p198
      %p200 = scmp.ne.s32.totalorder %s192, %s194
      %p201 = scmp.eq.s32.totalorder %s35, 1
      %p202 = por %p200, %p201
      %p203 = scmp.ne.s32.totalorder %s194, %s195
      %p204 = scmp.eq.s32.totalorder %s35, 0
      %p205 = por %p203, %p204
      %p206 = scmp.ne.s32.totalorder %s194, %s195
      %p207 = scmp.eq.s32.totalorder %s36, 1
      %p208 = por %p206, %p207
      %p210 = scmp.ne.s32.totalorder %s195, %s209
      %p211 = scmp.eq.s32.totalorder %s36, 0
      %p212 = por %p210, %p211
      %s214 = sadd.s32 %s213, 1
      %p217 = scmp.eq.s32.totalorder %s30, 1
      %p218 = scmp.ne.s32.totalorder %s213, %s215
      %p219 = scmp.eq.s32.totalorder %s30, 0
      %p220 = por %p218, %p219
      %p221 = scmp.ne.s32.totalorder %s213, %s215
      %p222 = scmp.eq.s32.totalorder %s35, 1
      %p223 = por %p221, %p222
      %p224 = scmp.ne.s32.totalorder %s215, %s216
      %p225 = scmp.eq.s32.totalorder %s35, 0
      %p226 = por %p224, %p225
      %p227 = scmp.ne.s32.totalorder %s215, %s216
      %p228 = scmp.eq.s32.totalorder %s36, 1
      %p229 = por %p227, %p228
      %p231 = scmp.ne.s32.totalorder %s216, %s230
      %p232 = scmp.eq.s32.totalorder %s36, 0
      %p233 = por %p231, %p232
      %s235 = sadd.s32 %s234, 1
      %p238 = scmp.eq.s32.totalorder %s30, 1
      %p239 = scmp.ne.s32.totalorder %s234, %s236
      %p240 = scmp.eq.s32.totalorder %s30, 0
      %p241 = por %p239, %p240
      %p242 = scmp.ne.s32.totalorder %s234, %s236
      %p243 = scmp.eq.s32.totalorder %s35, 1
      %p244 = por %p242, %p243
      %p245 = scmp.ne.s32.totalorder %s236, %s237
      %p246 = scmp.eq.s32.totalorder %s35, 0
      %p247 = por %p245, %p246
      %p248 = scmp.ne.s32.totalorder %s236, %s237
      %p249 = scmp.eq.s32.totalorder %s36, 1
      %p250 = por %p248, %p249
      %p252 = scmp.ne.s32.totalorder %s237, %s251
      %p253 = scmp.eq.s32.totalorder %s36, 0
      %p254 = por %p252, %p253
      %s256 = sadd.s32 %s255, 1
      %p259 = scmp.eq.s32.totalorder %s30, 1
      %p260 = scmp.ne.s32.totalorder %s255, %s257
      %p261 = scmp.eq.s32.totalorder %s30, 0
      %p262 = por %p260, %p261
      %p263 = scmp.ne.s32.totalorder %s255, %s257
      %p264 = scmp.eq.s32.totalorder %s35, 1
      %p265 = por %p263, %p264
      %p266 = scmp.ne.s32.totalorder %s257, %s258
      %p267 = scmp.eq.s32.totalorder %s35, 0
      %p268 = por %p266, %p267
      %p269 = scmp.ne.s32.totalorder %s257, %s258
      %p270 = scmp.eq.s32.totalorder %s36, 1
      %p271 = por %p269, %p270
      %p273 = scmp.ne.s32.totalorder %s258, %s272
      %p274 = scmp.eq.s32.totalorder %s36, 0
      %p275 = por %p273, %p274
      %s277 = sadd.s32 %s276, 1
      %p280 = scmp.eq.s32.totalorder %s30, 1
      %p281 = scmp.ne.s32.totalorder %s276, %s278
      %p282 = scmp.eq.s32.totalorder %s30, 0
      %p283 = por %p281, %p282
      %p284 = scmp.ne.s32.totalorder %s276, %s278
      %p285 = scmp.eq.s32.totalorder %s35, 1
      %p286 = por %p284, %p285
      %p287 = scmp.ne.s32.totalorder %s278, %s279
      %p288 = scmp.eq.s32.totalorder %s35, 0
      %p289 = por %p287, %p288
      %p290 = scmp.ne.s32.totalorder %s278, %s279
      %p291 = scmp.eq.s32.totalorder %s36, 1
      %p292 = por %p290, %p291
      %p294 = scmp.ne.s32.totalorder %s279, %s293
      %p295 = scmp.eq.s32.totalorder %s36, 0
      %p296 = por %p294, %p295
      %s298 = sadd.s32 %s297, 1
      %p301 = scmp.eq.s32.totalorder %s30, 1
      %p302 = scmp.ne.s32.totalorder %s297, %s299
      %p303 = scmp.eq.s32.totalorder %s30, 0
      %p304 = por %p302, %p303
      %p305 = scmp.ne.s32.totalorder %s297, %s299
      %p306 = scmp.eq.s32.totalorder %s35, 1
      %p307 = por %p305, %p306
      %p308 = scmp.ne.s32.totalorder %s299, %s300
      %p309 = scmp.eq.s32.totalorder %s35, 0
      %p310 = por %p308, %p309
      %p311 = scmp.ne.s32.totalorder %s299, %s300
      %p312 = scmp.eq.s32.totalorder %s36, 1
      %p313 = por %p311, %p312
      %p315 = scmp.ne.s32.totalorder %s300, %s314
      %p316 = scmp.eq.s32.totalorder %s36, 0
      %p317 = por %p315, %p316
      %s319 = sadd.s32 %s318, 1
      %p322 = scmp.eq.s32.totalorder %s30, 1
      %p323 = scmp.ne.s32.totalorder %s318, %s320
      %p324 = scmp.eq.s32.totalorder %s30, 0
      %p325 = por %p323, %p324
      %p326 = scmp.ne.s32.totalorder %s318, %s320
      %p327 = scmp.eq.s32.totalorder %s35, 1
      %p328 = por %p326, %p327
      %p329 = scmp.ne.s32.totalorder %s320, %s321
      %p330 = scmp.eq.s32.totalorder %s35, 0
      %p331 = por %p329, %p330
      %p332 = scmp.ne.s32.totalorder %s320, %s321
      %p333 = scmp.eq.s32.totalorder %s36, 1
      %p334 = por %p332, %p333
      %p336 = scmp.ne.s32.totalorder %s321, %s335
      %p337 = scmp.eq.s32.totalorder %s36, 0
      %p338 = por %p336, %p337
      %s340 = sadd.s32 %s339, 1
      %p343 = scmp.eq.s32.totalorder %s30, 1
      %p344 = scmp.ne.s32.totalorder %s339, %s341
      %p345 = scmp.eq.s32.totalorder %s30, 0
      %p346 = por %p344, %p345
      %p347 = scmp.ne.s32.totalorder %s339, %s341
      %p348 = scmp.eq.s32.totalorder %s35, 1
      %p349 = por %p347, %p348
      %p350 = scmp.ne.s32.totalorder %s341, %s342
      %p351 = scmp.eq.s32.totalorder %s35, 0
      %p352 = por %p350, %p351
      %p353 = scmp.ne.s32.totalorder %s341, %s342
      %p354 = scmp.eq.s32.totalorder %s36, 1
      %p355 = por %p353, %p354
      %p357 = scmp.ne.s32.totalorder %s342, %s356
      %p358 = scmp.eq.s32.totalorder %s36, 0
      %p359 = por %p357, %p358
      %s361 = sadd.s32 %s360, 1
      %p364 = scmp.eq.s32.totalorder %s30, 1
      %p365 = scmp.ne.s32.totalorder %s360, %s362
      %p366 = scmp.eq.s32.totalorder %s30, 0
      %p367 = por %p365, %p366
      %p368 = scmp.ne.s32.totalorder %s360, %s362
      %p369 = scmp.eq.s32.totalorder %s35, 1
      %p370 = por %p368, %p369
      %p371 = scmp.ne.s32.totalorder %s362, %s363
      %p372 = scmp.eq.s32.totalorder %s35, 0
      %p373 = por %p371, %p372
      %p374 = scmp.ne.s32.totalorder %s362, %s363
      %p375 = scmp.eq.s32.totalorder %s36, 1
      %p376 = por %p374, %p375
      %p378 = scmp.ne.s32.totalorder %s363, %s377
      %p379 = scmp.eq.s32.totalorder %s36, 0
      %p380 = por %p378, %p379
      %s381 = ssub.s32 %s37, %s49
      %s382 = ssub.s32 %s38, %s45
      %s383 = sor.u32 %s381, %s382
      %p384 = scmp.eq.s32.totalorder %s383, 0
      %s386 = sadd.s32 %s385, 1
      %s387 = scalar_select %p384, %s385, %s386
      %p390 = pneg %p384
      %p391 = scmp.eq.s32.totalorder %s30, 1
      %p392 = por %p390, %p391
      %p393 = scmp.ne.s32.totalorder %s385, %s388
      %p394 = scmp.eq.s32.totalorder %s30, 0
      %p395 = por %p393, %p394
      %p396 = scmp.ne.s32.totalorder %s385, %s388
      %p397 = scmp.eq.s32.totalorder %s35, 1
      %p398 = por %p396, %p397
      %p399 = scmp.ne.s32.totalorder %s388, %s389
      %p400 = scmp.eq.s32.totalorder %s35, 0
      %p401 = por %p399, %p400
      %p402 = scmp.ne.s32.totalorder %s388, %s389
      %p403 = scmp.eq.s32.totalorder %s36, 1
      %p404 = por %p402, %p403
      %p406 = scmp.ne.s32.totalorder %s389, %s405
      %p407 = scmp.eq.s32.totalorder %s36, 0
      %p408 = por %p406, %p407
      %p409 = scmp.le.s32.totalorder 1, %s30
      %p410 = scmp.lt.s32.totalorder %s30, 3
      %p411 = pnand %p409, %p410
      %p412 = pneg %p411
      // Predicated region
      $region9: #{tpu_custom_call.1} parent=5 // pred_check
        _
      $region10: #{tpu_custom_call.1} parent=5 // pred_check_branch
        %414 = sbr.rel (%p411) target = $region12
      $region11: #{tpu_custom_call.1} parent=5 // pred_region
        %s415 = ssub.s32 %s30, 1
        // Predicated region
        $region13: #{tpu_custom_call.1} parent=11 // pred_check
          %p416 = pneg %p163
        $region14: #{tpu_custom_call.1} parent=11 // pred_check_branch
          %418 = sbr.rel (%p416) target = $region16
        $region15: #{tpu_custom_call.1} parent=11 // pred_region
          _
        $region16: #{tpu_custom_call.1} parent=11 // pred_fallthru
          _
        // Predicated region
        $region17: #{tpu_custom_call.1} parent=11 // pred_check
          %p419 = pneg %p184
        $region18: #{tpu_custom_call.1} parent=11 // pred_check_branch
          %421 = sbr.rel (%p419) target = $region20
        $region19: #{tpu_custom_call.1} parent=11 // pred_region
          _
        $region20: #{tpu_custom_call.1} parent=11 // pred_fallthru
          _
        // Predicated region
        $region21: #{tpu_custom_call.1} parent=11 // pred_check
          %p422 = pneg %p205
        $region22: #{tpu_custom_call.1} parent=11 // pred_check_branch
          %424 = sbr.rel (%p422) target = $region24
        $region23: #{tpu_custom_call.1} parent=11 // pred_region
          _
        $region24: #{tpu_custom_call.1} parent=11 // pred_fallthru
          _
        // Predicated region
        $region25: #{tpu_custom_call.1} parent=11 // pred_check
          %p425 = pneg %p226
        $region26: #{tpu_custom_call.1} parent=11 // pred_check_branch
          %427 = sbr.rel (%p425) target = $region28
        $region27: #{tpu_custom_call.1} parent=11 // pred_region
          _
        $region28: #{tpu_custom_call.1} parent=11 // pred_fallthru
          _
        // Predicated region
        $region29: #{tpu_custom_call.1} parent=11 // pred_check
          %p428 = pneg %p247
        $region30: #{tpu_custom_call.1} parent=11 // pred_check_branch
          %430 = sbr.rel (%p428) target = $region32
        $region31: #{tpu_custom_call.1} parent=11 // pred_region
          _
        $region32: #{tpu_custom_call.1} parent=11 // pred_fallthru
          _
        // Predicated region
        $region33: #{tpu_custom_call.1} parent=11 // pred_check
          %p431 = pneg %p268
        $region34: #{tpu_custom_call.1} parent=11 // pred_check_branch
          %433 = sbr.rel (%p431) target = $region36
        $region35: #{tpu_custom_call.1} parent=11 // pred_region
          %s435 = ssub.s32 576, 576
          %436 = vsyncadd [#allocation10], %s435
          %s437 = sshll.u32 [#allocation9], 4
          %s438 = int_to_ptr.vmem [resolvable:$true] %s437
          %443 = dma.hbm_to_vmem [thread:$0]  %s8, 576, %s438, [#allocation10], 64, 64, 4
        $region36: #{tpu_custom_call.1} parent=11 // pred_fallthru
          _
        // Predicated region
        $region37: #{tpu_custom_call.1} parent=11 // pred_check
          %p444 = pneg %p289
        $region38: #{tpu_custom_call.1} parent=11 // pred_check_branch
          %446 = sbr.rel (%p444) target = $region40
        $region39: #{tpu_custom_call.1} parent=11 // pred_region
          _
        $region40: #{tpu_custom_call.1} parent=11 // pred_fallthru
          _
        // Predicated region
        $region41: #{tpu_custom_call.1} parent=11 // pred_check
          %p447 = pneg %p310
        $region42: #{tpu_custom_call.1} parent=11 // pred_check_branch
          %449 = sbr.rel (%p447) target = $region44
        $region43: #{tpu_custom_call.1} parent=11 // pred_region
          _
        $region44: #{tpu_custom_call.1} parent=11 // pred_fallthru
          _
        // Predicated region
        $region45: #{tpu_custom_call.1} parent=11 // pred_check
          %p450 = pneg %p331
        $region46: #{tpu_custom_call.1} parent=11 // pred_check_branch
          %452 = sbr.rel (%p450) target = $region48
        $region47: #{tpu_custom_call.1} parent=11 // pred_region
          _
        $region48: #{tpu_custom_call.1} parent=11 // pred_fallthru
          _
        // Predicated region
        $region49: #{tpu_custom_call.1} parent=11 // pred_check
          %p453 = pneg %p352
        $region50: #{tpu_custom_call.1} parent=11 // pred_check_branch
          %455 = sbr.rel (%p453) target = $region52
        $region51: #{tpu_custom_call.1} parent=11 // pred_region
          _
        $region52: #{tpu_custom_call.1} parent=11 // pred_fallthru
          _
        // Predicated region
        $region53: #{tpu_custom_call.1} parent=11 // pred_check
          %p456 = pneg %p373
        $region54: #{tpu_custom_call.1} parent=11 // pred_check_branch
          %458 = sbr.rel (%p456) target = $region56
        $region55: #{tpu_custom_call.1} parent=11 // pred_region
          _
        $region56: #{tpu_custom_call.1} parent=11 // pred_fallthru
          _
      $region12: #{tpu_custom_call.1} parent=5 // pred_fallthru
        _
      %p459 = scmp.lt.s32.totalorder %s30, 2
      // Predicated region
      $region57: #{tpu_custom_call.1} parent=5 // pred_check
        %p460 = pneg %p459
      $region58: #{tpu_custom_call.1} parent=5 // pred_check_branch
        %462 = sbr.rel (%p460) target = $region60
      $region59: #{tpu_custom_call.1} parent=5 // pred_region
        // Predicated region
        $region61: #{tpu_custom_call.1} parent=59 // pred_check
          %p463 = pneg %p64
        $region62: #{tpu_custom_call.1} parent=59 // pred_check_branch
          %465 = sbr.rel (%p463) target = $region64
        $region63: #{tpu_custom_call.1} parent=59 // pred_region
          %s466 = sand.u32 %s54, 1
          %s467 = scalar_lea.sflag [#allocation4], %s466
          %s468 = sand.u32 %s54, 1
          %s469 = smul.addr %s468, 64
          %s470 = scalar_lea.vmem [#allocation3], %s469
          %s471 = smul.u32 8, %s38
          %s473 = ssub.s32 1024, 1024
          %474 = vsyncadd %s467, %s473
          %s475 = smul.addr %s37, 8
          %s476 = sadd.s32 %s471, %s475
          %s477 = smul.addr %s476, 128
          %s478 = scalar_lea.hbm %s0, %s477
          %s479 = sshll.u32 %s470, 4
          %s480 = int_to_ptr.vmem [resolvable:$true] %s479
          %485 = dma.hbm_to_vmem [thread:$0]  %s478, 1024, %s480, %s467, 128, 128, 8
        $region64: #{tpu_custom_call.1} parent=59 // pred_fallthru
          _
        // Predicated region
        $region65: #{tpu_custom_call.1} parent=59 // pred_check
          %p486 = pneg %p100
        $region66: #{tpu_custom_call.1} parent=59 // pred_check_branch
          %488 = sbr.rel (%p486) target = $region68
        $region67: #{tpu_custom_call.1} parent=59 // pred_region
          %s489 = sand.u32 %s30, 1
          %s490 = scalar_lea.sflag [#allocation7], %s489
          %s491 = sand.u32 %s90, 1
          %s492 = smul.addr %s491, 8
          %s493 = scalar_lea.vmem [#allocation6], %s492
          %s494 = smul.u32 %s38, 8
          %s495 = ssub.s32 %s494, 1
          %p496 = scmp.gt.s32.totalorder %s495, 0
          %s497 = scalar_select %p496, %s495, 0
          %s499 = ssub.s32 128, 128
          %500 = vsyncadd %s490, %s499
          %s501 = smul.addr %s37, 8
          %s502 = sadd.s32 %s497, %s501
          %s503 = smul.addr %s502, 128
          %s504 = scalar_lea.hbm %s1, %s503
          %s506 = sshll.u32 %s493, 4
          %s507 = int_to_ptr.vmem [resolvable:$true] %s506
          %509 = dma.hbm_to_vmem [thread:$0]  %s504, 128, %s507, %s490
        $region68: #{tpu_custom_call.1} parent=59 // pred_fallthru
          _
        // Predicated region
        $region69: #{tpu_custom_call.1} parent=59 // pred_check
          %p510 = pneg %p136
        $region70: #{tpu_custom_call.1} parent=59 // pred_check_branch
          %512 = sbr.rel (%p510) target = $region72
        $region71: #{tpu_custom_call.1} parent=59 // pred_region
          %s513 = sand.u32 %s30, 1
          %s514 = scalar_lea.sflag [#allocation7], %s513
          %s515 = sand.u32 %s126, 1
          %s516 = smul.addr %s515, 8
          %s517 = scalar_lea.vmem [#allocation8], %s516
          %s518 = smul.u32 %s38, 8
          %s519 = sadd.s32 %s518, 8
          %p520 = scmp.lt.s32.totalorder %s519, 7
          %s521 = scalar_select %p520, %s519, 7
          %s523 = ssub.s32 128, 128
          %524 = vsyncadd %s514, %s523
          %s525 = smul.addr %s37, 8
          %s526 = sadd.s32 %s521, %s525
          %s527 = smul.addr %s526, 128
          %s528 = scalar_lea.hbm %s2, %s527
          %s530 = sshll.u32 %s517, 4
          %s531 = int_to_ptr.vmem [resolvable:$true] %s530
          %533 = dma.hbm_to_vmem [thread:$0]  %s528, 128, %s531, %s514
        $region72: #{tpu_custom_call.1} parent=59 // pred_fallthru
          _
      $region60: #{tpu_custom_call.1} parent=5 // pred_fallthru
        _
      %p534 = scmp.le.s32.totalorder 1, %s30
      %p535 = scmp.lt.s32.totalorder %s30, 3
      %p536 = pnand %p534, %p535
      %p537 = pneg %p536
      // Predicated region
      $region73: #{tpu_custom_call.1} parent=5 // pred_check
        _
      $region74: #{tpu_custom_call.1} parent=5 // pred_check_branch
        %539 = sbr.rel (%p536) target = $region76
      $region75: #{tpu_custom_call.1} parent=5 // pred_region
        %s540 = ssub.s32 %s30, 1
        %s541 = sand.u32 %s57, 1
        %s542 = scalar_lea.sflag [#allocation4], %s541
        %s543 = sand.u32 %s57, 1
        %s544 = smul.addr %s543, 64
        %s545 = scalar_lea.vmem [#allocation3], %s544
        // Predicated region
        $region77: #{tpu_custom_call.1} parent=75 // pred_check
          %p546 = pneg %p70
        $region78: #{tpu_custom_call.1} parent=75 // pred_check_branch
          %548 = sbr.rel (%p546) target = $region80
        $region79: #{tpu_custom_call.1} parent=75 // pred_region
          %549 = dma.done %s542, 1024
        $region80: #{tpu_custom_call.1} parent=75 // pred_fallthru
          _
        %s550 = sand.u32 %s35, 1
        %s551 = scalar_lea.sflag [#allocation7], %s550
        %s552 = sand.u32 %s93, 1
        %s553 = smul.addr %s552, 8
        %s554 = scalar_lea.vmem [#allocation6], %s553
        // Predicated region
        $region81: #{tpu_custom_call.1} parent=75 // pred_check
          %p555 = pneg %p106
        $region82: #{tpu_custom_call.1} parent=75 // pred_check_branch
          %557 = sbr.rel (%p555) target = $region84
        $region83: #{tpu_custom_call.1} parent=75 // pred_region
          %558 = dma.done %s551, 128
        $region84: #{tpu_custom_call.1} parent=75 // pred_fallthru
          _
        %s559 = sand.u32 %s35, 1
        %s560 = scalar_lea.sflag [#allocation7], %s559
        %s561 = sand.u32 %s129, 1
        %s562 = smul.addr %s561, 8
        %s563 = scalar_lea.vmem [#allocation8], %s562
        // Predicated region
        $region85: #{tpu_custom_call.1} parent=75 // pred_check
          %p564 = pneg %p142
        $region86: #{tpu_custom_call.1} parent=75 // pred_check_branch
          %566 = sbr.rel (%p564) target = $region88
        $region87: #{tpu_custom_call.1} parent=75 // pred_region
          %567 = dma.done %s560, 128
        $region88: #{tpu_custom_call.1} parent=75 // pred_fallthru
          _
        // Predicated region
        $region89: #{tpu_custom_call.1} parent=75 // pred_check
          %p568 = pneg %p268
        $region90: #{tpu_custom_call.1} parent=75 // pred_check_branch
          %570 = sbr.rel (%p568) target = $region92
        $region91: #{tpu_custom_call.1} parent=75 // pred_region
          %571 = dma.done [#allocation10], 576
        $region92: #{tpu_custom_call.1} parent=75 // pred_fallthru
          _
        %s572 = sand.u32 %s57, 1
        %s573 = scalar_lea.sflag [#allocation4], %s572
        %s574 = sand.u32 %s57, 1
        %s575 = smul.addr %s574, 64
        %s576 = scalar_lea.vmem [#allocation3], %s575
        %p577 = pneg %p70
        %p578 = pneg %p67
        %s579 = sand.u32 %s35, 1
        %s580 = scalar_lea.sflag [#allocation7], %s579
        %s581 = sand.u32 %s93, 1
        %s582 = smul.addr %s581, 8
        %s583 = scalar_lea.vmem [#allocation6], %s582
        %p584 = pneg %p106
        %p585 = pneg %p103
        %s586 = sand.u32 %s35, 1
        %s587 = scalar_lea.sflag [#allocation7], %s586
        %s588 = sand.u32 %s129, 1
        %s589 = smul.addr %s588, 8
        %s590 = scalar_lea.vmem [#allocation8], %s589
        %p591 = pneg %p142
        %p592 = pneg %p139
        %p593 = pneg %p163
        %p594 = pneg %p160
        %p595 = pneg %p184
        %p596 = pneg %p181
        %p597 = pneg %p205
        %p598 = pneg %p202
        %p599 = pneg %p226
        %p600 = pneg %p223
        %p601 = pneg %p247
        %p602 = pneg %p244
        %p603 = pneg %p268
        %p604 = pneg %p265
        %p605 = pneg %p289
        %p606 = pneg %p286
        %p607 = pneg %p310
        %p608 = pneg %p307
        %p609 = pneg %p331
        %p610 = pneg %p328
        %p611 = pneg %p352
        %p612 = pneg %p349
        %p613 = pneg %p373
        %p614 = pneg %p370
        %p615 = pneg %p401
        %p616 = pneg %p398
        %s617 = sand.u32 %s388, 1
        %s618 = scalar_lea.sflag [#allocation5], %s617
        %s619 = sand.u32 %s388, 1
        %s620 = smul.addr %s619, 64
        %s621 = scalar_lea.vmem [#allocation11], %s620
        %s622 = smul.u32 8, %s40
        %s623 = smul.u32 %s40, 8
        %s624 = ssub.s32 %s623, 1
        %p625 = scmp.gt.s32.totalorder %s624, 0
        %s626 = scalar_select %p625, %s624, 0
        %s627 = smul.u32 %s40, 8
        %s628 = sadd.s32 %s627, 8
        %p629 = scmp.lt.s32.totalorder %s628, 7
        %s630 = scalar_select %p629, %s628, 7
        %s631 = smul.u32 8, %s40
        %v633 = vld [vmem:[%s3] sm:$0x1]
        %v634 = vld [vmem:[%s4] sm:$0x1]
        %v635 = vld [vmem:[%s6] sm:$0x1]
        %v636 = vld [vmem:[%s7] sm:$0x1]
        %v637 = vld [vmem:[%s5] sm:$0xf]
        %v638 = vld [vmem:[%s5 + $0x4] sm:$0xf]
        %v639 = vld [vmem:[%s545] sm:$0xff]
        %v640 = vld [vmem:[%s545 + $0x8] sm:$0xff]
        %v641 = vld [vmem:[%s545 + $0x10] sm:$0xff]
        %v642 = vld [vmem:[%s545 + $0x18] sm:$0xff]
        %v643 = vld [vmem:[%s545 + $0x20] sm:$0xff]
        %v644 = vld [vmem:[%s545 + $0x28] sm:$0xff]
        %v645 = vld [vmem:[%s545 + $0x30] sm:$0xff]
        %v646 = vld [vmem:[%s545 + $0x38] sm:$0xff]
        %v648 = vlaneseq
        %v649 = vshrl.u32 %v648, 7
        %v650 = vsub.s32 0, %v649
        %v651 = vrot.slane %v633, %v650
        %v653 = vmul.f32 %v639, %v651
        %v654 = vmul.f32 %v640, %v651
        %v655 = vmul.f32 %v641, %v651
        %v656 = vmul.f32 %v642, %v651
        %v657 = vmul.f32 %v643, %v651
        %v658 = vmul.f32 %v644, %v651
        %v659 = vmul.f32 %v645, %v651
        %v660 = vmul.f32 %v646, %v651
        %v662 = vlaneseq
        %v663 = vshrl.u32 %v662, 7
        %v664 = vsub.s32 0, %v663
        %v665 = vrot.slane %v634, %v664
        %v667 = vadd.f32 %v653, %v665
        %v668 = vadd.f32 %v654, %v665
        %v669 = vadd.f32 %v655, %v665
        %v670 = vadd.f32 %v656, %v665
        %v671 = vadd.f32 %v657, %v665
        %v672 = vadd.f32 %v658, %v665
        %v673 = vadd.f32 %v659, %v665
        %v674 = vadd.f32 %v660, %v665
        %v675 = vmax.f32 %v667, 0.0
        %v676 = vmax.f32 %v668, 0.0
        %v677 = vmax.f32 %v669, 0.0
        %v678 = vmax.f32 %v670, 0.0
        %v679 = vmax.f32 %v671, 0.0
        %v680 = vmax.f32 %v672, 0.0
        %v681 = vmax.f32 %v673, 0.0
        %v682 = vmax.f32 %v674, 0.0
        %v683 = vpack.c.bf16 %v676, %v675
        %v684 = vpack.c.bf16 %v678, %v677
        %v685 = vpack.c.bf16 %v680, %v679
        %v686 = vpack.c.bf16 %v682, %v681
        %v689 = vunpack.c.l.b16 %v637
        %v690 = vunpack.c.l.b16 %v638
        %v691 = vpack.c.b16 %v690, %v689
        %vm693 = vcmask 130048
        %v695 = vsel %vm693, %v683, 0
        %v698 = vsel %vm693, %v684, 0
        %v701 = vsel %vm693, %v685, 0
        %v704 = vsel %vm693, %v686, 0
        %706 = vmatprep.subr.bf16.mxu0 0
        %707 = vmatpush1.bf16.msra.mxu0 0
        %708 = vmatprep.subr.bf16.mxu0 0
        %709 = vmatpush1.bf16.msra.mxu0 0
        %710 = vmatprep.subr.bf16.mxu0 0
        %711 = vmatpush1.bf16.msra.mxu0 0
        %712 = vmatprep.subr.bf16.mxu0 0
        %713 = vmatpush1.bf16.msra.mxu0 0
        %714 = vmatprep.subr.bf16.mxu0 0
        %715 = vmatpush1.bf16.msra.mxu0 0
        %716 = vmatprep.subr.bf16.mxu0 0
        %717 = vmatpush1.bf16.msra.mxu0 0
        %718 = vmatprep.subr.bf16.mxu0 0
        %719 = vmatpush1.bf16.msra.mxu0 0
        %720 = vmatprep.subr.bf16.mxu0 0
        %721 = vmatpush1.bf16.msra.mxu0 %v691
        %722 = vmatprep.subr.bf16.mxu0 0
        %723 = vmatpush2.bf16.msra.mxu0 0
        %724 = vmatprep.subr.bf16.mxu0 0
        %725 = vmatpush2.bf16.msra.mxu0 0
        %726 = vmatprep.subr.bf16.mxu0 0
        %727 = vmatpush2.bf16.msra.mxu0 0
        %728 = vmatprep.subr.bf16.mxu0 0
        %729 = vmatpush2.bf16.msra.mxu0 0
        %730 = vmatprep.subr.bf16.mxu0 0
        %731 = vmatpush2.bf16.msra.mxu0 0
        %732 = vmatprep.subr.bf16.mxu0 0
        %733 = vmatpush2.bf16.msra.mxu0 0
        %734 = vmatprep.subr.bf16.mxu0 0
        %735 = vmatpush2.bf16.msra.mxu0 0
        %736 = vmatprep.subr.bf16.mxu0 0
        %737 = vmatpush2.bf16.msra.mxu0 0
        %738 = vmatprep.mubr.bf16.mxu0 0
        %739 = vmatmul.mubr.bf16.gmra.mxu0 %v695
        %v740 = vpop.f32.mrf.mxu0
        %v741 = vadd.f32 0.0, %v740
        %v742 = vpop.f32.mrf.mxu0
        %v743 = vpop.f32.mrf.mxu0
        %v744 = vadd.f32 0.0, %v743
        %v745 = vpop.f32.mrf.mxu0
        %746 = vmatprep.mubr.bf16.mxu0 0
        %747 = vmatmul.mubr.bf16.gmra.mxu0 %v698
        %v748 = vpop.f32.mrf.mxu0
        %v749 = vadd.f32 0.0, %v748
        %v750 = vpop.f32.mrf.mxu0
        %v751 = vpop.f32.mrf.mxu0
        %v752 = vadd.f32 0.0, %v751
        %v753 = vpop.f32.mrf.mxu0
        %754 = vmatprep.mubr.bf16.mxu0 0
        %755 = vmatmul.mubr.bf16.gmra.mxu0 %v701
        %v756 = vpop.f32.mrf.mxu0
        %v757 = vadd.f32 0.0, %v756
        %v758 = vpop.f32.mrf.mxu0
        %v759 = vpop.f32.mrf.mxu0
        %v760 = vadd.f32 0.0, %v759
        %v761 = vpop.f32.mrf.mxu0
        %762 = vmatprep.mubr.bf16.mxu0 0
        %763 = vmatmul.mubr.bf16.gmra.mxu0 %v704
        %v764 = vpop.f32.mrf.mxu0
        %v765 = vadd.f32 0.0, %v764
        %v766 = vpop.f32.mrf.mxu0
        %v767 = vpop.f32.mrf.mxu0
        %v768 = vadd.f32 0.0, %v767
        %v769 = vpop.f32.mrf.mxu0
        %770 = vdwg.mxu0
        %v772 = vlaneseq
        %v773 = vshrl.u32 %v772, 7
        %v774 = vsub.s32 0, %v773
        %v775 = vrot.slane %v635, %v774
        %v777 = vmul.f32 %v741, %v775
        %v778 = vmul.f32 %v744, %v775
        %v779 = vmul.f32 %v749, %v775
        %v780 = vmul.f32 %v752, %v775
        %v781 = vmul.f32 %v757, %v775
        %v782 = vmul.f32 %v760, %v775
        %v783 = vmul.f32 %v765, %v775
        %v784 = vmul.f32 %v768, %v775
        %v786 = vlaneseq
        %v787 = vshrl.u32 %v786, 7
        %v788 = vsub.s32 0, %v787
        %v789 = vrot.slane %v636, %v788
        %v791 = vadd.f32 %v777, %v789
        %v792 = vadd.f32 %v778, %v789
        %v793 = vadd.f32 %v779, %v789
        %v794 = vadd.f32 %v780, %v789
        %v795 = vadd.f32 %v781, %v789
        %v796 = vadd.f32 %v782, %v789
        %v797 = vadd.f32 %v783, %v789
        %v798 = vadd.f32 %v784, %v789
        %v799 = vmax.f32 %v791, 0.0
        %v800 = vmax.f32 %v792, 0.0
        %v801 = vmax.f32 %v793, 0.0
        %v802 = vmax.f32 %v794, 0.0
        %v803 = vmax.f32 %v795, 0.0
        %v804 = vmax.f32 %v796, 0.0
        %v805 = vmax.f32 %v797, 0.0
        %v806 = vmax.f32 %v798, 0.0
        %v807 = vld [vmem:[%s554] sm:$0xff]
        %v808 = vmul.f32 %v807, %v651
        %v809 = vadd.f32 %v808, %v665
        %v810 = vmax.f32 %v809, 0.0
        %v811 = vpack.c.bf16 %v810, %v810
        %v813 = vsel %vm693, %v811, 0
        %815 = vmatprep.subr.bf16.mxu0 0
        %816 = vmatpush1.bf16.msra.mxu0 0
        %817 = vmatprep.subr.bf16.mxu0 0
        %818 = vmatpush1.bf16.msra.mxu0 0
        %819 = vmatprep.subr.bf16.mxu0 0
        %820 = vmatpush1.bf16.msra.mxu0 0
        %821 = vmatprep.subr.bf16.mxu0 0
        %822 = vmatpush1.bf16.msra.mxu0 0
        %823 = vmatprep.subr.bf16.mxu0 0
        %824 = vmatpush1.bf16.msra.mxu0 0
        %825 = vmatprep.subr.bf16.mxu0 0
        %826 = vmatpush1.bf16.msra.mxu0 0
        %827 = vmatprep.subr.bf16.mxu0 0
        %828 = vmatpush1.bf16.msra.mxu0 0
        %829 = vmatprep.subr.bf16.mxu0 0
        %830 = vmatpush1.bf16.msra.mxu0 %v691
        %831 = vmatprep.subr.bf16.mxu0 0
        %832 = vmatpush2.bf16.msra.mxu0 0
        %833 = vmatprep.subr.bf16.mxu0 0
        %834 = vmatpush2.bf16.msra.mxu0 0
        %835 = vmatprep.subr.bf16.mxu0 0
        %836 = vmatpush2.bf16.msra.mxu0 0
        %837 = vmatprep.subr.bf16.mxu0 0
        %838 = vmatpush2.bf16.msra.mxu0 0
        %839 = vmatprep.subr.bf16.mxu0 0
        %840 = vmatpush2.bf16.msra.mxu0 0
        %841 = vmatprep.subr.bf16.mxu0 0
        %842 = vmatpush2.bf16.msra.mxu0 0
        %843 = vmatprep.subr.bf16.mxu0 0
        %844 = vmatpush2.bf16.msra.mxu0 0
        %845 = vmatprep.subr.bf16.mxu0 0
        %846 = vmatpush2.bf16.msra.mxu0 0
        %847 = vmatprep.mubr.bf16.mxu0 0
        %848 = vmatmul.mubr.bf16.gmra.mxu0 %v813
        %v849 = vpop.f32.mrf.mxu0
        %v850 = vadd.f32 0.0, %v849
        %v851 = vpop.f32.mrf.mxu0
        %v852 = vpop.f32.mrf.mxu0
        %v853 = vpop.f32.mrf.mxu0
        %854 = vdwg.mxu0
        %v855 = vmul.f32 %v850, %v775
        %v856 = vadd.f32 %v855, %v789
        %v857 = vmax.f32 %v856, 0.0
        %p858 = scmp.gt.s32.totalorder %s40, 0
        %s859 = scalar_select %p858, 1, 0
        %s860 = scvt.s32.f32 %s859
        %v861 = vstv %s860
        %v862 = vmul.f32 %v857, %v861
        %v863 = vld [vmem:[%s563] sm:$0xff]
        %v864 = vmul.f32 %v863, %v651
        %v865 = vadd.f32 %v864, %v665
        %v866 = vmax.f32 %v865, 0.0
        %v867 = vpack.c.bf16 %v866, %v866
        %v869 = vsel %vm693, %v867, 0
        %871 = vmatprep.subr.bf16.mxu0 0
        %872 = vmatpush1.bf16.msra.mxu0 0
        %873 = vmatprep.subr.bf16.mxu0 0
        %874 = vmatpush1.bf16.msra.mxu0 0
        %875 = vmatprep.subr.bf16.mxu0 0
        %876 = vmatpush1.bf16.msra.mxu0 0
        %877 = vmatprep.subr.bf16.mxu0 0
        %878 = vmatpush1.bf16.msra.mxu0 0
        %879 = vmatprep.subr.bf16.mxu0 0
        %880 = vmatpush1.bf16.msra.mxu0 0
        %881 = vmatprep.subr.bf16.mxu0 0
        %882 = vmatpush1.bf16.msra.mxu0 0
        %883 = vmatprep.subr.bf16.mxu0 0
        %884 = vmatpush1.bf16.msra.mxu0 0
        %885 = vmatprep.subr.bf16.mxu0 0
        %886 = vmatpush1.bf16.msra.mxu0 %v691
        %887 = vmatprep.subr.bf16.mxu0 0
        %888 = vmatpush2.bf16.msra.mxu0 0
        %889 = vmatprep.subr.bf16.mxu0 0
        %890 = vmatpush2.bf16.msra.mxu0 0
        %891 = vmatprep.subr.bf16.mxu0 0
        %892 = vmatpush2.bf16.msra.mxu0 0
        %893 = vmatprep.subr.bf16.mxu0 0
        %894 = vmatpush2.bf16.msra.mxu0 0
        %895 = vmatprep.subr.bf16.mxu0 0
        %896 = vmatpush2.bf16.msra.mxu0 0
        %897 = vmatprep.subr.bf16.mxu0 0
        %898 = vmatpush2.bf16.msra.mxu0 0
        %899 = vmatprep.subr.bf16.mxu0 0
        %900 = vmatpush2.bf16.msra.mxu0 0
        %901 = vmatprep.subr.bf16.mxu0 0
        %902 = vmatpush2.bf16.msra.mxu0 0
        %903 = vmatprep.mubr.bf16.mxu0 0
        %904 = vmatmul.mubr.bf16.gmra.mxu0 %v869
        %v905 = vpop.f32.mrf.mxu0
        %v906 = vadd.f32 0.0, %v905
        %v907 = vpop.f32.mrf.mxu0
        %v908 = vpop.f32.mrf.mxu0
        %v909 = vpop.f32.mrf.mxu0
        %910 = vdwg.mxu0
        %v911 = vmul.f32 %v906, %v775
        %v912 = vadd.f32 %v911, %v789
        %v913 = vmax.f32 %v912, 0.0
        %p914 = scmp.lt.s32.totalorder %s40, 0
        %s915 = scalar_select %p914, 1, 0
        %s916 = scvt.s32.f32 %s915
        %v917 = vstv %s916
        %v918 = vmul.f32 %v913, %v917
        %vm919 = vcmask 64512
        %920 = vst.msk [vmem:[#allocation2 + $0x8] sm:$0xff] %vm919, %v862
        %921 = vst.msk [vmem:[#allocation2 + $0x10] sm:$0xff] %vm919, %v799
        %922 = vst.msk [vmem:[#allocation2 + $0x18] sm:$0xff] %vm919, %v800
        %923 = vst.msk [vmem:[#allocation2 + $0x20] sm:$0xff] %vm919, %v801
        %924 = vst.msk [vmem:[#allocation2 + $0x28] sm:$0xff] %vm919, %v802
        %925 = vst.msk [vmem:[#allocation2 + $0x30] sm:$0xff] %vm919, %v803
        %926 = vst.msk [vmem:[#allocation2 + $0x38] sm:$0xff] %vm919, %v804
        %927 = vst.msk [vmem:[#allocation2 + $0x40] sm:$0xff] %vm919, %v805
        %928 = vst.msk [vmem:[#allocation2 + $0x48] sm:$0xff] %vm919, %v806
        %929 = vst.msk [vmem:[#allocation2 + $0x50] sm:$0xff] %vm919, %v918
        %v930 = vlaneseq
        %v931 = vshrl.u32 %v930, 7
        %v932 = vadd.s32 %v931, 8
        %v933 = vadd.s32 %v931, 16
        %v934 = vadd.s32 %v931, 24
        %v935 = vadd.s32 %v931, 32
        %v936 = vadd.s32 %v931, 40
        %v937 = vadd.s32 %v931, 48
        %v938 = vadd.s32 %v931, 56
        %vm939 = vcmp.lt.s32.totalorder %v931, 0
        %v940 = vsub.s32 0, %v931
        %v941 = vsel %vm939, %v940, %v931
        %v942 = vshrl.u32 %v941, 3
        %v943 = vand.u32 %v941, 7
        %v944 = vsub.s32 0, %v943
        %v945 = vsel %vm939, %v944, %v943
        %vm946 = vcmp.lt.s32.totalorder %v932, 0
        %v947 = vsub.s32 0, %v932
        %v948 = vsel %vm946, %v947, %v932
        %v949 = vshrl.u32 %v948, 3
        %v950 = vand.u32 %v948, 7
        %v951 = vsub.s32 0, %v950
        %v952 = vsel %vm946, %v951, %v950
        %vm953 = vcmp.lt.s32.totalorder %v933, 0
        %v954 = vsub.s32 0, %v933
        %v955 = vsel %vm953, %v954, %v933
        %v956 = vshrl.u32 %v955, 3
        %v957 = vand.u32 %v955, 7
        %v958 = vsub.s32 0, %v957
        %v959 = vsel %vm953, %v958, %v957
        %vm960 = vcmp.lt.s32.totalorder %v934, 0
        %v961 = vsub.s32 0, %v934
        %v962 = vsel %vm960, %v961, %v934
        %v963 = vshrl.u32 %v962, 3
        %v964 = vand.u32 %v962, 7
        %v965 = vsub.s32 0, %v964
        %v966 = vsel %vm960, %v965, %v964
        %vm967 = vcmp.lt.s32.totalorder %v935, 0
        %v968 = vsub.s32 0, %v935
        %v969 = vsel %vm967, %v968, %v935
        %v970 = vshrl.u32 %v969, 3
        %v971 = vand.u32 %v969, 7
        %v972 = vsub.s32 0, %v971
        %v973 = vsel %vm967, %v972, %v971
        %vm974 = vcmp.lt.s32.totalorder %v936, 0
        %v975 = vsub.s32 0, %v936
        %v976 = vsel %vm974, %v975, %v936
        %v977 = vshrl.u32 %v976, 3
        %v978 = vand.u32 %v976, 7
        %v979 = vsub.s32 0, %v978
        %v980 = vsel %vm974, %v979, %v978
        %vm981 = vcmp.lt.s32.totalorder %v937, 0
        %v982 = vsub.s32 0, %v937
        %v983 = vsel %vm981, %v982, %v937
        %v984 = vshrl.u32 %v983, 3
        %v985 = vand.u32 %v983, 7
        %v986 = vsub.s32 0, %v985
        %v987 = vsel %vm981, %v986, %v985
        %vm988 = vcmp.lt.s32.totalorder %v938, 0
        %v989 = vsub.s32 0, %v938
        %v990 = vsel %vm988, %v989, %v938
        %v991 = vshrl.u32 %v990, 3
        %v992 = vand.u32 %v990, 7
        %v993 = vsub.s32 0, %v992
        %v994 = vsel %vm988, %v993, %v992
        %vm995 = vcmp.ne.s32.totalorder %v945, 0
        %vm996 = vcmp.ne.s32.totalorder %v952, 0
        %vm997 = vcmp.ne.s32.totalorder %v959, 0
        %vm998 = vcmp.ne.s32.totalorder %v966, 0
        %vm999 = vcmp.ne.s32.totalorder %v973, 0
        %vm1000 = vcmp.ne.s32.totalorder %v980, 0
        %vm1001 = vcmp.ne.s32.totalorder %v987, 0
        %vm1002 = vcmp.ne.s32.totalorder %v994, 0
        %vm1003 = vcmp.lt.s32.totalorder %v945, 0
        %vm1004 = vcmp.lt.s32.totalorder %v952, 0
        %vm1005 = vcmp.lt.s32.totalorder %v959, 0
        %vm1006 = vcmp.lt.s32.totalorder %v966, 0
        %vm1007 = vcmp.lt.s32.totalorder %v973, 0
        %vm1008 = vcmp.lt.s32.totalorder %v980, 0
        %vm1009 = vcmp.lt.s32.totalorder %v987, 0
        %vm1010 = vcmp.lt.s32.totalorder %v994, 0
        %vm1011 = vmand %vm1003, %vm995
        %vm1012 = vmand %vm1004, %vm996
        %vm1013 = vmand %vm1005, %vm997
        %vm1014 = vmand %vm1006, %vm998
        %vm1015 = vmand %vm1007, %vm999
        %vm1016 = vmand %vm1008, %vm1000
        %vm1017 = vmand %vm1009, %vm1001
        %vm1018 = vmand %vm1010, %vm1002
        %v1019 = vadd.s32 %v945, 8
        %v1020 = vadd.s32 %v952, 8
        %v1021 = vadd.s32 %v959, 8
        %v1022 = vadd.s32 %v966, 8
        %v1023 = vadd.s32 %v973, 8
        %v1024 = vadd.s32 %v980, 8
        %v1025 = vadd.s32 %v987, 8
        %v1026 = vadd.s32 %v994, 8
        %v1027 = vsel %vm1011, %v1019, %v945
        %v1028 = vsel %vm1012, %v1020, %v952
        %v1029 = vsel %vm1013, %v1021, %v959
        %v1030 = vsel %vm1014, %v1022, %v966
        %v1031 = vsel %vm1015, %v1023, %v973
        %v1032 = vsel %vm1016, %v1024, %v980
        %v1033 = vsel %vm1017, %v1025, %v987
        %v1034 = vsel %vm1018, %v1026, %v994
        %vm1035 = vcmp.ne.s32.totalorder %v1027, 0
        %vm1036 = vcmp.ne.s32.totalorder %v1028, 0
        %vm1037 = vcmp.ne.s32.totalorder %v1029, 0
        %vm1038 = vcmp.ne.s32.totalorder %v1030, 0
        %vm1039 = vcmp.ne.s32.totalorder %v1031, 0
        %vm1040 = vcmp.ne.s32.totalorder %v1032, 0
        %vm1041 = vcmp.ne.s32.totalorder %v1033, 0
        %vm1042 = vcmp.ne.s32.totalorder %v1034, 0
        %vm1043 = vcmp.ne.s32.totalorder %v1027, 7
        %vm1044 = vcmp.ne.s32.totalorder %v1028, 7
        %vm1045 = vcmp.ne.s32.totalorder %v1029, 7
        %vm1046 = vcmp.ne.s32.totalorder %v1030, 7
        %vm1047 = vcmp.ne.s32.totalorder %v1031, 7
        %vm1048 = vcmp.ne.s32.totalorder %v1032, 7
        %vm1049 = vcmp.ne.s32.totalorder %v1033, 7
        %vm1050 = vcmp.ne.s32.totalorder %v1034, 7
        %v1051 = vld [vmem:[#allocation2 + $0x7] sm:$0xff]
        %v1052 = vld [vmem:[#allocation2 + $0xf] sm:$0xff]
        %v1053 = vld [vmem:[#allocation2 + $0x17] sm:$0xff]
        %v1054 = vld [vmem:[#allocation2 + $0x1f] sm:$0xff]
        %v1055 = vld [vmem:[#allocation2 + $0x27] sm:$0xff]
        %v1056 = vld [vmem:[#allocation2 + $0x2f] sm:$0xff]
        %v1057 = vld [vmem:[#allocation2 + $0x37] sm:$0xff]
        %v1058 = vld [vmem:[#allocation2 + $0x3f] sm:$0xff]
        %v1059 = vsel %vm1035, 1, 0
        %v1060 = vsel %vm1036, 1, 0
        %v1061 = vsel %vm1037, 1, 0
        %v1062 = vsel %vm1038, 1, 0
        %v1063 = vsel %vm1039, 1, 0
        %v1064 = vsel %vm1040, 1, 0
        %v1065 = vsel %vm1041, 1, 0
        %v1066 = vsel %vm1042, 1, 0
        %vm1067 = vcmp.eq.s32.totalorder %v1059, 1
        %vm1068 = vcmp.eq.s32.totalorder %v1060, 1
        %vm1069 = vcmp.eq.s32.totalorder %v1061, 1
        %vm1070 = vcmp.eq.s32.totalorder %v1062, 1
        %vm1071 = vcmp.eq.s32.totalorder %v1063, 1
        %vm1072 = vcmp.eq.s32.totalorder %v1064, 1
        %vm1073 = vcmp.eq.s32.totalorder %v1065, 1
        %vm1074 = vcmp.eq.s32.totalorder %v1066, 1
        %v1075 = vsel %vm1067, %v1051, 0.0
        %v1076 = vsel %vm1068, %v1052, 0.0
        %v1077 = vsel %vm1069, %v1053, 0.0
        %v1078 = vsel %vm1070, %v1054, 0.0
        %v1079 = vsel %vm1071, %v1055, 0.0
        %v1080 = vsel %vm1072, %v1056, 0.0
        %v1081 = vsel %vm1073, %v1057, 0.0
        %v1082 = vsel %vm1074, %v1058, 0.0
        %v1083 = vld [vmem:[#allocation2 + $0x8] sm:$0xff]
        %v1084 = vld [vmem:[#allocation2 + $0x10] sm:$0xff]
        %v1085 = vld [vmem:[#allocation2 + $0x18] sm:$0xff]
        %v1086 = vld [vmem:[#allocation2 + $0x20] sm:$0xff]
        %v1087 = vld [vmem:[#allocation2 + $0x28] sm:$0xff]
        %v1088 = vld [vmem:[#allocation2 + $0x30] sm:$0xff]
        %v1089 = vld [vmem:[#allocation2 + $0x38] sm:$0xff]
        %v1090 = vld [vmem:[#allocation2 + $0x40] sm:$0xff]
        %v1091 = vld [vmem:[#allocation2 + $0x9] sm:$0xff]
        %v1092 = vld [vmem:[#allocation2 + $0x11] sm:$0xff]
        %v1093 = vld [vmem:[#allocation2 + $0x19] sm:$0xff]
        %v1094 = vld [vmem:[#allocation2 + $0x21] sm:$0xff]
        %v1095 = vld [vmem:[#allocation2 + $0x29] sm:$0xff]
        %v1096 = vld [vmem:[#allocation2 + $0x31] sm:$0xff]
        %v1097 = vld [vmem:[#allocation2 + $0x39] sm:$0xff]
        %v1098 = vld [vmem:[#allocation2 + $0x41] sm:$0xff]
        %v1099 = vsel %vm1043, 1, 0
        %v1100 = vsel %vm1044, 1, 0
        %v1101 = vsel %vm1045, 1, 0
        %v1102 = vsel %vm1046, 1, 0
        %v1103 = vsel %vm1047, 1, 0
        %v1104 = vsel %vm1048, 1, 0
        %v1105 = vsel %vm1049, 1, 0
        %v1106 = vsel %vm1050, 1, 0
        %vm1107 = vcmp.eq.s32.totalorder %v1099, 1
        %vm1108 = vcmp.eq.s32.totalorder %v1100, 1
        %vm1109 = vcmp.eq.s32.totalorder %v1101, 1
        %vm1110 = vcmp.eq.s32.totalorder %v1102, 1
        %vm1111 = vcmp.eq.s32.totalorder %v1103, 1
        %vm1112 = vcmp.eq.s32.totalorder %v1104, 1
        %vm1113 = vcmp.eq.s32.totalorder %v1105, 1
        %vm1114 = vcmp.eq.s32.totalorder %v1106, 1
        %v1115 = vsel %vm1107, %v1091, 0.0
        %v1116 = vsel %vm1108, %v1092, 0.0
        %v1117 = vsel %vm1109, %v1093, 0.0
        %v1118 = vsel %vm1110, %v1094, 0.0
        %v1119 = vsel %vm1111, %v1095, 0.0
        %v1120 = vsel %vm1112, %v1096, 0.0
        %v1121 = vsel %vm1113, %v1097, 0.0
        %v1122 = vsel %vm1114, %v1098, 0.0
        %v1123 = vpack.c.bf16 %v1076, %v1075
        %v1124 = vpack.c.bf16 %v1078, %v1077
        %v1125 = vpack.c.bf16 %v1080, %v1079
        %v1126 = vpack.c.bf16 %v1082, %v1081
        %v1127 = vpack.c.bf16 %v1084, %v1083
        %v1128 = vpack.c.bf16 %v1086, %v1085
        %v1129 = vpack.c.bf16 %v1088, %v1087
        %v1130 = vpack.c.bf16 %v1090, %v1089
        %v1131 = vpack.c.bf16 %v1116, %v1115
        %v1132 = vpack.c.bf16 %v1118, %v1117
        %v1133 = vpack.c.bf16 %v1120, %v1119
        %v1134 = vpack.c.bf16 %v1122, %v1121
        %v1135 = vld [vmem:[#allocation9] sm:$0xf]
        %s1136 = scalar_lea.vmem [#allocation9], 4
        %v1137 = vld [vmem:[%s1136] sm:$0xf]
        %v1139 = vsel %vm919, %v1127, 0
        %v1142 = vsel %vm919, %v1128, 0
        %v1145 = vsel %vm919, %v1129, 0
        %v1148 = vsel %vm919, %v1130, 0
        %vm1150 = vcmask 1043456
        %v1152 = vsel %vm1150, %v1137, 0
        %1154 = vmatprep.subr.bf16.mxu0 0
        %1155 = vmatpush1.bf16.msra.mxu0 0
        %1156 = vmatprep.subr.bf16.mxu0 0
        %1157 = vmatpush1.bf16.msra.mxu0 0
        %1158 = vmatprep.subr.bf16.mxu0 0
        %1159 = vmatpush1.bf16.msra.mxu0 0
        %1160 = vmatprep.subr.bf16.mxu0 0
        %1161 = vmatpush1.bf16.msra.mxu0 0
        %1162 = vmatprep.subr.bf16.mxu0 0
        %1163 = vmatpush1.bf16.msra.mxu0 0
        %1164 = vmatprep.subr.bf16.mxu0 0
        %1165 = vmatpush1.bf16.msra.mxu0 0
        %1166 = vmatprep.subr.bf16.mxu0 0
        %1167 = vmatpush1.bf16.msra.mxu0 0
        %1168 = vmatprep.subr.bf16.mxu0 0
        %1169 = vmatpush1.bf16.msra.mxu0 %v1152
        %1170 = vmatprep.subr.bf16.mxu0 0
        %1171 = vmatpush2.bf16.msra.mxu0 0
        %1172 = vmatprep.subr.bf16.mxu0 0
        %1173 = vmatpush2.bf16.msra.mxu0 0
        %1174 = vmatprep.subr.bf16.mxu0 0
        %1175 = vmatpush2.bf16.msra.mxu0 0
        %1176 = vmatprep.subr.bf16.mxu0 0
        %1177 = vmatpush2.bf16.msra.mxu0 0
        %1178 = vmatprep.subr.bf16.mxu0 0
        %1179 = vmatpush2.bf16.msra.mxu0 0
        %1180 = vmatprep.subr.bf16.mxu0 0
        %1181 = vmatpush2.bf16.msra.mxu0 0
        %1182 = vmatprep.subr.bf16.mxu0 0
        %1183 = vmatpush2.bf16.msra.mxu0 0
        %1184 = vmatprep.subr.bf16.mxu0 0
        %1185 = vmatpush2.bf16.msra.mxu0 0
        %1186 = vmatprep.mubr.bf16.mxu0 0
        %1187 = vmatmul.mubr.bf16.gmra.mxu0 %v1139
        %v1188 = vpop.f32.mrf.mxu0
        %v1189 = vadd.f32 0.0, %v1188
        %v1190 = vpop.f32.mrf.mxu0
        %v1191 = vpop.f32.mrf.mxu0
        %v1192 = vadd.f32 0.0, %v1191
        %v1193 = vpop.f32.mrf.mxu0
        %1194 = vmatprep.mubr.bf16.mxu0 0
        %1195 = vmatmul.mubr.bf16.gmra.mxu0 %v1142
        %v1196 = vpop.f32.mrf.mxu0
        %v1197 = vadd.f32 0.0, %v1196
        %v1198 = vpop.f32.mrf.mxu0
        %v1199 = vpop.f32.mrf.mxu0
        %v1200 = vadd.f32 0.0, %v1199
        %v1201 = vpop.f32.mrf.mxu0
        %1202 = vmatprep.mubr.bf16.mxu0 0
        %1203 = vmatmul.mubr.bf16.gmra.mxu0 %v1145
        %v1204 = vpop.f32.mrf.mxu0
        %v1205 = vadd.f32 0.0, %v1204
        %v1206 = vpop.f32.mrf.mxu0
        %v1207 = vpop.f32.mrf.mxu0
        %v1208 = vadd.f32 0.0, %v1207
        %v1209 = vpop.f32.mrf.mxu0
        %1210 = vmatprep.mubr.bf16.mxu0 0
        %1211 = vmatmul.mubr.bf16.gmra.mxu0 %v1148
        %v1212 = vpop.f32.mrf.mxu0
        %v1213 = vadd.f32 0.0, %v1212
        %v1214 = vpop.f32.mrf.mxu0
        %v1215 = vpop.f32.mrf.mxu0
        %v1216 = vadd.f32 0.0, %v1215
        %v1217 = vpop.f32.mrf.mxu0
        %1218 = vdwg.mxu0
        %v1220 = vsel %vm919, %v1123, 0
        %v1223 = vsel %vm919, %v1124, 0
        %v1226 = vsel %vm919, %v1125, 0
        %v1229 = vsel %vm919, %v1126, 0
        %v1232 = vsel %vm1150, %v1135, 0
        %1234 = vmatprep.subr.bf16.mxu0 0
        %1235 = vmatpush1.bf16.msra.mxu0 0
        %1236 = vmatprep.subr.bf16.mxu0 0
        %1237 = vmatpush1.bf16.msra.mxu0 0
        %1238 = vmatprep.subr.bf16.mxu0 0
        %1239 = vmatpush1.bf16.msra.mxu0 0
        %1240 = vmatprep.subr.bf16.mxu0 0
        %1241 = vmatpush1.bf16.msra.mxu0 0
        %1242 = vmatprep.subr.bf16.mxu0 0
        %1243 = vmatpush1.bf16.msra.mxu0 0
        %1244 = vmatprep.subr.bf16.mxu0 0
        %1245 = vmatpush1.bf16.msra.mxu0 0
        %1246 = vmatprep.subr.bf16.mxu0 0
        %1247 = vmatpush1.bf16.msra.mxu0 0
        %1248 = vmatprep.subr.bf16.mxu0 0
        %1249 = vmatpush1.bf16.msra.mxu0 %v1232
        %1250 = vmatprep.subr.bf16.mxu0 0
        %1251 = vmatpush2.bf16.msra.mxu0 0
        %1252 = vmatprep.subr.bf16.mxu0 0
        %1253 = vmatpush2.bf16.msra.mxu0 0
        %1254 = vmatprep.subr.bf16.mxu0 0
        %1255 = vmatpush2.bf16.msra.mxu0 0
        %1256 = vmatprep.subr.bf16.mxu0 0
        %1257 = vmatpush2.bf16.msra.mxu0 0
        %1258 = vmatprep.subr.bf16.mxu0 0
        %1259 = vmatpush2.bf16.msra.mxu0 0
        %1260 = vmatprep.subr.bf16.mxu0 0
        %1261 = vmatpush2.bf16.msra.mxu0 0
        %1262 = vmatprep.subr.bf16.mxu0 0
        %1263 = vmatpush2.bf16.msra.mxu0 0
        %1264 = vmatprep.subr.bf16.mxu0 0
        %1265 = vmatpush2.bf16.msra.mxu0 0
        %1266 = vmatprep.mubr.bf16.mxu0 0
        %1267 = vmatmul.mubr.bf16.gmra.mxu0 %v1220
        %v1268 = vpop.f32.mrf.mxu0
        %v1269 = vadd.f32 %v1189, %v1268
        %v1270 = vpop.f32.mrf.mxu0
        %v1271 = vpop.f32.mrf.mxu0
        %v1272 = vadd.f32 %v1192, %v1271
        %v1273 = vpop.f32.mrf.mxu0
        %1274 = vmatprep.mubr.bf16.mxu0 0
        %1275 = vmatmul.mubr.bf16.gmra.mxu0 %v1223
        %v1276 = vpop.f32.mrf.mxu0
        %v1277 = vadd.f32 %v1197, %v1276
        %v1278 = vpop.f32.mrf.mxu0
        %v1279 = vpop.f32.mrf.mxu0
        %v1280 = vadd.f32 %v1200, %v1279
        %v1281 = vpop.f32.mrf.mxu0
        %1282 = vmatprep.mubr.bf16.mxu0 0
        %1283 = vmatmul.mubr.bf16.gmra.mxu0 %v1226
        %v1284 = vpop.f32.mrf.mxu0
        %v1285 = vadd.f32 %v1205, %v1284
        %v1286 = vpop.f32.mrf.mxu0
        %v1287 = vpop.f32.mrf.mxu0
        %v1288 = vadd.f32 %v1208, %v1287
        %v1289 = vpop.f32.mrf.mxu0
        %1290 = vmatprep.mubr.bf16.mxu0 0
        %1291 = vmatmul.mubr.bf16.gmra.mxu0 %v1229
        %v1292 = vpop.f32.mrf.mxu0
        %v1293 = vadd.f32 %v1213, %v1292
        %v1294 = vpop.f32.mrf.mxu0
        %v1295 = vpop.f32.mrf.mxu0
        %v1296 = vadd.f32 %v1216, %v1295
        %v1297 = vpop.f32.mrf.mxu0
        %1298 = vdwg.mxu0
        %s1299 = scalar_lea.vmem [#allocation9], 8
        %v1300 = vld [vmem:[%s1299] sm:$0xf]
        %v1302 = vsel %vm919, %v1131, 0
        %v1305 = vsel %vm919, %v1132, 0
        %v1308 = vsel %vm919, %v1133, 0
        %v1311 = vsel %vm919, %v1134, 0
        %v1314 = vsel %vm1150, %v1300, 0
        %1316 = vmatprep.subr.bf16.mxu0 0
        %1317 = vmatpush1.bf16.msra.mxu0 0
        %1318 = vmatprep.subr.bf16.mxu0 0
        %1319 = vmatpush1.bf16.msra.mxu0 0
        %1320 = vmatprep.subr.bf16.mxu0 0
        %1321 = vmatpush1.bf16.msra.mxu0 0
        %1322 = vmatprep.subr.bf16.mxu0 0
        %1323 = vmatpush1.bf16.msra.mxu0 0
        %1324 = vmatprep.subr.bf16.mxu0 0
        %1325 = vmatpush1.bf16.msra.mxu0 0
        %1326 = vmatprep.subr.bf16.mxu0 0
        %1327 = vmatpush1.bf16.msra.mxu0 0
        %1328 = vmatprep.subr.bf16.mxu0 0
        %1329 = vmatpush1.bf16.msra.mxu0 0
        %1330 = vmatprep.subr.bf16.mxu0 0
        %1331 = vmatpush1.bf16.msra.mxu0 %v1314
        %1332 = vmatprep.subr.bf16.mxu0 0
        %1333 = vmatpush2.bf16.msra.mxu0 0
        %1334 = vmatprep.subr.bf16.mxu0 0
        %1335 = vmatpush2.bf16.msra.mxu0 0
        %1336 = vmatprep.subr.bf16.mxu0 0
        %1337 = vmatpush2.bf16.msra.mxu0 0
        %1338 = vmatprep.subr.bf16.mxu0 0
        %1339 = vmatpush2.bf16.msra.mxu0 0
        %1340 = vmatprep.subr.bf16.mxu0 0
        %1341 = vmatpush2.bf16.msra.mxu0 0
        %1342 = vmatprep.subr.bf16.mxu0 0
        %1343 = vmatpush2.bf16.msra.mxu0 0
        %1344 = vmatprep.subr.bf16.mxu0 0
        %1345 = vmatpush2.bf16.msra.mxu0 0
        %1346 = vmatprep.subr.bf16.mxu0 0
        %1347 = vmatpush2.bf16.msra.mxu0 0
        %1348 = vmatprep.mubr.bf16.mxu0 0
        %1349 = vmatmul.mubr.bf16.gmra.mxu0 %v1302
        %v1350 = vpop.f32.mrf.mxu0
        %v1351 = vadd.f32 0.0, %v1350
        %v1352 = vpop.f32.mrf.mxu0
        %v1353 = vpop.f32.mrf.mxu0
        %v1354 = vadd.f32 0.0, %v1353
        %v1355 = vpop.f32.mrf.mxu0
        %1356 = vmatprep.mubr.bf16.mxu0 0
        %1357 = vmatmul.mubr.bf16.gmra.mxu0 %v1305
        %v1358 = vpop.f32.mrf.mxu0
        %v1359 = vadd.f32 0.0, %v1358
        %v1360 = vpop.f32.mrf.mxu0
        %v1361 = vpop.f32.mrf.mxu0
        %v1362 = vadd.f32 0.0, %v1361
        %v1363 = vpop.f32.mrf.mxu0
        %1364 = vmatprep.mubr.bf16.mxu0 0
        %1365 = vmatmul.mubr.bf16.gmra.mxu0 %v1308
        %v1366 = vpop.f32.mrf.mxu0
        %v1367 = vadd.f32 0.0, %v1366
        %v1368 = vpop.f32.mrf.mxu0
        %v1369 = vpop.f32.mrf.mxu0
        %v1370 = vadd.f32 0.0, %v1369
        %v1371 = vpop.f32.mrf.mxu0
        %1372 = vmatprep.mubr.bf16.mxu0 0
        %1373 = vmatmul.mubr.bf16.gmra.mxu0 %v1311
        %v1374 = vpop.f32.mrf.mxu0
        %v1375 = vadd.f32 0.0, %v1374
        %v1376 = vpop.f32.mrf.mxu0
        %v1377 = vpop.f32.mrf.mxu0
        %v1378 = vadd.f32 0.0, %v1377
        %v1379 = vpop.f32.mrf.mxu0
        %1380 = vdwg.mxu0
        %v1381 = vadd.f32 %v1269, %v1351
        %v1382 = vadd.f32 %v1272, %v1354
        %v1383 = vadd.f32 %v1277, %v1359
        %v1384 = vadd.f32 %v1280, %v1362
        %v1385 = vadd.f32 %v1285, %v1367
        %v1386 = vadd.f32 %v1288, %v1370
        %v1387 = vadd.f32 %v1293, %v1375
        %v1388 = vadd.f32 %v1296, %v1378
        %v1389 = vld [vmem:[#allocation2 + $0xf] sm:$0xff]
        %v1390 = vld [vmem:[#allocation2 + $0x17] sm:$0xff]
        %v1391 = vld [vmem:[#allocation2 + $0x1f] sm:$0xff]
        %v1392 = vld [vmem:[#allocation2 + $0x27] sm:$0xff]
        %v1393 = vld [vmem:[#allocation2 + $0x2f] sm:$0xff]
        %v1394 = vld [vmem:[#allocation2 + $0x37] sm:$0xff]
        %v1395 = vld [vmem:[#allocation2 + $0x3f] sm:$0xff]
        %v1396 = vld [vmem:[#allocation2 + $0x47] sm:$0xff]
        %v1397 = vsel %vm1067, %v1389, 0.0
        %v1398 = vsel %vm1068, %v1390, 0.0
        %v1399 = vsel %vm1069, %v1391, 0.0
        %v1400 = vsel %vm1070, %v1392, 0.0
        %v1401 = vsel %vm1071, %v1393, 0.0
        %v1402 = vsel %vm1072, %v1394, 0.0
        %v1403 = vsel %vm1073, %v1395, 0.0
        %v1404 = vsel %vm1074, %v1396, 0.0
        %v1405 = vld [vmem:[#allocation2 + $0x10] sm:$0xff]
        %v1406 = vld [vmem:[#allocation2 + $0x18] sm:$0xff]
        %v1407 = vld [vmem:[#allocation2 + $0x20] sm:$0xff]
        %v1408 = vld [vmem:[#allocation2 + $0x28] sm:$0xff]
        %v1409 = vld [vmem:[#allocation2 + $0x30] sm:$0xff]
        %v1410 = vld [vmem:[#allocation2 + $0x38] sm:$0xff]
        %v1411 = vld [vmem:[#allocation2 + $0x40] sm:$0xff]
        %v1412 = vld [vmem:[#allocation2 + $0x48] sm:$0xff]
        %v1413 = vld [vmem:[#allocation2 + $0x11] sm:$0xff]
        %v1414 = vld [vmem:[#allocation2 + $0x19] sm:$0xff]
        %v1415 = vld [vmem:[#allocation2 + $0x21] sm:$0xff]
        %v1416 = vld [vmem:[#allocation2 + $0x29] sm:$0xff]
        %v1417 = vld [vmem:[#allocation2 + $0x31] sm:$0xff]
        %v1418 = vld [vmem:[#allocation2 + $0x39] sm:$0xff]
        %v1419 = vld [vmem:[#allocation2 + $0x41] sm:$0xff]
        %v1420 = vld [vmem:[#allocation2 + $0x49] sm:$0xff]
        %v1421 = vsel %vm1107, %v1413, 0.0
        %v1422 = vsel %vm1108, %v1414, 0.0
        %v1423 = vsel %vm1109, %v1415, 0.0
        %v1424 = vsel %vm1110, %v1416, 0.0
        %v1425 = vsel %vm1111, %v1417, 0.0
        %v1426 = vsel %vm1112, %v1418, 0.0
        %v1427 = vsel %vm1113, %v1419, 0.0
        %v1428 = vsel %vm1114, %v1420, 0.0
        %v1429 = vpack.c.bf16 %v1398, %v1397
        %v1430 = vpack.c.bf16 %v1400, %v1399
        %v1431 = vpack.c.bf16 %v1402, %v1401
        %v1432 = vpack.c.bf16 %v1404, %v1403
        %v1433 = vpack.c.bf16 %v1406, %v1405
        %v1434 = vpack.c.bf16 %v1408, %v1407
        %v1435 = vpack.c.bf16 %v1410, %v1409
        %v1436 = vpack.c.bf16 %v1412, %v1411
        %v1437 = vpack.c.bf16 %v1422, %v1421
        %v1438 = vpack.c.bf16 %v1424, %v1423
        %v1439 = vpack.c.bf16 %v1426, %v1425
        %v1440 = vpack.c.bf16 %v1428, %v1427
        %s1441 = scalar_lea.vmem [#allocation9], 12
        %v1442 = vld [vmem:[%s1441] sm:$0xf]
        %v1444 = vsel %vm919, %v1429, 0
        %v1447 = vsel %vm919, %v1430, 0
        %v1450 = vsel %vm919, %v1431, 0
        %v1453 = vsel %vm919, %v1432, 0
        %v1456 = vsel %vm1150, %v1442, 0
        %1458 = vmatprep.subr.bf16.mxu0 0
        %1459 = vmatpush1.bf16.msra.mxu0 0
        %1460 = vmatprep.subr.bf16.mxu0 0
        %1461 = vmatpush1.bf16.msra.mxu0 0
        %1462 = vmatprep.subr.bf16.mxu0 0
        %1463 = vmatpush1.bf16.msra.mxu0 0
        %1464 = vmatprep.subr.bf16.mxu0 0
        %1465 = vmatpush1.bf16.msra.mxu0 0
        %1466 = vmatprep.subr.bf16.mxu0 0
        %1467 = vmatpush1.bf16.msra.mxu0 0
        %1468 = vmatprep.subr.bf16.mxu0 0
        %1469 = vmatpush1.bf16.msra.mxu0 0
        %1470 = vmatprep.subr.bf16.mxu0 0
        %1471 = vmatpush1.bf16.msra.mxu0 0
        %1472 = vmatprep.subr.bf16.mxu0 0
        %1473 = vmatpush1.bf16.msra.mxu0 %v1456
        %1474 = vmatprep.subr.bf16.mxu0 0
        %1475 = vmatpush2.bf16.msra.mxu0 0
        %1476 = vmatprep.subr.bf16.mxu0 0
        %1477 = vmatpush2.bf16.msra.mxu0 0
        %1478 = vmatprep.subr.bf16.mxu0 0
        %1479 = vmatpush2.bf16.msra.mxu0 0
        %1480 = vmatprep.subr.bf16.mxu0 0
        %1481 = vmatpush2.bf16.msra.mxu0 0
        %1482 = vmatprep.subr.bf16.mxu0 0
        %1483 = vmatpush2.bf16.msra.mxu0 0
        %1484 = vmatprep.subr.bf16.mxu0 0
        %1485 = vmatpush2.bf16.msra.mxu0 0
        %1486 = vmatprep.subr.bf16.mxu0 0
        %1487 = vmatpush2.bf16.msra.mxu0 0
        %1488 = vmatprep.subr.bf16.mxu0 0
        %1489 = vmatpush2.bf16.msra.mxu0 0
        %1490 = vmatprep.mubr.bf16.mxu0 0
        %1491 = vmatmul.mubr.bf16.gmra.mxu0 %v1444
        %v1492 = vpop.f32.mrf.mxu0
        %v1493 = vadd.f32 0.0, %v1492
        %v1494 = vpop.f32.mrf.mxu0
        %v1495 = vpop.f32.mrf.mxu0
        %v1496 = vadd.f32 0.0, %v1495
        %v1497 = vpop.f32.mrf.mxu0
        %1498 = vmatprep.mubr.bf16.mxu0 0
        %1499 = vmatmul.mubr.bf16.gmra.mxu0 %v1447
        %v1500 = vpop.f32.mrf.mxu0
        %v1501 = vadd.f32 0.0, %v1500
        %v1502 = vpop.f32.mrf.mxu0
        %v1503 = vpop.f32.mrf.mxu0
        %v1504 = vadd.f32 0.0, %v1503
        %v1505 = vpop.f32.mrf.mxu0
        %1506 = vmatprep.mubr.bf16.mxu0 0
        %1507 = vmatmul.mubr.bf16.gmra.mxu0 %v1450
        %v1508 = vpop.f32.mrf.mxu0
        %v1509 = vadd.f32 0.0, %v1508
        %v1510 = vpop.f32.mrf.mxu0
        %v1511 = vpop.f32.mrf.mxu0
        %v1512 = vadd.f32 0.0, %v1511
        %v1513 = vpop.f32.mrf.mxu0
        %1514 = vmatprep.mubr.bf16.mxu0 0
        %1515 = vmatmul.mubr.bf16.gmra.mxu0 %v1453
        %v1516 = vpop.f32.mrf.mxu0
        %v1517 = vadd.f32 0.0, %v1516
        %v1518 = vpop.f32.mrf.mxu0
        %v1519 = vpop.f32.mrf.mxu0
        %v1520 = vadd.f32 0.0, %v1519
        %v1521 = vpop.f32.mrf.mxu0
        %1522 = vdwg.mxu0
        %v1523 = vadd.f32 %v1381, %v1493
        %v1524 = vadd.f32 %v1382, %v1496
        %v1525 = vadd.f32 %v1383, %v1501
        %v1526 = vadd.f32 %v1384, %v1504
        %v1527 = vadd.f32 %v1385, %v1509
        %v1528 = vadd.f32 %v1386, %v1512
        %v1529 = vadd.f32 %v1387, %v1517
        %v1530 = vadd.f32 %v1388, %v1520
        %s1531 = scalar_lea.vmem [#allocation9], 16
        %v1532 = vld [vmem:[%s1531] sm:$0xf]
        %v1534 = vsel %vm919, %v1433, 0
        %v1537 = vsel %vm919, %v1434, 0
        %v1540 = vsel %vm919, %v1435, 0
        %v1543 = vsel %vm919, %v1436, 0
        %v1546 = vsel %vm1150, %v1532, 0
        %1548 = vmatprep.subr.bf16.mxu0 0
        %1549 = vmatpush1.bf16.msra.mxu0 0
        %1550 = vmatprep.subr.bf16.mxu0 0
        %1551 = vmatpush1.bf16.msra.mxu0 0
        %1552 = vmatprep.subr.bf16.mxu0 0
        %1553 = vmatpush1.bf16.msra.mxu0 0
        %1554 = vmatprep.subr.bf16.mxu0 0
        %1555 = vmatpush1.bf16.msra.mxu0 0
        %1556 = vmatprep.subr.bf16.mxu0 0
        %1557 = vmatpush1.bf16.msra.mxu0 0
        %1558 = vmatprep.subr.bf16.mxu0 0
        %1559 = vmatpush1.bf16.msra.mxu0 0
        %1560 = vmatprep.subr.bf16.mxu0 0
        %1561 = vmatpush1.bf16.msra.mxu0 0
        %1562 = vmatprep.subr.bf16.mxu0 0
        %1563 = vmatpush1.bf16.msra.mxu0 %v1546
        %1564 = vmatprep.subr.bf16.mxu0 0
        %1565 = vmatpush2.bf16.msra.mxu0 0
        %1566 = vmatprep.subr.bf16.mxu0 0
        %1567 = vmatpush2.bf16.msra.mxu0 0
        %1568 = vmatprep.subr.bf16.mxu0 0
        %1569 = vmatpush2.bf16.msra.mxu0 0
        %1570 = vmatprep.subr.bf16.mxu0 0
        %1571 = vmatpush2.bf16.msra.mxu0 0
        %1572 = vmatprep.subr.bf16.mxu0 0
        %1573 = vmatpush2.bf16.msra.mxu0 0
        %1574 = vmatprep.subr.bf16.mxu0 0
        %1575 = vmatpush2.bf16.msra.mxu0 0
        %1576 = vmatprep.subr.bf16.mxu0 0
        %1577 = vmatpush2.bf16.msra.mxu0 0
        %1578 = vmatprep.subr.bf16.mxu0 0
        %1579 = vmatpush2.bf16.msra.mxu0 0
        %1580 = vmatprep.mubr.bf16.mxu0 0
        %1581 = vmatmul.mubr.bf16.gmra.mxu0 %v1534
        %v1582 = vpop.f32.mrf.mxu0
        %v1583 = vadd.f32 0.0, %v1582
        %v1584 = vpop.f32.mrf.mxu0
        %v1585 = vpop.f32.mrf.mxu0
        %v1586 = vadd.f32 0.0, %v1585
        %v1587 = vpop.f32.mrf.mxu0
        %1588 = vmatprep.mubr.bf16.mxu0 0
        %1589 = vmatmul.mubr.bf16.gmra.mxu0 %v1537
        %v1590 = vpop.f32.mrf.mxu0
        %v1591 = vadd.f32 0.0, %v1590
        %v1592 = vpop.f32.mrf.mxu0
        %v1593 = vpop.f32.mrf.mxu0
        %v1594 = vadd.f32 0.0, %v1593
        %v1595 = vpop.f32.mrf.mxu0
        %1596 = vmatprep.mubr.bf16.mxu0 0
        %1597 = vmatmul.mubr.bf16.gmra.mxu0 %v1540
        %v1598 = vpop.f32.mrf.mxu0
        %v1599 = vadd.f32 0.0, %v1598
        %v1600 = vpop.f32.mrf.mxu0
        %v1601 = vpop.f32.mrf.mxu0
        %v1602 = vadd.f32 0.0, %v1601
        %v1603 = vpop.f32.mrf.mxu0
        %1604 = vmatprep.mubr.bf16.mxu0 0
        %1605 = vmatmul.mubr.bf16.gmra.mxu0 %v1543
        %v1606 = vpop.f32.mrf.mxu0
        %v1607 = vadd.f32 0.0, %v1606
        %v1608 = vpop.f32.mrf.mxu0
        %v1609 = vpop.f32.mrf.mxu0
        %v1610 = vadd.f32 0.0, %v1609
        %v1611 = vpop.f32.mrf.mxu0
        %1612 = vdwg.mxu0
        %v1613 = vadd.f32 %v1523, %v1583
        %v1614 = vadd.f32 %v1524, %v1586
        %v1615 = vadd.f32 %v1525, %v1591
        %v1616 = vadd.f32 %v1526, %v1594
        %v1617 = vadd.f32 %v1527, %v1599
        %v1618 = vadd.f32 %v1528, %v1602
        %v1619 = vadd.f32 %v1529, %v1607
        %v1620 = vadd.f32 %v1530, %v1610
        %s1621 = scalar_lea.vmem [#allocation9], 20
        %v1622 = vld [vmem:[%s1621] sm:$0xf]
        %v1624 = vsel %vm919, %v1437, 0
        %v1627 = vsel %vm919, %v1438, 0
        %v1630 = vsel %vm919, %v1439, 0
        %v1633 = vsel %vm919, %v1440, 0
        %v1636 = vsel %vm1150, %v1622, 0
        %1638 = vmatprep.subr.bf16.mxu0 0
        %1639 = vmatpush1.bf16.msra.mxu0 0
        %1640 = vmatprep.subr.bf16.mxu0 0
        %1641 = vmatpush1.bf16.msra.mxu0 0
        %1642 = vmatprep.subr.bf16.mxu0 0
        %1643 = vmatpush1.bf16.msra.mxu0 0
        %1644 = vmatprep.subr.bf16.mxu0 0
        %1645 = vmatpush1.bf16.msra.mxu0 0
        %1646 = vmatprep.subr.bf16.mxu0 0
        %1647 = vmatpush1.bf16.msra.mxu0 0
        %1648 = vmatprep.subr.bf16.mxu0 0
        %1649 = vmatpush1.bf16.msra.mxu0 0
        %1650 = vmatprep.subr.bf16.mxu0 0
        %1651 = vmatpush1.bf16.msra.mxu0 0
        %1652 = vmatprep.subr.bf16.mxu0 0
        %1653 = vmatpush1.bf16.msra.mxu0 %v1636
        %1654 = vmatprep.subr.bf16.mxu0 0
        %1655 = vmatpush2.bf16.msra.mxu0 0
        %1656 = vmatprep.subr.bf16.mxu0 0
        %1657 = vmatpush2.bf16.msra.mxu0 0
        %1658 = vmatprep.subr.bf16.mxu0 0
        %1659 = vmatpush2.bf16.msra.mxu0 0
        %1660 = vmatprep.subr.bf16.mxu0 0
        %1661 = vmatpush2.bf16.msra.mxu0 0
        %1662 = vmatprep.subr.bf16.mxu0 0
        %1663 = vmatpush2.bf16.msra.mxu0 0
        %1664 = vmatprep.subr.bf16.mxu0 0
        %1665 = vmatpush2.bf16.msra.mxu0 0
        %1666 = vmatprep.subr.bf16.mxu0 0
        %1667 = vmatpush2.bf16.msra.mxu0 0
        %1668 = vmatprep.subr.bf16.mxu0 0
        %1669 = vmatpush2.bf16.msra.mxu0 0
        %1670 = vmatprep.mubr.bf16.mxu0 0
        %1671 = vmatmul.mubr.bf16.gmra.mxu0 %v1624
        %v1672 = vpop.f32.mrf.mxu0
        %v1673 = vadd.f32 0.0, %v1672
        %v1674 = vpop.f32.mrf.mxu0
        %v1675 = vpop.f32.mrf.mxu0
        %v1676 = vadd.f32 0.0, %v1675
        %v1677 = vpop.f32.mrf.mxu0
        %1678 = vmatprep.mubr.bf16.mxu0 0
        %1679 = vmatmul.mubr.bf16.gmra.mxu0 %v1627
        %v1680 = vpop.f32.mrf.mxu0
        %v1681 = vadd.f32 0.0, %v1680
        %v1682 = vpop.f32.mrf.mxu0
        %v1683 = vpop.f32.mrf.mxu0
        %v1684 = vadd.f32 0.0, %v1683
        %v1685 = vpop.f32.mrf.mxu0
        %1686 = vmatprep.mubr.bf16.mxu0 0
        %1687 = vmatmul.mubr.bf16.gmra.mxu0 %v1630
        %v1688 = vpop.f32.mrf.mxu0
        %v1689 = vadd.f32 0.0, %v1688
        %v1690 = vpop.f32.mrf.mxu0
        %v1691 = vpop.f32.mrf.mxu0
        %v1692 = vadd.f32 0.0, %v1691
        %v1693 = vpop.f32.mrf.mxu0
        %1694 = vmatprep.mubr.bf16.mxu0 0
        %1695 = vmatmul.mubr.bf16.gmra.mxu0 %v1633
        %v1696 = vpop.f32.mrf.mxu0
        %v1697 = vadd.f32 0.0, %v1696
        %v1698 = vpop.f32.mrf.mxu0
        %v1699 = vpop.f32.mrf.mxu0
        %v1700 = vadd.f32 0.0, %v1699
        %v1701 = vpop.f32.mrf.mxu0
        %1702 = vdwg.mxu0
        %v1703 = vadd.f32 %v1613, %v1673
        %v1704 = vadd.f32 %v1614, %v1676
        %v1705 = vadd.f32 %v1615, %v1681
        %v1706 = vadd.f32 %v1616, %v1684
        %v1707 = vadd.f32 %v1617, %v1689
        %v1708 = vadd.f32 %v1618, %v1692
        %v1709 = vadd.f32 %v1619, %v1697
        %v1710 = vadd.f32 %v1620, %v1700
        %v1711 = vld [vmem:[#allocation2 + $0x17] sm:$0xff]
        %v1712 = vld [vmem:[#allocation2 + $0x1f] sm:$0xff]
        %v1713 = vld [vmem:[#allocation2 + $0x27] sm:$0xff]
        %v1714 = vld [vmem:[#allocation2 + $0x2f] sm:$0xff]
        %v1715 = vld [vmem:[#allocation2 + $0x37] sm:$0xff]
        %v1716 = vld [vmem:[#allocation2 + $0x3f] sm:$0xff]
        %v1717 = vld [vmem:[#allocation2 + $0x47] sm:$0xff]
        %v1718 = vld [vmem:[#allocation2 + $0x4f] sm:$0xff]
        %v1719 = vsel %vm1067, %v1711, 0.0
        %v1720 = vsel %vm1068, %v1712, 0.0
        %v1721 = vsel %vm1069, %v1713, 0.0
        %v1722 = vsel %vm1070, %v1714, 0.0
        %v1723 = vsel %vm1071, %v1715, 0.0
        %v1724 = vsel %vm1072, %v1716, 0.0
        %v1725 = vsel %vm1073, %v1717, 0.0
        %v1726 = vsel %vm1074, %v1718, 0.0
        %v1727 = vld [vmem:[#allocation2 + $0x18] sm:$0xff]
        %v1728 = vld [vmem:[#allocation2 + $0x20] sm:$0xff]
        %v1729 = vld [vmem:[#allocation2 + $0x28] sm:$0xff]
        %v1730 = vld [vmem:[#allocation2 + $0x30] sm:$0xff]
        %v1731 = vld [vmem:[#allocation2 + $0x38] sm:$0xff]
        %v1732 = vld [vmem:[#allocation2 + $0x40] sm:$0xff]
        %v1733 = vld [vmem:[#allocation2 + $0x48] sm:$0xff]
        %v1734 = vld [vmem:[#allocation2 + $0x50] sm:$0xff]
        %v1735 = vld [vmem:[#allocation2 + $0x19] sm:$0xff]
        %v1736 = vld [vmem:[#allocation2 + $0x21] sm:$0xff]
        %v1737 = vld [vmem:[#allocation2 + $0x29] sm:$0xff]
        %v1738 = vld [vmem:[#allocation2 + $0x31] sm:$0xff]
        %v1739 = vld [vmem:[#allocation2 + $0x39] sm:$0xff]
        %v1740 = vld [vmem:[#allocation2 + $0x41] sm:$0xff]
        %v1741 = vld [vmem:[#allocation2 + $0x49] sm:$0xff]
        %v1742 = vld [vmem:[#allocation2 + $0x51] sm:$0xff]
        %v1743 = vsel %vm1107, %v1735, 0.0
        %v1744 = vsel %vm1108, %v1736, 0.0
        %v1745 = vsel %vm1109, %v1737, 0.0
        %v1746 = vsel %vm1110, %v1738, 0.0
        %v1747 = vsel %vm1111, %v1739, 0.0
        %v1748 = vsel %vm1112, %v1740, 0.0
        %v1749 = vsel %vm1113, %v1741, 0.0
        %v1750 = vsel %vm1114, %v1742, 0.0
        %v1751 = vpack.c.bf16 %v1720, %v1719
        %v1752 = vpack.c.bf16 %v1722, %v1721
        %v1753 = vpack.c.bf16 %v1724, %v1723
        %v1754 = vpack.c.bf16 %v1726, %v1725
        %v1755 = vpack.c.bf16 %v1728, %v1727
        %v1756 = vpack.c.bf16 %v1730, %v1729
        %v1757 = vpack.c.bf16 %v1732, %v1731
        %v1758 = vpack.c.bf16 %v1734, %v1733
        %v1759 = vpack.c.bf16 %v1744, %v1743
        %v1760 = vpack.c.bf16 %v1746, %v1745
        %v1761 = vpack.c.bf16 %v1748, %v1747
        %v1762 = vpack.c.bf16 %v1750, %v1749
        %s1763 = scalar_lea.vmem [#allocation9], 24
        %v1764 = vld [vmem:[%s1763] sm:$0xf]
        %v1766 = vsel %vm919, %v1751, 0
        %v1769 = vsel %vm919, %v1752, 0
        %v1772 = vsel %vm919, %v1753, 0
        %v1775 = vsel %vm919, %v1754, 0
        %v1778 = vsel %vm1150, %v1764, 0
        %1780 = vmatprep.subr.bf16.mxu0 0
        %1781 = vmatpush1.bf16.msra.mxu0 0
        %1782 = vmatprep.subr.bf16.mxu0 0
        %1783 = vmatpush1.bf16.msra.mxu0 0
        %1784 = vmatprep.subr.bf16.mxu0 0
        %1785 = vmatpush1.bf16.msra.mxu0 0
        %1786 = vmatprep.subr.bf16.mxu0 0
        %1787 = vmatpush1.bf16.msra.mxu0 0
        %1788 = vmatprep.subr.bf16.mxu0 0
        %1789 = vmatpush1.bf16.msra.mxu0 0
        %1790 = vmatprep.subr.bf16.mxu0 0
        %1791 = vmatpush1.bf16.msra.mxu0 0
        %1792 = vmatprep.subr.bf16.mxu0 0
        %1793 = vmatpush1.bf16.msra.mxu0 0
        %1794 = vmatprep.subr.bf16.mxu0 0
        %1795 = vmatpush1.bf16.msra.mxu0 %v1778
        %1796 = vmatprep.subr.bf16.mxu0 0
        %1797 = vmatpush2.bf16.msra.mxu0 0
        %1798 = vmatprep.subr.bf16.mxu0 0
        %1799 = vmatpush2.bf16.msra.mxu0 0
        %1800 = vmatprep.subr.bf16.mxu0 0
        %1801 = vmatpush2.bf16.msra.mxu0 0
        %1802 = vmatprep.subr.bf16.mxu0 0
        %1803 = vmatpush2.bf16.msra.mxu0 0
        %1804 = vmatprep.subr.bf16.mxu0 0
        %1805 = vmatpush2.bf16.msra.mxu0 0
        %1806 = vmatprep.subr.bf16.mxu0 0
        %1807 = vmatpush2.bf16.msra.mxu0 0
        %1808 = vmatprep.subr.bf16.mxu0 0
        %1809 = vmatpush2.bf16.msra.mxu0 0
        %1810 = vmatprep.subr.bf16.mxu0 0
        %1811 = vmatpush2.bf16.msra.mxu0 0
        %1812 = vmatprep.mubr.bf16.mxu0 0
        %1813 = vmatmul.mubr.bf16.gmra.mxu0 %v1766
        %v1814 = vpop.f32.mrf.mxu0
        %v1815 = vadd.f32 0.0, %v1814
        %v1816 = vpop.f32.mrf.mxu0
        %v1817 = vpop.f32.mrf.mxu0
        %v1818 = vadd.f32 0.0, %v1817
        %v1819 = vpop.f32.mrf.mxu0
        %1820 = vmatprep.mubr.bf16.mxu0 0
        %1821 = vmatmul.mubr.bf16.gmra.mxu0 %v1769
        %v1822 = vpop.f32.mrf.mxu0
        %v1823 = vadd.f32 0.0, %v1822
        %v1824 = vpop.f32.mrf.mxu0
        %v1825 = vpop.f32.mrf.mxu0
        %v1826 = vadd.f32 0.0, %v1825
        %v1827 = vpop.f32.mrf.mxu0
        %1828 = vmatprep.mubr.bf16.mxu0 0
        %1829 = vmatmul.mubr.bf16.gmra.mxu0 %v1772
        %v1830 = vpop.f32.mrf.mxu0
        %v1831 = vadd.f32 0.0, %v1830
        %v1832 = vpop.f32.mrf.mxu0
        %v1833 = vpop.f32.mrf.mxu0
        %v1834 = vadd.f32 0.0, %v1833
        %v1835 = vpop.f32.mrf.mxu0
        %1836 = vmatprep.mubr.bf16.mxu0 0
        %1837 = vmatmul.mubr.bf16.gmra.mxu0 %v1775
        %v1838 = vpop.f32.mrf.mxu0
        %v1839 = vadd.f32 0.0, %v1838
        %v1840 = vpop.f32.mrf.mxu0
        %v1841 = vpop.f32.mrf.mxu0
        %v1842 = vadd.f32 0.0, %v1841
        %v1843 = vpop.f32.mrf.mxu0
        %1844 = vdwg.mxu0
        %v1845 = vadd.f32 %v1703, %v1815
        %v1846 = vadd.f32 %v1704, %v1818
        %v1847 = vadd.f32 %v1705, %v1823
        %v1848 = vadd.f32 %v1706, %v1826
        %v1849 = vadd.f32 %v1707, %v1831
        %v1850 = vadd.f32 %v1708, %v1834
        %v1851 = vadd.f32 %v1709, %v1839
        %v1852 = vadd.f32 %v1710, %v1842
        %s1853 = scalar_lea.vmem [#allocation9], 28
        %v1854 = vld [vmem:[%s1853] sm:$0xf]
        %v1856 = vsel %vm919, %v1755, 0
        %v1859 = vsel %vm919, %v1756, 0
        %v1862 = vsel %vm919, %v1757, 0
        %v1865 = vsel %vm919, %v1758, 0
        %v1868 = vsel %vm1150, %v1854, 0
        %1870 = vmatprep.subr.bf16.mxu0 0
        %1871 = vmatpush1.bf16.msra.mxu0 0
        %1872 = vmatprep.subr.bf16.mxu0 0
        %1873 = vmatpush1.bf16.msra.mxu0 0
        %1874 = vmatprep.subr.bf16.mxu0 0
        %1875 = vmatpush1.bf16.msra.mxu0 0
        %1876 = vmatprep.subr.bf16.mxu0 0
        %1877 = vmatpush1.bf16.msra.mxu0 0
        %1878 = vmatprep.subr.bf16.mxu0 0
        %1879 = vmatpush1.bf16.msra.mxu0 0
        %1880 = vmatprep.subr.bf16.mxu0 0
        %1881 = vmatpush1.bf16.msra.mxu0 0
        %1882 = vmatprep.subr.bf16.mxu0 0
        %1883 = vmatpush1.bf16.msra.mxu0 0
        %1884 = vmatprep.subr.bf16.mxu0 0
        %1885 = vmatpush1.bf16.msra.mxu0 %v1868
        %1886 = vmatprep.subr.bf16.mxu0 0
        %1887 = vmatpush2.bf16.msra.mxu0 0
        %1888 = vmatprep.subr.bf16.mxu0 0
        %1889 = vmatpush2.bf16.msra.mxu0 0
        %1890 = vmatprep.subr.bf16.mxu0 0
        %1891 = vmatpush2.bf16.msra.mxu0 0
        %1892 = vmatprep.subr.bf16.mxu0 0
        %1893 = vmatpush2.bf16.msra.mxu0 0
        %1894 = vmatprep.subr.bf16.mxu0 0
        %1895 = vmatpush2.bf16.msra.mxu0 0
        %1896 = vmatprep.subr.bf16.mxu0 0
        %1897 = vmatpush2.bf16.msra.mxu0 0
        %1898 = vmatprep.subr.bf16.mxu0 0
        %1899 = vmatpush2.bf16.msra.mxu0 0
        %1900 = vmatprep.subr.bf16.mxu0 0
        %1901 = vmatpush2.bf16.msra.mxu0 0
        %1902 = vmatprep.mubr.bf16.mxu0 0
        %1903 = vmatmul.mubr.bf16.gmra.mxu0 %v1856
        %v1904 = vpop.f32.mrf.mxu0
        %v1905 = vadd.f32 0.0, %v1904
        %v1906 = vpop.f32.mrf.mxu0
        %v1907 = vpop.f32.mrf.mxu0
        %v1908 = vadd.f32 0.0, %v1907
        %v1909 = vpop.f32.mrf.mxu0
        %1910 = vmatprep.mubr.bf16.mxu0 0
        %1911 = vmatmul.mubr.bf16.gmra.mxu0 %v1859
        %v1912 = vpop.f32.mrf.mxu0
        %v1913 = vadd.f32 0.0, %v1912
        %v1914 = vpop.f32.mrf.mxu0
        %v1915 = vpop.f32.mrf.mxu0
        %v1916 = vadd.f32 0.0, %v1915
        %v1917 = vpop.f32.mrf.mxu0
        %1918 = vmatprep.mubr.bf16.mxu0 0
        %1919 = vmatmul.mubr.bf16.gmra.mxu0 %v1862
        %v1920 = vpop.f32.mrf.mxu0
        %v1921 = vadd.f32 0.0, %v1920
        %v1922 = vpop.f32.mrf.mxu0
        %v1923 = vpop.f32.mrf.mxu0
        %v1924 = vadd.f32 0.0, %v1923
        %v1925 = vpop.f32.mrf.mxu0
        %1926 = vmatprep.mubr.bf16.mxu0 0
        %1927 = vmatmul.mubr.bf16.gmra.mxu0 %v1865
        %v1928 = vpop.f32.mrf.mxu0
        %v1929 = vadd.f32 0.0, %v1928
        %v1930 = vpop.f32.mrf.mxu0
        %v1931 = vpop.f32.mrf.mxu0
        %v1932 = vadd.f32 0.0, %v1931
        %v1933 = vpop.f32.mrf.mxu0
        %1934 = vdwg.mxu0
        %v1935 = vadd.f32 %v1845, %v1905
        %v1936 = vadd.f32 %v1846, %v1908
        %v1937 = vadd.f32 %v1847, %v1913
        %v1938 = vadd.f32 %v1848, %v1916
        %v1939 = vadd.f32 %v1849, %v1921
        %v1940 = vadd.f32 %v1850, %v1924
        %v1941 = vadd.f32 %v1851, %v1929
        %v1942 = vadd.f32 %v1852, %v1932
        %s1943 = scalar_lea.vmem [#allocation9], 32
        %v1944 = vld [vmem:[%s1943] sm:$0xf]
        %v1946 = vsel %vm919, %v1759, 0
        %v1949 = vsel %vm919, %v1760, 0
        %v1952 = vsel %vm919, %v1761, 0
        %v1955 = vsel %vm919, %v1762, 0
        %v1958 = vsel %vm1150, %v1944, 0
        %1960 = vmatprep.subr.bf16.mxu0 0
        %1961 = vmatpush1.bf16.msra.mxu0 0
        %1962 = vmatprep.subr.bf16.mxu0 0
        %1963 = vmatpush1.bf16.msra.mxu0 0
        %1964 = vmatprep.subr.bf16.mxu0 0
        %1965 = vmatpush1.bf16.msra.mxu0 0
        %1966 = vmatprep.subr.bf16.mxu0 0
        %1967 = vmatpush1.bf16.msra.mxu0 0
        %1968 = vmatprep.subr.bf16.mxu0 0
        %1969 = vmatpush1.bf16.msra.mxu0 0
        %1970 = vmatprep.subr.bf16.mxu0 0
        %1971 = vmatpush1.bf16.msra.mxu0 0
        %1972 = vmatprep.subr.bf16.mxu0 0
        %1973 = vmatpush1.bf16.msra.mxu0 0
        %1974 = vmatprep.subr.bf16.mxu0 0
        %1975 = vmatpush1.bf16.msra.mxu0 %v1958
        %1976 = vmatprep.subr.bf16.mxu0 0
        %1977 = vmatpush2.bf16.msra.mxu0 0
        %1978 = vmatprep.subr.bf16.mxu0 0
        %1979 = vmatpush2.bf16.msra.mxu0 0
        %1980 = vmatprep.subr.bf16.mxu0 0
        %1981 = vmatpush2.bf16.msra.mxu0 0
        %1982 = vmatprep.subr.bf16.mxu0 0
        %1983 = vmatpush2.bf16.msra.mxu0 0
        %1984 = vmatprep.subr.bf16.mxu0 0
        %1985 = vmatpush2.bf16.msra.mxu0 0
        %1986 = vmatprep.subr.bf16.mxu0 0
        %1987 = vmatpush2.bf16.msra.mxu0 0
        %1988 = vmatprep.subr.bf16.mxu0 0
        %1989 = vmatpush2.bf16.msra.mxu0 0
        %1990 = vmatprep.subr.bf16.mxu0 0
        %1991 = vmatpush2.bf16.msra.mxu0 0
        %1992 = vmatprep.mubr.bf16.mxu0 0
        %1993 = vmatmul.mubr.bf16.gmra.mxu0 %v1946
        %v1994 = vpop.f32.mrf.mxu0
        %v1995 = vadd.f32 0.0, %v1994
        %v1996 = vpop.f32.mrf.mxu0
        %v1997 = vpop.f32.mrf.mxu0
        %v1998 = vadd.f32 0.0, %v1997
        %v1999 = vpop.f32.mrf.mxu0
        %2000 = vmatprep.mubr.bf16.mxu0 0
        %2001 = vmatmul.mubr.bf16.gmra.mxu0 %v1949
        %v2002 = vpop.f32.mrf.mxu0
        %v2003 = vadd.f32 0.0, %v2002
        %v2004 = vpop.f32.mrf.mxu0
        %v2005 = vpop.f32.mrf.mxu0
        %v2006 = vadd.f32 0.0, %v2005
        %v2007 = vpop.f32.mrf.mxu0
        %2008 = vmatprep.mubr.bf16.mxu0 0
        %2009 = vmatmul.mubr.bf16.gmra.mxu0 %v1952
        %v2010 = vpop.f32.mrf.mxu0
        %v2011 = vadd.f32 0.0, %v2010
        %v2012 = vpop.f32.mrf.mxu0
        %v2013 = vpop.f32.mrf.mxu0
        %v2014 = vadd.f32 0.0, %v2013
        %v2015 = vpop.f32.mrf.mxu0
        %2016 = vmatprep.mubr.bf16.mxu0 0
        %2017 = vmatmul.mubr.bf16.gmra.mxu0 %v1955
        %v2018 = vpop.f32.mrf.mxu0
        %v2019 = vadd.f32 0.0, %v2018
        %v2020 = vpop.f32.mrf.mxu0
        %v2021 = vpop.f32.mrf.mxu0
        %v2022 = vadd.f32 0.0, %v2021
        %v2023 = vpop.f32.mrf.mxu0
        %2024 = vdwg.mxu0
        %v2025 = vadd.f32 %v1935, %v1995
        %v2026 = vadd.f32 %v1936, %v1998
        %v2027 = vadd.f32 %v1937, %v2003
        %v2028 = vadd.f32 %v1938, %v2006
        %v2029 = vadd.f32 %v1939, %v2011
        %v2030 = vadd.f32 %v1940, %v2014
        %v2031 = vadd.f32 %v1941, %v2019
        %v2032 = vadd.f32 %v1942, %v2022
        %v2033 = vld [vmem:[%s9] sm:$0x1]
        %v2035 = vlaneseq
        %v2036 = vshrl.u32 %v2035, 7
        %v2037 = vsub.s32 0, %v2036
        %v2038 = vrot.slane %v2033, %v2037
        %v2040 = vmul.f32 %v2025, %v2038
        %v2041 = vmul.f32 %v2026, %v2038
        %v2042 = vmul.f32 %v2027, %v2038
        %v2043 = vmul.f32 %v2028, %v2038
        %v2044 = vmul.f32 %v2029, %v2038
        %v2045 = vmul.f32 %v2030, %v2038
        %v2046 = vmul.f32 %v2031, %v2038
        %v2047 = vmul.f32 %v2032, %v2038
        %v2048 = vld [vmem:[%s10] sm:$0x1]
        %v2050 = vlaneseq
        %v2051 = vshrl.u32 %v2050, 7
        %v2052 = vsub.s32 0, %v2051
        %v2053 = vrot.slane %v2048, %v2052
        %v2055 = vadd.f32 %v2040, %v2053
        %v2056 = vadd.f32 %v2041, %v2053
        %v2057 = vadd.f32 %v2042, %v2053
        %v2058 = vadd.f32 %v2043, %v2053
        %v2059 = vadd.f32 %v2044, %v2053
        %v2060 = vadd.f32 %v2045, %v2053
        %v2061 = vadd.f32 %v2046, %v2053
        %v2062 = vadd.f32 %v2047, %v2053
        %v2063 = vmax.f32 %v2055, 0.0
        %v2064 = vmax.f32 %v2056, 0.0
        %v2065 = vmax.f32 %v2057, 0.0
        %v2066 = vmax.f32 %v2058, 0.0
        %v2067 = vmax.f32 %v2059, 0.0
        %v2068 = vmax.f32 %v2060, 0.0
        %v2069 = vmax.f32 %v2061, 0.0
        %v2070 = vmax.f32 %v2062, 0.0
        %v2071 = vpack.c.bf16 %v2064, %v2063
        %v2072 = vpack.c.bf16 %v2066, %v2065
        %v2073 = vpack.c.bf16 %v2068, %v2067
        %v2074 = vpack.c.bf16 %v2070, %v2069
        %v2075 = vld [vmem:[%s11] sm:$0xf]
        %v2076 = vld [vmem:[%s13] sm:$0xf]
        %v2077 = vld [vmem:[%s13 + $0x4] sm:$0xf]
        %v2080 = vunpack.c.l.b16 %v2076
        %v2081 = vunpack.c.l.b16 %v2077
        %v2082 = vpack.c.b16 %v2081, %v2080
        %2084 = vmatprep.subr.bf16.mxu0 0
        %2085 = vmatpush1.bf16.msra.mxu0 0
        %2086 = vmatprep.subr.bf16.mxu0 0
        %2087 = vmatpush1.bf16.msra.mxu0 0
        %2088 = vmatprep.subr.bf16.mxu0 0
        %2089 = vmatpush1.bf16.msra.mxu0 0
        %2090 = vmatprep.subr.bf16.mxu0 0
        %2091 = vmatpush1.bf16.msra.mxu0 0
        %2092 = vmatprep.subr.bf16.mxu0 0
        %2093 = vmatpush1.bf16.msra.mxu0 0
        %2094 = vmatprep.subr.bf16.mxu0 0
        %2095 = vmatpush1.bf16.msra.mxu0 0
        %2096 = vmatprep.subr.bf16.mxu0 0
        %2097 = vmatpush1.bf16.msra.mxu0 0
        %2098 = vmatprep.subr.bf16.mxu0 0
        %2099 = vmatpush1.bf16.msra.mxu0 %v2082
        %2100 = vmatprep.subr.bf16.mxu0 0
        %2101 = vmatpush2.bf16.msra.mxu0 0
        %2102 = vmatprep.subr.bf16.mxu0 0
        %2103 = vmatpush2.bf16.msra.mxu0 0
        %2104 = vmatprep.subr.bf16.mxu0 0
        %2105 = vmatpush2.bf16.msra.mxu0 0
        %2106 = vmatprep.subr.bf16.mxu0 0
        %2107 = vmatpush2.bf16.msra.mxu0 0
        %2108 = vmatprep.subr.bf16.mxu0 0
        %2109 = vmatpush2.bf16.msra.mxu0 0
        %2110 = vmatprep.subr.bf16.mxu0 0
        %2111 = vmatpush2.bf16.msra.mxu0 0
        %2112 = vmatprep.subr.bf16.mxu0 0
        %2113 = vmatpush2.bf16.msra.mxu0 0
        %2114 = vmatprep.subr.bf16.mxu0 0
        %2115 = vmatpush2.bf16.msra.mxu0 0
        %2116 = vmatprep.mubr.bf16.mxu0 0
        %2117 = vmatmul.mubr.bf16.gmra.mxu0 %v695
        %v2118 = vpop.f32.mrf.mxu0
        %v2119 = vadd.f32 0.0, %v2118
        %v2120 = vpop.f32.mrf.mxu0
        %v2121 = vpop.f32.mrf.mxu0
        %v2122 = vadd.f32 0.0, %v2121
        %v2123 = vpop.f32.mrf.mxu0
        %2124 = vmatprep.mubr.bf16.mxu0 0
        %2125 = vmatmul.mubr.bf16.gmra.mxu0 %v698
        %v2126 = vpop.f32.mrf.mxu0
        %v2127 = vadd.f32 0.0, %v2126
        %v2128 = vpop.f32.mrf.mxu0
        %v2129 = vpop.f32.mrf.mxu0
        %v2130 = vadd.f32 0.0, %v2129
        %v2131 = vpop.f32.mrf.mxu0
        %2132 = vmatprep.mubr.bf16.mxu0 0
        %2133 = vmatmul.mubr.bf16.gmra.mxu0 %v701
        %v2134 = vpop.f32.mrf.mxu0
        %v2135 = vadd.f32 0.0, %v2134
        %v2136 = vpop.f32.mrf.mxu0
        %v2137 = vpop.f32.mrf.mxu0
        %v2138 = vadd.f32 0.0, %v2137
        %v2139 = vpop.f32.mrf.mxu0
        %2140 = vmatprep.mubr.bf16.mxu0 0
        %2141 = vmatmul.mubr.bf16.gmra.mxu0 %v704
        %v2142 = vpop.f32.mrf.mxu0
        %v2143 = vadd.f32 0.0, %v2142
        %v2144 = vpop.f32.mrf.mxu0
        %v2145 = vpop.f32.mrf.mxu0
        %v2146 = vadd.f32 0.0, %v2145
        %v2147 = vpop.f32.mrf.mxu0
        %2148 = vdwg.mxu0
        %v2150 = vsel %vm919, %v2071, 0
        %v2153 = vsel %vm919, %v2072, 0
        %v2156 = vsel %vm919, %v2073, 0
        %v2159 = vsel %vm919, %v2074, 0
        %v2162 = vsel %vm1150, %v2075, 0
        %2164 = vmatprep.subr.bf16.mxu0 0
        %2165 = vmatpush1.bf16.msra.mxu0 0
        %2166 = vmatprep.subr.bf16.mxu0 0
        %2167 = vmatpush1.bf16.msra.mxu0 0
        %2168 = vmatprep.subr.bf16.mxu0 0
        %2169 = vmatpush1.bf16.msra.mxu0 0
        %2170 = vmatprep.subr.bf16.mxu0 0
        %2171 = vmatpush1.bf16.msra.mxu0 0
        %2172 = vmatprep.subr.bf16.mxu0 0
        %2173 = vmatpush1.bf16.msra.mxu0 0
        %2174 = vmatprep.subr.bf16.mxu0 0
        %2175 = vmatpush1.bf16.msra.mxu0 0
        %2176 = vmatprep.subr.bf16.mxu0 0
        %2177 = vmatpush1.bf16.msra.mxu0 0
        %2178 = vmatprep.subr.bf16.mxu0 0
        %2179 = vmatpush1.bf16.msra.mxu0 %v2162
        %2180 = vmatprep.subr.bf16.mxu0 0
        %2181 = vmatpush2.bf16.msra.mxu0 0
        %2182 = vmatprep.subr.bf16.mxu0 0
        %2183 = vmatpush2.bf16.msra.mxu0 0
        %2184 = vmatprep.subr.bf16.mxu0 0
        %2185 = vmatpush2.bf16.msra.mxu0 0
        %2186 = vmatprep.subr.bf16.mxu0 0
        %2187 = vmatpush2.bf16.msra.mxu0 0
        %2188 = vmatprep.subr.bf16.mxu0 0
        %2189 = vmatpush2.bf16.msra.mxu0 0
        %2190 = vmatprep.subr.bf16.mxu0 0
        %2191 = vmatpush2.bf16.msra.mxu0 0
        %2192 = vmatprep.subr.bf16.mxu0 0
        %2193 = vmatpush2.bf16.msra.mxu0 0
        %2194 = vmatprep.subr.bf16.mxu0 0
        %2195 = vmatpush2.bf16.msra.mxu0 0
        %2196 = vmatprep.mubr.bf16.mxu0 0
        %2197 = vmatmul.mubr.bf16.gmra.mxu0 %v2150
        %v2198 = vpop.f32.mrf.mxu0
        %v2199 = vadd.f32 %v2119, %v2198
        %v2200 = vpop.f32.mrf.mxu0
        %v2201 = vpop.f32.mrf.mxu0
        %v2202 = vadd.f32 %v2122, %v2201
        %v2203 = vpop.f32.mrf.mxu0
        %2204 = vmatprep.mubr.bf16.mxu0 0
        %2205 = vmatmul.mubr.bf16.gmra.mxu0 %v2153
        %v2206 = vpop.f32.mrf.mxu0
        %v2207 = vadd.f32 %v2127, %v2206
        %v2208 = vpop.f32.mrf.mxu0
        %v2209 = vpop.f32.mrf.mxu0
        %v2210 = vadd.f32 %v2130, %v2209
        %v2211 = vpop.f32.mrf.mxu0
        %2212 = vmatprep.mubr.bf16.mxu0 0
        %2213 = vmatmul.mubr.bf16.gmra.mxu0 %v2156
        %v2214 = vpop.f32.mrf.mxu0
        %v2215 = vadd.f32 %v2135, %v2214
        %v2216 = vpop.f32.mrf.mxu0
        %v2217 = vpop.f32.mrf.mxu0
        %v2218 = vadd.f32 %v2138, %v2217
        %v2219 = vpop.f32.mrf.mxu0
        %2220 = vmatprep.mubr.bf16.mxu0 0
        %2221 = vmatmul.mubr.bf16.gmra.mxu0 %v2159
        %v2222 = vpop.f32.mrf.mxu0
        %v2223 = vadd.f32 %v2143, %v2222
        %v2224 = vpop.f32.mrf.mxu0
        %v2225 = vpop.f32.mrf.mxu0
        %v2226 = vadd.f32 %v2146, %v2225
        %v2227 = vpop.f32.mrf.mxu0
        %2228 = vdwg.mxu0
        %v2229 = vld [vmem:[%s12] sm:$0x1]
        %v2231 = vlaneseq
        %v2232 = vshrl.u32 %v2231, 7
        %v2233 = vsub.s32 0, %v2232
        %v2234 = vrot.slane %v2229, %v2233
        %v2236 = vadd.f32 %v2199, %v2234
        %v2237 = vadd.f32 %v2202, %v2234
        %v2238 = vadd.f32 %v2207, %v2234
        %v2239 = vadd.f32 %v2210, %v2234
        %v2240 = vadd.f32 %v2215, %v2234
        %v2241 = vadd.f32 %v2218, %v2234
        %v2242 = vadd.f32 %v2223, %v2234
        %v2243 = vadd.f32 %v2226, %v2234
        %vm2244 = vcmask 261120
        %2245 = vst.msk [vmem:[%s621] sm:$0xff] %vm2244, %v2236
        %2246 = vst.msk [vmem:[%s621 + $0x8] sm:$0xff] %vm2244, %v2237
        %2247 = vst.msk [vmem:[%s621 + $0x10] sm:$0xff] %vm2244, %v2238
        %2248 = vst.msk [vmem:[%s621 + $0x18] sm:$0xff] %vm2244, %v2239
        %2249 = vst.msk [vmem:[%s621 + $0x20] sm:$0xff] %vm2244, %v2240
        %2250 = vst.msk [vmem:[%s621 + $0x28] sm:$0xff] %vm2244, %v2241
        %2251 = vst.msk [vmem:[%s621 + $0x30] sm:$0xff] %vm2244, %v2242
        %2252 = vst.msk [vmem:[%s621 + $0x38] sm:$0xff] %vm2244, %v2243
        %s2253 = sand.u32 %s388, 1
        %s2254 = scalar_lea.sflag [#allocation5], %s2253
        %s2255 = sand.u32 %s388, 1
        %s2256 = smul.addr %s2255, 64
        %s2257 = scalar_lea.vmem [#allocation11], %s2256
        // Predicated region
        $region93: #{tpu_custom_call.1} parent=75 // pred_check
          %p2258 = pneg %p398
        $region94: #{tpu_custom_call.1} parent=75 // pred_check_branch
          %2260 = sbr.rel (%p2258) target = $region96
        $region95: #{tpu_custom_call.1} parent=75 // pred_region
          %s2261 = smul.u32 8, %s40
          %s2263 = ssub.s32 1024, 1024
          %2264 = vsyncadd %s2254, %s2263
          %s2265 = smul.addr %s39, 8
          %s2266 = sadd.s32 %s2261, %s2265
          %s2267 = smul.addr %s2266, 128
          %s2268 = scalar_lea.hbm %s14, %s2267
          %s2269 = sshll.u32 %s2257, 4
          %s2270 = int_to_ptr.vmem [resolvable:$true] %s2269
          %2275 = dma.vmem_to_hbm [thread:$0]  %s2270, 1024, %s2268, %s2254, 128, 128, 8
        $region96: #{tpu_custom_call.1} parent=75 // pred_fallthru
          _
      $region76: #{tpu_custom_call.1} parent=5 // pred_fallthru
        _
      %p2276 = scmp.le.s32.totalorder 2, %s30
      // Predicated region
      $region97: #{tpu_custom_call.1} parent=5 // pred_check
        %p2277 = pneg %p2276
      $region98: #{tpu_custom_call.1} parent=5 // pred_check_branch
        %2279 = sbr.rel (%p2277) target = $region100
      $region99: #{tpu_custom_call.1} parent=5 // pred_region
        %s2280 = ssub.s32 %s30, 2
        // Predicated region
        $region101: #{tpu_custom_call.1} parent=99 // pred_check
          %p2281 = pneg %p404
        $region102: #{tpu_custom_call.1} parent=99 // pred_check_branch
          %2283 = sbr.rel (%p2281) target = $region104
        $region103: #{tpu_custom_call.1} parent=99 // pred_region
          %s2284 = sand.u32 %s389, 1
          %s2285 = scalar_lea.sflag [#allocation5], %s2284
          %s2286 = sand.u32 %s389, 1
          %s2287 = smul.addr %s2286, 64
          %s2288 = scalar_lea.vmem [#allocation11], %s2287
          %2289 = dma.done %s2285, 1024
        $region104: #{tpu_custom_call.1} parent=99 // pred_fallthru
          _
      $region100: #{tpu_custom_call.1} parent=5 // pred_fallthru
        _
    $region6: #{tpu_custom_call.1} parent=1 // loop_footer
      %s34 = sadd.s32 1, %s30
    $region7: #{tpu_custom_call.1} parent=1 // loop_footer_branch
      %29 = sbr.rel target = $region3
    $region8: #{tpu_custom_call.1} parent=1 // loop_exit
      _
    %2290 = vsyncpa [#allocation4], 1
    %s2291 = scalar_lea.sflag [#allocation4], 1
    %2292 = vsyncpa %s2291, 1
    %2293 = vsyncpa [#allocation7], 1
    %s2294 = scalar_lea.sflag [#allocation7], 1
    %2295 = vsyncpa %s2294, 1
    %2296 = vsyncpa [#allocation10], 1
    %2297 = vsyncpa [#allocation5], 1
    %s2298 = scalar_lea.sflag [#allocation5], 1
    %2299 = vsyncpa %s2298, 1

</llo_original>
